<compile_context>
chip_gen: v7x
topology: tpu7x:2x2x1
jax: 0.10.0
libtpu: 0.0.40
codegen_flags: <defaults>
</compile_context>

<pallas_src>
import functools

import numpy as np
import jax
import jax.numpy as jnp
from jax.experimental import pallas as pl
from jax.experimental.pallas import tpu as pltpu

_CHUNK = 256               # kernel-2 cumsum chunk width
_LSB_CLEAR = 0xFFFFFFFE    # mask clearing the fg bit from a packed key


def _pick_tn1(C, HW, vmem_target=6 << 20, floor=4096, cap=1 << 16):
    """Kernel-1 tile width (power of two >= 4096 so the kernel-2 geometry
    always divides).  Large enough to amortize per-grid-step overhead, small
    enough that the double-buffered pipeline stays well under the scoped-VMEM
    default on every generation (v7x: 32 MiB scoped / 64 MiB physical) and
    that padding waste (which also inflates the sort) stays bounded."""
    bytes_per_col = 8 * C + 8          # f32 logits in + packed f32 keys out + label
    t = cap
    while t > floor and t * bytes_per_col > vmem_target:
        t //= 2
    while t > floor and ((-HW) % t) * 4 > HW:          # > 25% padding waste
        t //= 2
    return t


# --------------- Kernel 1: fused softmax + packed errors + gts --------------

def _softmax_pack_kernel(x_ref, lbl_ref, key_ref, gts_ref, *, ignore_index):
    x = x_ref[...].astype(jnp.float32)                 # (C, TN) logits
    m = jnp.max(x, axis=0, keepdims=True)
    e = jnp.exp(x - m)
    s = jnp.sum(e, axis=0, keepdims=True)              # (1, TN)
    p = e * pl.reciprocal(s)                           # softmax over classes

    C, TN = x.shape
    cls = jax.lax.broadcasted_iota(jnp.int32, (C, TN), 0)
    lbl = lbl_ref[...]                                 # (1, TN) int32
    valid = lbl != ignore_index
    is_fg = jnp.logical_and(lbl == cls, valid)         # (C, TN) bool
    fg = jnp.where(is_fg, 1.0, 0.0)
    err = jnp.where(valid, jnp.abs(fg - p), 0.0)       # ignore/pad pixels inert

    # Pack fg into the mantissa LSB of the negated error: one ascending f32
    # sort then carries key and value together.
    bits = pltpu.bitcast(-err, jnp.uint32)
    bits = (bits & jnp.uint32(_LSB_CLEAR)) | jnp.where(
        is_fg, jnp.uint32(1), jnp.uint32(0))
    key_ref[...] = pltpu.bitcast(bits, jnp.float32)
    gts_ref[...] = jnp.sum(fg, axis=1, keepdims=True)  # per-tile fg counts


# ----------- Kernel 2: carry-free, super-tiled Lovasz reduction -------------

def _lovasz_tile_kernel(base_ref, gts_ref, tri_ref, key_ref, loss_ref, *,
                        k_chunks):
    t = pl.program_id(0)
    C = key_ref.shape[0]
    CK = C * k_chunks

    keys = key_ref[...].reshape(CK, _CHUNK)            # free: k_chunks % 8 == 0
    bits = pltpu.bitcast(keys, jnp.uint32)
    fg = jnp.where((bits & jnp.uint32(1)) > 0, 1.0, 0.0)        # (CK, 256) 0/1
    nerr = pltpu.bitcast(bits & jnp.uint32(_LSB_CLEAR), jnp.float32)  # == -err

    # Within-chunk inclusive cumsum of fg: ONE MXU matmul for all C*K chunks
    # against the resident upper-triangular bf16 tile (0/1 operands -> exact
    # in f32 accumulation).
    local_cum = jnp.dot(fg.astype(jnp.bfloat16), tri_ref[...],
                        preferred_element_type=jnp.float32)     # (CK, 256)
    cum_fg = base_ref[...] + local_cum                 # + precomputed chunk base

    gts = gts_ref[...]                                 # (CK, 1) class totals
    row = jax.lax.broadcasted_iota(jnp.int32, (CK, _CHUNK), 0)
    col = jax.lax.broadcasted_iota(jnp.int32, (CK, _CHUNK), 1)
    # Global 1-based sorted position.
    # TODO(synk): f32 loses integer exactness past ~2^24 pixels; split the
    #             reduction per image before that regime.
    pos = ((row & (k_chunks - 1)) * _CHUNK + col + 1
           + t * (k_chunks * _CHUNK)).astype(jnp.float32)
    cum_nfg = pos - cum_fg                             # cumsum(1 - fg)

    union = gts + cum_nfg                              # >= 1 wherever it matters
    jac = 1.0 - (gts - cum_fg) * pl.reciprocal(union)

    # Jaccard at the previous position via exclusive cumsums; jac_prev == 0 at
    # global position 1 for present classes, so no first-element special case.
    cum_fg_prev = cum_fg - fg
    cum_nfg_prev = cum_nfg - 1.0 + fg
    union_prev = gts + cum_nfg_prev
    union_prev = jnp.where(union_prev <= 0.0, 1.0, union_prev)  # absent classes
    jac_prev = 1.0 - (gts - cum_fg_prev) * pl.reciprocal(union_prev)
    grad = jac - jac_prev                              # lovasz_grad(fg_sorted)

    # err = -nerr; fold the sign into the reduction (saves a full negate).
    loss_ref[...] = -jnp.sum(nerr * grad, axis=1, keepdims=True)


# ------------------------------- wrapper ------------------------------------

def lovasz_softmax_loss(logits, target, ignore_index=255):
    """Matches LovaszSoftmax(classes='present', per_image=False).forward."""
    B, C, H, W = logits.shape
    HW = H * W

    TN1 = _pick_tn1(C, HW)
    HW_pad = -(-HW // TN1) * TN1
    tiles_per_b = HW_pad // TN1
    N = B * HW_pad

    x = logits.reshape(B, C, HW)
    lbl = target.reshape(B, 1, HW).astype(jnp.int32)
    if HW_pad != HW:                                   # padded pixels are inert
        x = jnp.pad(x, ((0, 0), (0, 0), (0, HW_pad - HW)))
        lbl = jnp.pad(lbl, ((0, 0), (0, 0), (0, HW_pad - HW)),
                      constant_values=ignore_index)

    keys, gts_tiles = pl.pallas_call(
        functools.partial(_softmax_pack_kernel, ignore_index=ignore_index),
        out_shape=(jax.ShapeDtypeStruct((C, N), jnp.float32),
                   jax.ShapeDtypeStruct((B * tiles_per_b, C, 1), jnp.float32)),
        grid=(B, tiles_per_b),
        in_specs=[pl.BlockSpec((None, C, TN1), lambda b, i: (b, 0, i)),
                  pl.BlockSpec((None, 1, TN1), lambda b, i: (b, 0, i))],
        out_specs=(pl.BlockSpec((C, TN1),
                                lambda b, i: (0, b * tiles_per_b + i)),
                   pl.BlockSpec((None, C, 1),
                                lambda b, i: (b * tiles_per_b + i, 0, 0))),
        compiler_params=pltpu.CompilerParams(
            dimension_semantics=("parallel", "parallel")),
    )(x, lbl)

    gts = jnp.sum(gts_tiles, axis=0)                   # (C, 1) per-class count

    # TODO(synk): the global descending sort stays in XLA; it is a single
    # packed-f32 key sort (fg travels in the mantissa LSB) instead of a
    # 2-operand variadic key/value sort.
    keys_s = jax.lax.sort(keys, dimension=1, is_stable=False)

    # Kernel-2 geometry: K 256-wide chunks per grid step.
    n_chunks = N // _CHUNK                             # always a multiple of 16
    K = 32 if n_chunks % 32 == 0 else 16
    n_steps = n_chunks // K
    CK = C * K

    # Exclusive per-chunk fg prefix over the sorted order, precomputed in one
    # cheap fused XLA pass.  This removes the only sequential dependency, so
    # every kernel-2 grid step is independent ("parallel" => 2 TCs on v7x).
    bits_s = jax.lax.bitcast_convert_type(keys_s, jnp.uint32)
    fg_chunk = jnp.sum(
        (bits_s & jnp.uint32(1)).astype(jnp.float32).reshape(
            C, n_chunks, _CHUNK),
        axis=2)                                        # (C, n_chunks)
    chunk_base = jnp.cumsum(fg_chunk, axis=1, dtype=jnp.float32) - fg_chunk
    base = chunk_base.reshape(C, n_steps, K).transpose(1, 0, 2)
    base = base.reshape(n_steps, CK, 1)                # row order: c*K + k
    gts_rep = jnp.repeat(gts, K, axis=0)               # (CK, 1)

    tri = jnp.asarray(np.triu(np.ones((_CHUNK, _CHUNK), np.float32)),
                      dtype=jnp.bfloat16)              # resident in VMEM
    keys3 = keys_s.reshape(C, n_chunks, _CHUNK)        # free metadata reshape

    loss_parts = pl.pallas_call(
        functools.partial(_lovasz_tile_kernel, k_chunks=K),
        out_shape=jax.ShapeDtypeStruct((n_steps, CK, 1), jnp.float32),
        grid=(n_steps,),
        in_specs=[pl.BlockSpec((None, CK, 1), lambda t: (t, 0, 0)),
                  pl.BlockSpec((CK, 1), lambda t: (0, 0)),
                  pl.BlockSpec((_CHUNK, _CHUNK), lambda t: (0, 0)),
                  pl.BlockSpec((C, K, _CHUNK), lambda t: (0, t, 0))],
        out_specs=pl.BlockSpec((None, CK, 1), lambda t: (t, 0, 0)),
        compiler_params=pltpu.CompilerParams(
            dimension_semantics=("parallel",)),
    )(base, gts_rep, tri, keys3)

    loss_c = jnp.sum(loss_parts.reshape(n_steps, C, K), axis=(0, 2))   # (C,)
    present = (gts[:, 0] > 0.0).astype(jnp.float32)    # classes='present'
    n_present = jnp.sum(present)
    return jnp.where(n_present > 0,
                     jnp.sum(loss_c * present) / jnp.maximum(n_present, 1.0),
                     0.0)


# ------------------------------ reference -----------------------------------

def _reference_numpy(logits, target, ignore=255):
    """Direct port of the PyTorch lovasz_softmax path (float32 numpy)."""
    logits = np.asarray(logits, np.float32)
    target = np.asarray(target)
    B, C, H, W = logits.shape
    x = logits - logits.max(axis=1, keepdims=True)
    e = np.exp(x)
    probas = e / e.sum(axis=1, keepdims=True)
    probas = probas.transpose(0, 2, 3, 1).reshape(-1, C)
    labels = target.reshape(-1)
    valid = labels != ignore
    probas = probas[valid]
    labels = labels[valid]
    losses = []
    for c in range(C):
        fg = (labels == c).astype(np.float32)
        if fg.sum() == 0:          # classes='present'
            continue
        errors = np.abs(fg - probas[:, c]).astype(np.float32)
        perm = np.argsort(-errors, kind="stable")
        errors_sorted = errors[perm]
        fg_sorted = fg[perm]
        gts = fg_sorted.sum()
        intersection = gts - np.cumsum(fg_sorted, dtype=np.float32)
        union = gts + np.cumsum(1.0 - fg_sorted, dtype=np.float32)
        jaccard = 1.0 - intersection / union
        if len(fg_sorted) > 1:
            jaccard[1:] = jaccard[1:] - jaccard[:-1]
        losses.append(float(np.dot(errors_sorted, jaccard)))
    return float(np.mean(losses)) if losses else 0.0


if __name__ == "__main__":
    key = jax.random.PRNGKey(0)
    B, C, H, W = 2, 4, 16, 16
    k1, k2 = jax.random.split(key)
    logits = jax.random.normal(k1, (B, C, H, W), dtype=jnp.float32)
    target = jax.random.randint(k2, (B, H, W), 0, C, dtype=jnp.int32)
    target = target.at[0, 0, :5].set(255)   # exercise ignore_index path

    fn = jax.jit(lovasz_softmax_loss)
    loss = jax.block_until_ready(fn(logits, target))
    ref = _reference_numpy(np.asarray(logits), np.asarray(target), 255)
    assert np.isfinite(float(loss))
    np.testing.assert_allclose(float(loss), ref, rtol=1e-4, atol=1e-5)

    # Heavily tied errors (uniform softmax): the loss must be invariant to
    # tie ordering and to the fg-in-LSB key perturbation.
    logits_tied = jnp.zeros_like(logits)
    loss_t = jax.block_until_ready(fn(logits_tied, target))
    ref_t = _reference_numpy(np.asarray(logits_tied), np.asarray(target), 255)
    np.testing.assert_allclose(float(loss_t), ref_t, rtol=1e-4, atol=1e-5)

    print("KERNEL_OK")
</pallas_src>

<mosaic_0001>
module attributes {stable_mosaic.version = 11 : i64} {
  func.func @_softmax_pack_kernel(%arg0: i32, %arg1: i32, %arg2: memref<1x4x4096xf32, #tpu.memory_space<vmem>>, %arg3: memref<1x1x4096xi32, #tpu.memory_space<vmem>>, %arg4: memref<4x4096xf32, #tpu.memory_space<vmem>>, %arg5: memref<1x4x1xf32, #tpu.memory_space<vmem>>) attributes {dimension_semantics = [#tpu.dimension_semantics<parallel>, #tpu.dimension_semantics<parallel>], iteration_bounds = array<i64: 2, 1>, scalar_prefetch = 0 : i64, scratch_operands = 0 : i64, tpu.core_type = #tpu.core_type<tc>, window_params = [{transform_indices = @transform_0, window_bounds = array<i64: 1, 4, 4096>}, {transform_indices = @transform_1, window_bounds = array<i64: 1, 1, 4096>}, {transform_indices = @transform_2, window_bounds = array<i64: 4, 4096>}, {transform_indices = @transform_3, window_bounds = array<i64: 1, 4, 1>}]} {
    %c0 = arith.constant 0 : index
    %c0_0 = arith.constant 0 : index
    %c0_1 = arith.constant 0 : index
    %0 = vector.load %arg2[%c0, %c0_0, %c0_1] : memref<1x4x4096xf32, #tpu.memory_space<vmem>>, vector<1x4x4096xf32>
    %1 = vector.shape_cast %0 : vector<1x4x4096xf32> to vector<4x4096xf32>
    %cst = arith.constant dense<0xFF800000> : vector<4096xf32>
    %2 = vector.multi_reduction <maximumf>, %1, %cst [0] : vector<4x4096xf32> to vector<4096xf32>
    %3 = vector.shape_cast %2 : vector<4096xf32> to vector<1x4096xf32>
    %4 = vector.broadcast %3 : vector<1x4096xf32> to vector<4x4096xf32>
    %5 = arith.subf %1, %4 : vector<4x4096xf32>
    %6 = math.exp %5 : vector<4x4096xf32>
    %cst_2 = arith.constant dense<0.000000e+00> : vector<4096xf32>
    %7 = vector.multi_reduction <add>, %6, %cst_2 [0] : vector<4x4096xf32> to vector<4096xf32>
    %8 = vector.shape_cast %7 : vector<4096xf32> to vector<1x4096xf32>
    %9 = tpu.reciprocal %8 : vector<1x4096xf32> -> vector<1x4096xf32>
    %10 = vector.broadcast %9 : vector<1x4096xf32> to vector<4x4096xf32>
    %11 = arith.mulf %6, %10 : vector<4x4096xf32>
    %12 = tpu.iota {dimensions = array<i32: 0>} : vector<4x4096xi32>
    %c0_3 = arith.constant 0 : index
    %c0_4 = arith.constant 0 : index
    %c0_5 = arith.constant 0 : index
    %13 = vector.load %arg3[%c0_3, %c0_4, %c0_5] : memref<1x1x4096xi32, #tpu.memory_space<vmem>>, vector<1x1x4096xi32>
    %14 = vector.shape_cast %13 : vector<1x1x4096xi32> to vector<1x4096xi32>
    %c255_i32 = arith.constant 255 : i32
    %15 = vector.broadcast %c255_i32 : i32 to vector<1x4096xi32>
    %16 = arith.cmpi ne, %14, %15 : vector<1x4096xi32>
    %17 = vector.broadcast %14 : vector<1x4096xi32> to vector<4x4096xi32>
    %18 = arith.cmpi eq, %17, %12 : vector<4x4096xi32>
    %19 = vector.broadcast %16 : vector<1x4096xi1> to vector<4x4096xi1>
    %20 = arith.andi %18, %19 : vector<4x4096xi1>
    %cst_6 = arith.constant 1.000000e+00 : f32
    %cst_7 = arith.constant 0.000000e+00 : f32
    %21 = vector.broadcast %cst_6 : f32 to vector<4x4096xf32>
    %22 = vector.broadcast %cst_7 : f32 to vector<4x4096xf32>
    %23 = arith.select %20, %21, %22 : vector<4x4096xi1>, vector<4x4096xf32>
    %24 = arith.subf %23, %11 : vector<4x4096xf32>
    %25 = math.absf %24 : vector<4x4096xf32>
    %cst_8 = arith.constant 0.000000e+00 : f32
    %26 = vector.shape_cast %16 : vector<1x4096xi1> to vector<1x4096xi1>
    %27 = vector.broadcast %26 : vector<1x4096xi1> to vector<4x4096xi1>
    %28 = vector.broadcast %cst_8 : f32 to vector<4x4096xf32>
    %29 = arith.select %27, %25, %28 : vector<4x4096xi1>, vector<4x4096xf32>
    %cst_9 = arith.constant 0.000000e+00 : f32
    %30 = vector.broadcast %cst_9 : f32 to vector<4x4096xf32>
    %31 = arith.subf %30, %29 : vector<4x4096xf32>
    %32 = tpu.bitcast %31 : vector<4x4096xf32> -> vector<4x4096xi32>
    %c-2_i32 = arith.constant -2 : i32
    %33 = vector.broadcast %c-2_i32 : i32 to vector<4x4096xi32>
    %34 = arith.andi %32, %33 : vector<4x4096xi32>
    %c1_i32 = arith.constant 1 : i32
    %c0_i32 = arith.constant 0 : i32
    %35 = vector.broadcast %c1_i32 : i32 to vector<4x4096xi32>
    %36 = vector.broadcast %c0_i32 : i32 to vector<4x4096xi32>
    %37 = arith.select %20, %35, %36 : vector<4x4096xi1>, vector<4x4096xi32>
    %38 = arith.ori %34, %37 : vector<4x4096xi32>
    %39 = tpu.bitcast %38 : vector<4x4096xi32> -> vector<4x4096xf32>
    %c0_10 = arith.constant 0 : index
    %c0_11 = arith.constant 0 : index
    %40 = vector.load %arg4[%c0_10, %c0_11] : memref<4x4096xf32, #tpu.memory_space<vmem>>, vector<4x4096xf32>
    tpu.vector_store %arg4[%c0_10, %c0_11], %39 {strides = array<i32>} : memref<4x4096xf32, #tpu.memory_space<vmem>>, vector<4x4096xf32>,
    %cst_12 = arith.constant dense<0.000000e+00> : vector<4xf32>
    %41 = vector.multi_reduction <add>, %23, %cst_12 [1] : vector<4x4096xf32> to vector<4xf32>
    %42 = vector.shape_cast %41 : vector<4xf32> to vector<4x1xf32>
    %c0_13 = arith.constant 0 : index
    %c0_14 = arith.constant 0 : index
    %c0_15 = arith.constant 0 : index
    %43 = vector.load %arg5[%c0_13, %c0_14, %c0_15] : memref<1x4x1xf32, #tpu.memory_space<vmem>>, vector<1x4x1xf32>
    %44 = vector.shape_cast %43 : vector<1x4x1xf32> to vector<4x1xf32>
    %45 = vector.shape_cast %42 : vector<4x1xf32> to vector<1x4x1xf32>
    tpu.vector_store %arg5[%c0_13, %c0_14, %c0_15], %45 {strides = array<i32>} : memref<1x4x1xf32, #tpu.memory_space<vmem>>, vector<1x4x1xf32>,
    return
  }
  func.func @transform_0(%arg0: i32, %arg1: i32) -> (i32, i32, i32) {
    %c0_i32 = arith.constant 0 : i32
    %c0_i32_0 = arith.constant 0 : i32
    return %arg0, %c0_i32, %arg1 : i32, i32, i32
  }
  func.func @transform_1(%arg0: i32, %arg1: i32) -> (i32, i32, i32) {
    %c0_i32 = arith.constant 0 : i32
    %c0_i32_0 = arith.constant 0 : i32
    return %arg0, %c0_i32, %arg1 : i32, i32, i32
  }
  func.func @transform_2(%arg0: i32, %arg1: i32) -> (i32, i32) {
    %c1_i32 = arith.constant 1 : i32
    %0 = arith.muli %arg0, %c1_i32 : i32
    %1 = arith.addi %0, %arg1 : i32
    %c0_i32 = arith.constant 0 : i32
    %c0_i32_0 = arith.constant 0 : i32
    return %c0_i32, %1 : i32, i32
  }
  func.func @transform_3(%arg0: i32, %arg1: i32) -> (i32, i32, i32) {
    %c1_i32 = arith.constant 1 : i32
    %0 = arith.muli %arg0, %c1_i32 : i32
    %1 = arith.addi %0, %arg1 : i32
    %c0_i32 = arith.constant 0 : i32
    %c0_i32_0 = arith.constant 0 : i32
    %c0_i32_1 = arith.constant 0 : i32
    return %1, %c0_i32, %c0_i32_0 : i32, i32, i32
  }
}

module attributes {stable_mosaic.version = 11 : i64} {
  func.func @_lovasz_tile_kernel(%arg0: i32, %arg1: memref<1x128x1xf32, #tpu.memory_space<vmem>>, %arg2: memref<128x1xf32, #tpu.memory_space<vmem>>, %arg3: memref<256x256xbf16, #tpu.memory_space<vmem>>, %arg4: memref<4x32x256xf32, #tpu.memory_space<vmem>>, %arg5: memref<1x128x1xf32, #tpu.memory_space<vmem>>) attributes {dimension_semantics = [#tpu.dimension_semantics<parallel>], iteration_bounds = array<i64: 1>, scalar_prefetch = 0 : i64, scratch_operands = 0 : i64, tpu.core_type = #tpu.core_type<tc>, window_params = [{transform_indices = @transform_0, window_bounds = array<i64: 1, 128, 1>}, {pipeline_mode = #tpu.pipeline_mode<synchronous>, transform_indices = @transform_1, window_bounds = array<i64: 128, 1>}, {pipeline_mode = #tpu.pipeline_mode<synchronous>, transform_indices = @transform_2, window_bounds = array<i64: 256, 256>}, {transform_indices = @transform_3, window_bounds = array<i64: 4, 32, 256>}, {transform_indices = @transform_4, window_bounds = array<i64: 1, 128, 1>}]} {
    %c0 = arith.constant 0 : index
    %c0_0 = arith.constant 0 : index
    %c0_1 = arith.constant 0 : index
    %0 = vector.load %arg4[%c0, %c0_0, %c0_1] : memref<4x32x256xf32, #tpu.memory_space<vmem>>, vector<4x32x256xf32>
    %1 = vector.shape_cast %0 : vector<4x32x256xf32> to vector<128x256xf32>
    %2 = tpu.bitcast %1 : vector<128x256xf32> -> vector<128x256xi32>
    %c1_i32 = arith.constant 1 : i32
    %3 = vector.broadcast %c1_i32 : i32 to vector<128x256xi32>
    %4 = arith.andi %2, %3 : vector<128x256xi32>
    %c0_i32 = arith.constant 0 : i32
    %5 = vector.broadcast %c0_i32 : i32 to vector<128x256xi32>
    %6 = arith.cmpi ugt, %4, %5 : vector<128x256xi32>
    %cst = arith.constant 1.000000e+00 : f32
    %cst_2 = arith.constant 0.000000e+00 : f32
    %7 = vector.broadcast %cst : f32 to vector<128x256xf32>
    %8 = vector.broadcast %cst_2 : f32 to vector<128x256xf32>
    %9 = arith.select %6, %7, %8 : vector<128x256xi1>, vector<128x256xf32>
    %c-2_i32 = arith.constant -2 : i32
    %10 = vector.broadcast %c-2_i32 : i32 to vector<128x256xi32>
    %11 = arith.andi %2, %10 : vector<128x256xi32>
    %12 = tpu.bitcast %11 : vector<128x256xi32> -> vector<128x256xf32>
    %13 = arith.truncf %9 : vector<128x256xf32> to vector<128x256xbf16>
    %c0_3 = arith.constant 0 : index
    %c0_4 = arith.constant 0 : index
    %14 = vector.load %arg3[%c0_3, %c0_4] : memref<256x256xbf16, #tpu.memory_space<vmem>>, vector<256x256xbf16>
    %cst_5 = arith.constant dense<0.000000e+00> : vector<128x256xf32>
    %15 = tpu.matmul %13, %14, %cst_5 {dimension_numbers = #tpu.dot_dimension_numbers<[1], [0], [0], [1], [0, 0, 1, 1], [], []>} : vector<128x256xbf16>, vector<256x256xbf16>, vector<128x256xf32> -> vector<128x256xf32>
    %c0_6 = arith.constant 0 : index
    %c0_7 = arith.constant 0 : index
    %c0_8 = arith.constant 0 : index
    %16 = vector.load %arg1[%c0_6, %c0_7, %c0_8] : memref<1x128x1xf32, #tpu.memory_space<vmem>>, vector<1x128x1xf32>
    %17 = vector.shape_cast %16 : vector<1x128x1xf32> to vector<128x1xf32>
    %18 = vector.broadcast %17 : vector<128x1xf32> to vector<128x256xf32>
    %19 = arith.addf %18, %15 : vector<128x256xf32>
    %c0_9 = arith.constant 0 : index
    %c0_10 = arith.constant 0 : index
    %20 = vector.load %arg2[%c0_9, %c0_10] : memref<128x1xf32, #tpu.memory_space<vmem>>, vector<128x1xf32>
    %21 = tpu.iota {dimensions = array<i32: 0>} : vector<128x256xi32>
    %22 = tpu.iota {dimensions = array<i32: 1>} : vector<128x256xi32>
    %c31_i32 = arith.constant 31 : i32
    %23 = vector.broadcast %c31_i32 : i32 to vector<128x256xi32>
    %24 = arith.andi %21, %23 : vector<128x256xi32>
    %c256_i32 = arith.constant 256 : i32
    %25 = vector.broadcast %c256_i32 : i32 to vector<128x256xi32>
    %26 = arith.muli %24, %25 : vector<128x256xi32>
    %27 = arith.addi %26, %22 : vector<128x256xi32>
    %c1_i32_11 = arith.constant 1 : i32
    %28 = vector.broadcast %c1_i32_11 : i32 to vector<128x256xi32>
    %29 = arith.addi %27, %28 : vector<128x256xi32>
    %c8192_i32 = arith.constant 8192 : i32
    %30 = arith.muli %arg0, %c8192_i32 : i32
    %31 = vector.broadcast %30 : i32 to vector<128x256xi32>
    %32 = arith.addi %29, %31 : vector<128x256xi32>
    %33 = arith.sitofp %32 : vector<128x256xi32> to vector<128x256xf32>
    %34 = arith.subf %33, %19 : vector<128x256xf32>
    %35 = vector.broadcast %20 : vector<128x1xf32> to vector<128x256xf32>
    %36 = arith.addf %35, %34 : vector<128x256xf32>
    %37 = vector.broadcast %20 : vector<128x1xf32> to vector<128x256xf32>
    %38 = arith.subf %37, %19 : vector<128x256xf32>
    %39 = tpu.reciprocal %36 : vector<128x256xf32> -> vector<128x256xf32>
    %40 = arith.mulf %38, %39 : vector<128x256xf32>
    %cst_12 = arith.constant 1.000000e+00 : f32
    %41 = vector.broadcast %cst_12 : f32 to vector<128x256xf32>
    %42 = arith.subf %41, %40 : vector<128x256xf32>
    %43 = arith.subf %19, %9 : vector<128x256xf32>
    %cst_13 = arith.constant 1.000000e+00 : f32
    %44 = vector.broadcast %cst_13 : f32 to vector<128x256xf32>
    %45 = arith.subf %34, %44 : vector<128x256xf32>
    %46 = arith.addf %45, %9 : vector<128x256xf32>
    %47 = vector.broadcast %20 : vector<128x1xf32> to vector<128x256xf32>
    %48 = arith.addf %47, %46 : vector<128x256xf32>
    %cst_14 = arith.constant 0.000000e+00 : f32
    %49 = vector.broadcast %cst_14 : f32 to vector<128x256xf32>
    %50 = arith.cmpf ole, %48, %49 : vector<128x256xf32>
    %cst_15 = arith.constant 1.000000e+00 : f32
    %51 = vector.broadcast %cst_15 : f32 to vector<128x256xf32>
    %52 = arith.select %50, %51, %48 : vector<128x256xi1>, vector<128x256xf32>
    %53 = vector.broadcast %20 : vector<128x1xf32> to vector<128x256xf32>
    %54 = arith.subf %53, %43 : vector<128x256xf32>
    %55 = tpu.reciprocal %52 : vector<128x256xf32> -> vector<128x256xf32>
    %56 = arith.mulf %54, %55 : vector<128x256xf32>
    %cst_16 = arith.constant 1.000000e+00 : f32
    %57 = vector.broadcast %cst_16 : f32 to vector<128x256xf32>
    %58 = arith.subf %57, %56 : vector<128x256xf32>
    %59 = arith.subf %42, %58 : vector<128x256xf32>
    %60 = arith.mulf %12, %59 : vector<128x256xf32>
    %cst_17 = arith.constant dense<0.000000e+00> : vector<128xf32>
    %61 = vector.multi_reduction <add>, %60, %cst_17 [1] : vector<128x256xf32> to vector<128xf32>
    %62 = vector.shape_cast %61 : vector<128xf32> to vector<128x1xf32>
    %cst_18 = arith.constant 0.000000e+00 : f32
    %63 = vector.broadcast %cst_18 : f32 to vector<128x1xf32>
    %64 = arith.subf %63, %62 : vector<128x1xf32>
    %c0_19 = arith.constant 0 : index
    %c0_20 = arith.constant 0 : index
    %c0_21 = arith.constant 0 : index
    %65 = vector.load %arg5[%c0_19, %c0_20, %c0_21] : memref<1x128x1xf32, #tpu.memory_space<vmem>>, vector<1x128x1xf32>
    %66 = vector.shape_cast %65 : vector<1x128x1xf32> to vector<128x1xf32>
    %67 = vector.shape_cast %64 : vector<128x1xf32> to vector<1x128x1xf32>
    tpu.vector_store %arg5[%c0_19, %c0_20, %c0_21], %67 {strides = array<i32>} : memref<1x128x1xf32, #tpu.memory_space<vmem>>, vector<1x128x1xf32>,
    return
  }
  func.func @transform_0(%arg0: i32) -> (i32, i32, i32) {
    %c0_i32 = arith.constant 0 : i32
    %c0_i32_0 = arith.constant 0 : i32
    %c0_i32_1 = arith.constant 0 : i32
    return %arg0, %c0_i32, %c0_i32_0 : i32, i32, i32
  }
  func.func @transform_1(%arg0: i32) -> (i32, i32) {
    %c0_i32 = arith.constant 0 : i32
    %c0_i32_0 = arith.constant 0 : i32
    %c0_i32_1 = arith.constant 0 : i32
    return %c0_i32, %c0_i32_0 : i32, i32
  }
  func.func @transform_2(%arg0: i32) -> (i32, i32) {
    %c0_i32 = arith.constant 0 : i32
    %c0_i32_0 = arith.constant 0 : i32
    %c0_i32_1 = arith.constant 0 : i32
    return %c0_i32, %c0_i32_0 : i32, i32
  }
  func.func @transform_3(%arg0: i32) -> (i32, i32, i32) {
    %c0_i32 = arith.constant 0 : i32
    %c0_i32_0 = arith.constant 0 : i32
    %c0_i32_1 = arith.constant 0 : i32
    return %c0_i32, %arg0, %c0_i32_0 : i32, i32, i32
  }
  func.func @transform_4(%arg0: i32) -> (i32, i32, i32) {
    %c0_i32 = arith.constant 0 : i32
    %c0_i32_0 = arith.constant 0 : i32
    %c0_i32_1 = arith.constant 0 : i32
    return %arg0, %c0_i32, %c0_i32_0 : i32, i32, i32
  }
}

</mosaic_0001>

<llo_original>
// kernel: sub.8
$region0: #{sub.8}
  #allocation0 [shape = 's32[1]{0}', space=sflag, size = 0x4, scoped, tag = 'scoped memory for sub.8']
  %s0 = inlined_call_operand.vmem [shape: f32[4,32], index: 0, kind: input, shape index: {}]
  %s1 = inlined_call_operand.vmem [shape: f32[4,32], index: 1, kind: input, shape index: {}]
  %s2 = inlined_call_operand.vmem [shape: f32[4,32], index: 2, kind: output, shape index: {}]
  %v3 = vld [vmem:[%s0] sm:$0xf]
  %v4 = vld [vmem:[%s1] sm:$0xf]
  %5 = xla_tuple %v3, %v4
  %6 = xla_tuple %5
  %v7 = vsub.f32 %v3, %v4
  %8 = xla_tuple %v7
  %9 = vst [vmem:[%s2] sm:$0xf] %v7

// kernel: lovasz_softmax_loss.2
$region0: #{lovasz_softmax_loss.2}
  #allocation0 [shape = 'u32[]', space=smem, size = 0x4, offset = 0x4, fixed_abs, tag = 'smem constant byte address 0x4 - core index']
  #allocation1 [shape = 'u32[144,128]{1,0:T(1,128)}', space=vmem, size = 0x12000, scoped, tag = 'internal scratch']
  %s0 = inlined_call_operand.vmem [shape: f32[2,4,4096], index: 0, kind: input, shape index: {}]
  %s1 = inlined_call_operand.vmem [shape: s32[2,1,4096], index: 1, kind: input, shape index: {}]
  %s2 = inlined_call_operand.vmem [shape: f32[4,8192], index: 2, kind: output, shape index: {0}]
  %s3 = inlined_call_operand.vmem [shape: f32[2,4,1], index: 3, kind: output, shape index: {1}]
  %4 = xla_tuple %s2, %s3
  %s5 = sld [smem:[#allocation0]]
  $region49: #{lovasz_softmax_loss.2} parent=0
    _
  %s7 = ssub.s32 1, %s5
  %s8 = scalar_select 0, %s7, %s5
  loop: start=0, step=1, limit=4
  $region2: #{lovasz_softmax_loss.2} parent=0 // loop_pre_header
    _
  $region3: #{lovasz_softmax_loss.2} parent=0 // loop_header
    %s10 = sphi 0, %s14
    %p11 = scmp.ge.s32.totalorder %s10, 4
    %s17 = sphi 0, %s29
    %s18 = sphi 0, %s25
    %s19 = sphi 0, %s17
    %s20 = sphi 0, %s18
    %s21 = sphi 0, %s19
    %s22 = sphi 0, %s20
    %s34 = sphi 0, %s36
    %s37 = sphi 0, %s34
    %s38 = sphi 0, %s37
    %s54 = sphi 0, %s38
    %s62 = sphi 0, %s64
    %s65 = sphi 0, %s62
    %s66 = sphi 0, %s65
    %s82 = sphi 0, %s66
    %s90 = sphi 0, %s92
    %s93 = sphi 0, %s90
    %s94 = sphi 0, %s93
    %s110 = sphi 0, %s94
    %s118 = sphi 0, %s120
    %s121 = sphi 0, %s118
    %s122 = sphi 0, %s121
    %s138 = sphi 0, %s122
  $region4: #{lovasz_softmax_loss.2} parent=0 // loop_header_branch
    %13 = sbr.rel (%p11) target = $region8
  $region5: #{lovasz_softmax_loss.2} parent=0 // loop_body
    %s15 = ssub.s32 %s10, 1
    %s16 = ssub.s32 %s10, 2
    %s23 = sadd.s32 1, %s18
    %p24 = scmp.ge.s32.totalorder %s23, 1
    %s25 = scalar_select %p24, 0, %s23
    %s26 = sadd.s32 1, %s17
    %s27 = scalar_select %p24, %s26, %s17
    %p28 = scmp.ge.s32.totalorder %s27, 2
    %s29 = scalar_select %p28, 0, %s27
    %s30 = ssub.s32 %s17, %s29
    %s31 = ssub.s32 %s18, %s25
    %s32 = sor.u32 %s30, %s31
    %p33 = scmp.eq.s32.totalorder %s32, 0
    %s35 = sadd.s32 %s34, 1
    %s36 = scalar_select %p33, %s34, %s35
    %p39 = pneg %p33
    %p40 = scmp.eq.s32.totalorder %s10, 1
    %p41 = por %p39, %p40
    %p42 = scmp.ne.s32.totalorder %s34, %s37
    %p43 = scmp.eq.s32.totalorder %s10, 0
    %p44 = por %p42, %p43
    %p45 = scmp.ne.s32.totalorder %s34, %s37
    %p46 = scmp.eq.s32.totalorder %s15, 1
    %p47 = por %p45, %p46
    %p48 = scmp.ne.s32.totalorder %s37, %s38
    %p49 = scmp.eq.s32.totalorder %s15, 0
    %p50 = por %p48, %p49
    %p51 = scmp.ne.s32.totalorder %s37, %s38
    %p52 = scmp.eq.s32.totalorder %s16, 1
    %p53 = por %p51, %p52
    %p55 = scmp.ne.s32.totalorder %s38, %s54
    %p56 = scmp.eq.s32.totalorder %s16, 0
    %p57 = por %p55, %p56
    %s58 = ssub.s32 %s17, %s29
    %s59 = ssub.s32 %s18, %s25
    %s60 = sor.u32 %s58, %s59
    %p61 = scmp.eq.s32.totalorder %s60, 0
    %s63 = sadd.s32 %s62, 1
    %s64 = scalar_select %p61, %s62, %s63
    %p67 = pneg %p61
    %p68 = scmp.eq.s32.totalorder %s10, 1
    %p69 = por %p67, %p68
    %p70 = scmp.ne.s32.totalorder %s62, %s65
    %p71 = scmp.eq.s32.totalorder %s10, 0
    %p72 = por %p70, %p71
    %p73 = scmp.ne.s32.totalorder %s62, %s65
    %p74 = scmp.eq.s32.totalorder %s15, 1
    %p75 = por %p73, %p74
    %p76 = scmp.ne.s32.totalorder %s65, %s66
    %p77 = scmp.eq.s32.totalorder %s15, 0
    %p78 = por %p76, %p77
    %p79 = scmp.ne.s32.totalorder %s65, %s66
    %p80 = scmp.eq.s32.totalorder %s16, 1
    %p81 = por %p79, %p80
    %p83 = scmp.ne.s32.totalorder %s66, %s82
    %p84 = scmp.eq.s32.totalorder %s16, 0
    %p85 = por %p83, %p84
    %s86 = sadd.s32 %s17, %s18
    %s87 = sadd.s32 %s29, %s25
    %s88 = ssub.s32 %s86, %s87
    %p89 = scmp.eq.s32.totalorder %s88, 0
    %s91 = sadd.s32 %s90, 1
    %s92 = scalar_select %p89, %s90, %s91
    %p95 = pneg %p89
    %p96 = scmp.eq.s32.totalorder %s10, 1
    %p97 = por %p95, %p96
    %p98 = scmp.ne.s32.totalorder %s90, %s93
    %p99 = scmp.eq.s32.totalorder %s10, 0
    %p100 = por %p98, %p99
    %p101 = scmp.ne.s32.totalorder %s90, %s93
    %p102 = scmp.eq.s32.totalorder %s15, 1
    %p103 = por %p101, %p102
    %p104 = scmp.ne.s32.totalorder %s93, %s94
    %p105 = scmp.eq.s32.totalorder %s15, 0
    %p106 = por %p104, %p105
    %p107 = scmp.ne.s32.totalorder %s93, %s94
    %p108 = scmp.eq.s32.totalorder %s16, 1
    %p109 = por %p107, %p108
    %p111 = scmp.ne.s32.totalorder %s94, %s110
    %p112 = scmp.eq.s32.totalorder %s16, 0
    %p113 = por %p111, %p112
    %s114 = sadd.s32 %s17, %s18
    %s115 = sadd.s32 %s29, %s25
    %s116 = ssub.s32 %s114, %s115
    %p117 = scmp.eq.s32.totalorder %s116, 0
    %s119 = sadd.s32 %s118, 1
    %s120 = scalar_select %p117, %s118, %s119
    %p123 = pneg %p117
    %p124 = scmp.eq.s32.totalorder %s10, 1
    %p125 = por %p123, %p124
    %p126 = scmp.ne.s32.totalorder %s118, %s121
    %p127 = scmp.eq.s32.totalorder %s10, 0
    %p128 = por %p126, %p127
    %p129 = scmp.ne.s32.totalorder %s118, %s121
    %p130 = scmp.eq.s32.totalorder %s15, 1
    %p131 = por %p129, %p130
    %p132 = scmp.ne.s32.totalorder %s121, %s122
    %p133 = scmp.eq.s32.totalorder %s15, 0
    %p134 = por %p132, %p133
    %p135 = scmp.ne.s32.totalorder %s121, %s122
    %p136 = scmp.eq.s32.totalorder %s16, 1
    %p137 = por %p135, %p136
    %p139 = scmp.ne.s32.totalorder %s122, %s138
    %p140 = scmp.eq.s32.totalorder %s16, 0
    %p141 = por %p139, %p140
    %p142 = scmp.le.s32.totalorder 1, %s10
    %p143 = scmp.lt.s32.totalorder %s10, 3
    %p144 = pnand %p142, %p143
    %p145 = pneg %p144
    // Predicated region
    $region9: #{lovasz_softmax_loss.2} parent=5 // pred_check
      _
    $region10: #{lovasz_softmax_loss.2} parent=5 // pred_check_branch
      %147 = sbr.rel (%p144) target = $region12
    $region11: #{lovasz_softmax_loss.2} parent=5 // pred_region
      %s148 = ssub.s32 %s10, 1
    $region12: #{lovasz_softmax_loss.2} parent=5 // pred_fallthru
      _
    %p149 = scmp.lt.s32.totalorder %s10, 2
    // Predicated region
    $region13: #{lovasz_softmax_loss.2} parent=5 // pred_check
      %p150 = pneg %p149
    $region14: #{lovasz_softmax_loss.2} parent=5 // pred_check_branch
      %152 = sbr.rel (%p150) target = $region16
    $region15: #{lovasz_softmax_loss.2} parent=5 // pred_region
      // Predicated region
      $region17: #{lovasz_softmax_loss.2} parent=15 // pred_check
        %p153 = pneg %p44
      $region18: #{lovasz_softmax_loss.2} parent=15 // pred_check_branch
        %155 = sbr.rel (%p153) target = $region20
      $region19: #{lovasz_softmax_loss.2} parent=15 // pred_region
        %s156 = smul.u32 32, %s18
        %p157 = scmp.lt.s32.totalorder %s17, 1
        %s158 = scalar_select %p157, %s17, 1
        %p159 = scmp.lt.s32.totalorder %s156, 31
        %s160 = scalar_select %p159, %s156, 31
        %s161 = smul.addr %s158, 32
        %s162 = sadd.s32 %s160, %s161
        %s163 = smul.addr %s162, 4
        %s164 = scalar_lea.vmem %s0, %s163
        %s165 = smul.u32 32, %s18
      $region20: #{lovasz_softmax_loss.2} parent=15 // pred_fallthru
        _
      // Predicated region
      $region21: #{lovasz_softmax_loss.2} parent=15 // pred_check
        %p166 = pneg %p72
      $region22: #{lovasz_softmax_loss.2} parent=15 // pred_check_branch
        %168 = sbr.rel (%p166) target = $region24
      $region23: #{lovasz_softmax_loss.2} parent=15 // pred_region
        %s169 = smul.u32 32, %s18
        %p170 = scmp.lt.s32.totalorder %s17, 1
        %s171 = scalar_select %p170, %s17, 1
        %p172 = scmp.lt.s32.totalorder %s169, 31
        %s173 = scalar_select %p172, %s169, 31
        %s174 = smul.addr %s171, 32
        %s175 = sadd.s32 %s173, %s174
        %s176 = scalar_lea.vmem %s1, %s175
        %s177 = smul.u32 32, %s18
      $region24: #{lovasz_softmax_loss.2} parent=15 // pred_fallthru
        _
    $region16: #{lovasz_softmax_loss.2} parent=5 // pred_fallthru
      _
    %p178 = scmp.le.s32.totalorder 1, %s10
    %p179 = scmp.lt.s32.totalorder %s10, 3
    %p180 = pnand %p178, %p179
    %p181 = pneg %p180
    // Predicated region
    $region25: #{lovasz_softmax_loss.2} parent=5 // pred_check
      _
    $region26: #{lovasz_softmax_loss.2} parent=5 // pred_check_branch
      %183 = sbr.rel (%p180) target = $region28
    $region27: #{lovasz_softmax_loss.2} parent=5 // pred_region
      %s184 = ssub.s32 %s10, 1
      %s185 = smul.u32 32, %s20
      %p186 = scmp.lt.s32.totalorder %s19, 1
      %s187 = scalar_select %p186, %s19, 1
      %p188 = scmp.lt.s32.totalorder %s185, 31
      %s189 = scalar_select %p188, %s185, 31
      %s190 = smul.addr %s187, 32
      %s191 = sadd.s32 %s189, %s190
      %s192 = smul.addr %s191, 4
      %s193 = scalar_lea.vmem %s0, %s192
      %p194 = pneg %p50
      %p195 = pneg %p47
      %s196 = smul.u32 32, %s20
      %p197 = scmp.lt.s32.totalorder %s19, 1
      %s198 = scalar_select %p197, %s19, 1
      %p199 = scmp.lt.s32.totalorder %s196, 31
      %s200 = scalar_select %p199, %s196, 31
      %s201 = smul.addr %s198, 32
      %s202 = sadd.s32 %s200, %s201
      %s203 = scalar_lea.vmem %s1, %s202
      %p204 = pneg %p78
      %p205 = pneg %p75
      %p206 = pneg %p106
      %p207 = pneg %p103
      %s208 = sadd.s32 %s19, %s20
      %s209 = smul.u32 32, %s208
      %p210 = scmp.lt.s32.totalorder %s209, 63
      %s211 = scalar_select %p210, %s209, 63
      %s212 = smul.addr %s211, 4
      %s213 = scalar_lea.vmem %s2, %s212
      %p214 = pneg %p134
      %p215 = pneg %p131
      %s216 = sadd.s32 %s19, %s20
      %p217 = scmp.lt.s32.totalorder %s216, 1
      %s218 = scalar_select %p217, %s216, 1
      %s219 = smul.addr %s218, 4
      %s220 = scalar_lea.vmem %s3, %s219
      %s221 = smul.u32 32, %s20
      %p222 = scmp.lt.s32.totalorder %s19, 1
      %s223 = scalar_select %p222, %s19, 1
      %p224 = scmp.lt.s32.totalorder %s221, 31
      %s225 = scalar_select %p224, %s221, 31
      %s226 = smul.addr %s223, 32
      %s227 = sadd.s32 %s225, %s226
      %s228 = smul.addr %s227, 4
      %s229 = scalar_lea.vmem %s0, %s228
      %s230 = smul.u32 32, %s20
      %s231 = smul.u32 32, %s20
      %p232 = scmp.lt.s32.totalorder %s19, 1
      %s233 = scalar_select %p232, %s19, 1
      %p234 = scmp.lt.s32.totalorder %s231, 31
      %s235 = scalar_select %p234, %s231, 31
      %s236 = smul.addr %s233, 32
      %s237 = sadd.s32 %s235, %s236
      %s238 = scalar_lea.vmem %s1, %s237
      %s239 = smul.u32 32, %s20
      %s240 = sadd.s32 %s19, %s20
      %s241 = smul.u32 32, %s240
      %p242 = scmp.lt.s32.totalorder %s241, 63
      %s243 = scalar_select %p242, %s241, 63
      %s244 = smul.addr %s243, 4
      %s245 = scalar_lea.vmem %s2, %s244
      %s246 = sadd.s32 %s19, %s20
      %s247 = smul.u32 32, %s246
      %s248 = sadd.s32 %s19, %s20
      %p249 = scmp.lt.s32.totalorder %s248, 1
      %s250 = scalar_select %p249, %s248, 1
      %s251 = smul.addr %s250, 4
      %s252 = scalar_lea.vmem %s3, %s251
      %s253 = sadd.s32 %s19, %s20
      %v254 = vld [vmem:[%s229] sm:$0xff]
      %v255 = vld [vmem:[%s229 + $0x8] sm:$0xff]
      %v256 = vld [vmem:[%s229 + $0x10] sm:$0xff]
      %v257 = vld [vmem:[%s229 + $0x18] sm:$0xff]
      %v258 = vld [vmem:[%s229 + $0x20] sm:$0xff]
      %v259 = vld [vmem:[%s229 + $0x28] sm:$0xff]
      %v260 = vld [vmem:[%s229 + $0x30] sm:$0xff]
      %v261 = vld [vmem:[%s229 + $0x38] sm:$0xff]
      %v262 = vld [vmem:[%s229 + $0x40] sm:$0xff]
      %v263 = vld [vmem:[%s229 + $0x48] sm:$0xff]
      %v264 = vld [vmem:[%s229 + $0x50] sm:$0xff]
      %v265 = vld [vmem:[%s229 + $0x58] sm:$0xff]
      %v266 = vld [vmem:[%s229 + $0x60] sm:$0xff]
      %v267 = vld [vmem:[%s229 + $0x68] sm:$0xff]
      %v268 = vld [vmem:[%s229 + $0x70] sm:$0xff]
      %v269 = vld [vmem:[%s229 + $0x78] sm:$0xff]
      %v286 = vcombine.high %v254, %v254
      %v287 = vcombine.high %v255, %v255
      %v288 = vcombine.high %v256, %v256
      %v289 = vcombine.high %v257, %v257
      %v290 = vcombine.high %v258, %v258
      %v291 = vcombine.high %v259, %v259
      %v292 = vcombine.high %v260, %v260
      %v293 = vcombine.high %v261, %v261
      %v294 = vcombine.high %v262, %v262
      %v295 = vcombine.high %v263, %v263
      %v296 = vcombine.high %v264, %v264
      %v297 = vcombine.high %v265, %v265
      %v298 = vcombine.high %v266, %v266
      %v299 = vcombine.high %v267, %v267
      %v300 = vcombine.high %v268, %v268
      %v301 = vcombine.high %v269, %v269
      %vm318 = vcmask 1043456
      %v319 = vsel %vm318, %v254, -inf
      %v320 = vrot.slane %v319, 4
      %v321 = vmax.f32 %v319, %v320
      %v322 = vrot.slane %v321, 2
      %v323 = vmax.f32 %v321, %v322
      %v324 = vrot.slane %v323, 1
      %v325 = vmax.f32 %v323, %v324
      %v326 = vsel %vm318, %v286, -inf
      %v327 = vrot.slane %v326, 4
      %v328 = vmax.f32 %v326, %v327
      %v329 = vrot.slane %v328, 2
      %v330 = vmax.f32 %v328, %v329
      %v331 = vrot.slane %v330, 1
      %v332 = vmax.f32 %v330, %v331
      %v333 = vsel %vm318, %v255, -inf
      %v334 = vrot.slane %v333, 4
      %v335 = vmax.f32 %v333, %v334
      %v336 = vrot.slane %v335, 2
      %v337 = vmax.f32 %v335, %v336
      %v338 = vrot.slane %v337, 1
      %v339 = vmax.f32 %v337, %v338
      %v340 = vsel %vm318, %v287, -inf
      %v341 = vrot.slane %v340, 4
      %v342 = vmax.f32 %v340, %v341
      %v343 = vrot.slane %v342, 2
      %v344 = vmax.f32 %v342, %v343
      %v345 = vrot.slane %v344, 1
      %v346 = vmax.f32 %v344, %v345
      %v347 = vsel %vm318, %v256, -inf
      %v348 = vrot.slane %v347, 4
      %v349 = vmax.f32 %v347, %v348
      %v350 = vrot.slane %v349, 2
      %v351 = vmax.f32 %v349, %v350
      %v352 = vrot.slane %v351, 1
      %v353 = vmax.f32 %v351, %v352
      %v354 = vsel %vm318, %v288, -inf
      %v355 = vrot.slane %v354, 4
      %v356 = vmax.f32 %v354, %v355
      %v357 = vrot.slane %v356, 2
      %v358 = vmax.f32 %v356, %v357
      %v359 = vrot.slane %v358, 1
      %v360 = vmax.f32 %v358, %v359
      %v361 = vsel %vm318, %v257, -inf
      %v362 = vrot.slane %v361, 4
      %v363 = vmax.f32 %v361, %v362
      %v364 = vrot.slane %v363, 2
      %v365 = vmax.f32 %v363, %v364
      %v366 = vrot.slane %v365, 1
      %v367 = vmax.f32 %v365, %v366
      %v368 = vsel %vm318, %v289, -inf
      %v369 = vrot.slane %v368, 4
      %v370 = vmax.f32 %v368, %v369
      %v371 = vrot.slane %v370, 2
      %v372 = vmax.f32 %v370, %v371
      %v373 = vrot.slane %v372, 1
      %v374 = vmax.f32 %v372, %v373
      %v375 = vsel %vm318, %v258, -inf
      %v376 = vrot.slane %v375, 4
      %v377 = vmax.f32 %v375, %v376
      %v378 = vrot.slane %v377, 2
      %v379 = vmax.f32 %v377, %v378
      %v380 = vrot.slane %v379, 1
      %v381 = vmax.f32 %v379, %v380
      %v382 = vsel %vm318, %v290, -inf
      %v383 = vrot.slane %v382, 4
      %v384 = vmax.f32 %v382, %v383
      %v385 = vrot.slane %v384, 2
      %v386 = vmax.f32 %v384, %v385
      %v387 = vrot.slane %v386, 1
      %v388 = vmax.f32 %v386, %v387
      %v389 = vsel %vm318, %v259, -inf
      %v390 = vrot.slane %v389, 4
      %v391 = vmax.f32 %v389, %v390
      %v392 = vrot.slane %v391, 2
      %v393 = vmax.f32 %v391, %v392
      %v394 = vrot.slane %v393, 1
      %v395 = vmax.f32 %v393, %v394
      %v396 = vsel %vm318, %v291, -inf
      %v397 = vrot.slane %v396, 4
      %v398 = vmax.f32 %v396, %v397
      %v399 = vrot.slane %v398, 2
      %v400 = vmax.f32 %v398, %v399
      %v401 = vrot.slane %v400, 1
      %v402 = vmax.f32 %v400, %v401
      %v403 = vsel %vm318, %v260, -inf
      %v404 = vrot.slane %v403, 4
      %v405 = vmax.f32 %v403, %v404
      %v406 = vrot.slane %v405, 2
      %v407 = vmax.f32 %v405, %v406
      %v408 = vrot.slane %v407, 1
      %v409 = vmax.f32 %v407, %v408
      %v410 = vsel %vm318, %v292, -inf
      %v411 = vrot.slane %v410, 4
      %v412 = vmax.f32 %v410, %v411
      %v413 = vrot.slane %v412, 2
      %v414 = vmax.f32 %v412, %v413
      %v415 = vrot.slane %v414, 1
      %v416 = vmax.f32 %v414, %v415
      %v417 = vsel %vm318, %v261, -inf
      %v418 = vrot.slane %v417, 4
      %v419 = vmax.f32 %v417, %v418
      %v420 = vrot.slane %v419, 2
      %v421 = vmax.f32 %v419, %v420
      %v422 = vrot.slane %v421, 1
      %v423 = vmax.f32 %v421, %v422
      %v424 = vsel %vm318, %v293, -inf
      %v425 = vrot.slane %v424, 4
      %v426 = vmax.f32 %v424, %v425
      %v427 = vrot.slane %v426, 2
      %v428 = vmax.f32 %v426, %v427
      %v429 = vrot.slane %v428, 1
      %v430 = vmax.f32 %v428, %v429
      %v431 = vsel %vm318, %v262, -inf
      %v432 = vrot.slane %v431, 4
      %v433 = vmax.f32 %v431, %v432
      %v434 = vrot.slane %v433, 2
      %v435 = vmax.f32 %v433, %v434
      %v436 = vrot.slane %v435, 1
      %v437 = vmax.f32 %v435, %v436
      %v438 = vsel %vm318, %v294, -inf
      %v439 = vrot.slane %v438, 4
      %v440 = vmax.f32 %v438, %v439
      %v441 = vrot.slane %v440, 2
      %v442 = vmax.f32 %v440, %v441
      %v443 = vrot.slane %v442, 1
      %v444 = vmax.f32 %v442, %v443
      %v445 = vsel %vm318, %v263, -inf
      %v446 = vrot.slane %v445, 4
      %v447 = vmax.f32 %v445, %v446
      %v448 = vrot.slane %v447, 2
      %v449 = vmax.f32 %v447, %v448
      %v450 = vrot.slane %v449, 1
      %v451 = vmax.f32 %v449, %v450
      %v452 = vsel %vm318, %v295, -inf
      %v453 = vrot.slane %v452, 4
      %v454 = vmax.f32 %v452, %v453
      %v455 = vrot.slane %v454, 2
      %v456 = vmax.f32 %v454, %v455
      %v457 = vrot.slane %v456, 1
      %v458 = vmax.f32 %v456, %v457
      %v459 = vsel %vm318, %v264, -inf
      %v460 = vrot.slane %v459, 4
      %v461 = vmax.f32 %v459, %v460
      %v462 = vrot.slane %v461, 2
      %v463 = vmax.f32 %v461, %v462
      %v464 = vrot.slane %v463, 1
      %v465 = vmax.f32 %v463, %v464
      %v466 = vsel %vm318, %v296, -inf
      %v467 = vrot.slane %v466, 4
      %v468 = vmax.f32 %v466, %v467
      %v469 = vrot.slane %v468, 2
      %v470 = vmax.f32 %v468, %v469
      %v471 = vrot.slane %v470, 1
      %v472 = vmax.f32 %v470, %v471
      %v473 = vsel %vm318, %v265, -inf
      %v474 = vrot.slane %v473, 4
      %v475 = vmax.f32 %v473, %v474
      %v476 = vrot.slane %v475, 2
      %v477 = vmax.f32 %v475, %v476
      %v478 = vrot.slane %v477, 1
      %v479 = vmax.f32 %v477, %v478
      %v480 = vsel %vm318, %v297, -inf
      %v481 = vrot.slane %v480, 4
      %v482 = vmax.f32 %v480, %v481
      %v483 = vrot.slane %v482, 2
      %v484 = vmax.f32 %v482, %v483
      %v485 = vrot.slane %v484, 1
      %v486 = vmax.f32 %v484, %v485
      %v487 = vsel %vm318, %v266, -inf
      %v488 = vrot.slane %v487, 4
      %v489 = vmax.f32 %v487, %v488
      %v490 = vrot.slane %v489, 2
      %v491 = vmax.f32 %v489, %v490
      %v492 = vrot.slane %v491, 1
      %v493 = vmax.f32 %v491, %v492
      %v494 = vsel %vm318, %v298, -inf
      %v495 = vrot.slane %v494, 4
      %v496 = vmax.f32 %v494, %v495
      %v497 = vrot.slane %v496, 2
      %v498 = vmax.f32 %v496, %v497
      %v499 = vrot.slane %v498, 1
      %v500 = vmax.f32 %v498, %v499
      %v501 = vsel %vm318, %v267, -inf
      %v502 = vrot.slane %v501, 4
      %v503 = vmax.f32 %v501, %v502
      %v504 = vrot.slane %v503, 2
      %v505 = vmax.f32 %v503, %v504
      %v506 = vrot.slane %v505, 1
      %v507 = vmax.f32 %v505, %v506
      %v508 = vsel %vm318, %v299, -inf
      %v509 = vrot.slane %v508, 4
      %v510 = vmax.f32 %v508, %v509
      %v511 = vrot.slane %v510, 2
      %v512 = vmax.f32 %v510, %v511
      %v513 = vrot.slane %v512, 1
      %v514 = vmax.f32 %v512, %v513
      %v515 = vsel %vm318, %v268, -inf
      %v516 = vrot.slane %v515, 4
      %v517 = vmax.f32 %v515, %v516
      %v518 = vrot.slane %v517, 2
      %v519 = vmax.f32 %v517, %v518
      %v520 = vrot.slane %v519, 1
      %v521 = vmax.f32 %v519, %v520
      %v522 = vsel %vm318, %v300, -inf
      %v523 = vrot.slane %v522, 4
      %v524 = vmax.f32 %v522, %v523
      %v525 = vrot.slane %v524, 2
      %v526 = vmax.f32 %v524, %v525
      %v527 = vrot.slane %v526, 1
      %v528 = vmax.f32 %v526, %v527
      %v529 = vsel %vm318, %v269, -inf
      %v530 = vrot.slane %v529, 4
      %v531 = vmax.f32 %v529, %v530
      %v532 = vrot.slane %v531, 2
      %v533 = vmax.f32 %v531, %v532
      %v534 = vrot.slane %v533, 1
      %v535 = vmax.f32 %v533, %v534
      %v536 = vsel %vm318, %v301, -inf
      %v537 = vrot.slane %v536, 4
      %v538 = vmax.f32 %v536, %v537
      %v539 = vrot.slane %v538, 2
      %v540 = vmax.f32 %v538, %v539
      %v541 = vrot.slane %v540, 1
      %v542 = vmax.f32 %v540, %v541
      %v575 = vcombine.low %v325, %v332
      %v576 = vcombine.low %v339, %v346
      %v577 = vcombine.low %v353, %v360
      %v578 = vcombine.low %v367, %v374
      %v579 = vcombine.low %v381, %v388
      %v580 = vcombine.low %v395, %v402
      %v581 = vcombine.low %v409, %v416
      %v582 = vcombine.low %v423, %v430
      %v583 = vcombine.low %v437, %v444
      %v584 = vcombine.low %v451, %v458
      %v585 = vcombine.low %v465, %v472
      %v586 = vcombine.low %v479, %v486
      %v587 = vcombine.low %v493, %v500
      %v588 = vcombine.low %v507, %v514
      %v589 = vcombine.low %v521, %v528
      %v590 = vcombine.low %v535, %v542
      %v607 = vsub.f32 %v254, %v575
      %v608 = vsub.f32 %v255, %v576
      %v609 = vsub.f32 %v256, %v577
      %v610 = vsub.f32 %v257, %v578
      %v611 = vsub.f32 %v258, %v579
      %v612 = vsub.f32 %v259, %v580
      %v613 = vsub.f32 %v260, %v581
      %v614 = vsub.f32 %v261, %v582
      %v615 = vsub.f32 %v262, %v583
      %v616 = vsub.f32 %v263, %v584
      %v617 = vsub.f32 %v264, %v585
      %v618 = vsub.f32 %v265, %v586
      %v619 = vsub.f32 %v266, %v587
      %v620 = vsub.f32 %v267, %v588
      %v621 = vsub.f32 %v268, %v589
      %v622 = vsub.f32 %v269, %v590
      %v623 = vmul.f32 %v607, 1.442695
      %v624 = vpow.pop %v623
      %v625 = vmul.f32 %v608, 1.442695
      %v626 = vpow.pop %v625
      %v627 = vmul.f32 %v609, 1.442695
      %v628 = vpow.pop %v627
      %v629 = vmul.f32 %v610, 1.442695
      %v630 = vpow.pop %v629
      %v631 = vmul.f32 %v611, 1.442695
      %v632 = vpow.pop %v631
      %v633 = vmul.f32 %v612, 1.442695
      %v634 = vpow.pop %v633
      %v635 = vmul.f32 %v613, 1.442695
      %v636 = vpow.pop %v635
      %v637 = vmul.f32 %v614, 1.442695
      %v638 = vpow.pop %v637
      %v639 = vmul.f32 %v615, 1.442695
      %v640 = vpow.pop %v639
      %v641 = vmul.f32 %v616, 1.442695
      %v642 = vpow.pop %v641
      %v643 = vmul.f32 %v617, 1.442695
      %v644 = vpow.pop %v643
      %v645 = vmul.f32 %v618, 1.442695
      %v646 = vpow.pop %v645
      %v647 = vmul.f32 %v619, 1.442695
      %v648 = vpow.pop %v647
      %v649 = vmul.f32 %v620, 1.442695
      %v650 = vpow.pop %v649
      %v651 = vmul.f32 %v621, 1.442695
      %v652 = vpow.pop %v651
      %v653 = vmul.f32 %v622, 1.442695
      %v654 = vpow.pop %v653
      %v671 = vcombine.high %v624, %v624
      %v672 = vcombine.high %v626, %v626
      %v673 = vcombine.high %v628, %v628
      %v674 = vcombine.high %v630, %v630
      %v675 = vcombine.high %v632, %v632
      %v676 = vcombine.high %v634, %v634
      %v677 = vcombine.high %v636, %v636
      %v678 = vcombine.high %v638, %v638
      %v679 = vcombine.high %v640, %v640
      %v680 = vcombine.high %v642, %v642
      %v681 = vcombine.high %v644, %v644
      %v682 = vcombine.high %v646, %v646
      %v683 = vcombine.high %v648, %v648
      %v684 = vcombine.high %v650, %v650
      %v685 = vcombine.high %v652, %v652
      %v686 = vcombine.high %v654, %v654
      %v703 = vsel %vm318, %v624, 0.0
      %v704 = vrot.slane %v703, 4
      %v705 = vadd.f32 %v703, %v704
      %v706 = vrot.slane %v705, 2
      %v707 = vadd.f32 %v705, %v706
      %v708 = vrot.slane %v707, 1
      %v709 = vadd.f32 %v707, %v708
      %v710 = vsel %vm318, %v671, 0.0
      %v711 = vrot.slane %v710, 4
      %v712 = vadd.f32 %v710, %v711
      %v713 = vrot.slane %v712, 2
      %v714 = vadd.f32 %v712, %v713
      %v715 = vrot.slane %v714, 1
      %v716 = vadd.f32 %v714, %v715
      %v717 = vsel %vm318, %v626, 0.0
      %v718 = vrot.slane %v717, 4
      %v719 = vadd.f32 %v717, %v718
      %v720 = vrot.slane %v719, 2
      %v721 = vadd.f32 %v719, %v720
      %v722 = vrot.slane %v721, 1
      %v723 = vadd.f32 %v721, %v722
      %v724 = vsel %vm318, %v672, 0.0
      %v725 = vrot.slane %v724, 4
      %v726 = vadd.f32 %v724, %v725
      %v727 = vrot.slane %v726, 2
      %v728 = vadd.f32 %v726, %v727
      %v729 = vrot.slane %v728, 1
      %v730 = vadd.f32 %v728, %v729
      %v731 = vsel %vm318, %v628, 0.0
      %v732 = vrot.slane %v731, 4
      %v733 = vadd.f32 %v731, %v732
      %v734 = vrot.slane %v733, 2
      %v735 = vadd.f32 %v733, %v734
      %v736 = vrot.slane %v735, 1
      %v737 = vadd.f32 %v735, %v736
      %v738 = vsel %vm318, %v673, 0.0
      %v739 = vrot.slane %v738, 4
      %v740 = vadd.f32 %v738, %v739
      %v741 = vrot.slane %v740, 2
      %v742 = vadd.f32 %v740, %v741
      %v743 = vrot.slane %v742, 1
      %v744 = vadd.f32 %v742, %v743
      %v745 = vsel %vm318, %v630, 0.0
      %v746 = vrot.slane %v745, 4
      %v747 = vadd.f32 %v745, %v746
      %v748 = vrot.slane %v747, 2
      %v749 = vadd.f32 %v747, %v748
      %v750 = vrot.slane %v749, 1
      %v751 = vadd.f32 %v749, %v750
      %v752 = vsel %vm318, %v674, 0.0
      %v753 = vrot.slane %v752, 4
      %v754 = vadd.f32 %v752, %v753
      %v755 = vrot.slane %v754, 2
      %v756 = vadd.f32 %v754, %v755
      %v757 = vrot.slane %v756, 1
      %v758 = vadd.f32 %v756, %v757
      %v759 = vsel %vm318, %v632, 0.0
      %v760 = vrot.slane %v759, 4
      %v761 = vadd.f32 %v759, %v760
      %v762 = vrot.slane %v761, 2
      %v763 = vadd.f32 %v761, %v762
      %v764 = vrot.slane %v763, 1
      %v765 = vadd.f32 %v763, %v764
      %v766 = vsel %vm318, %v675, 0.0
      %v767 = vrot.slane %v766, 4
      %v768 = vadd.f32 %v766, %v767
      %v769 = vrot.slane %v768, 2
      %v770 = vadd.f32 %v768, %v769
      %v771 = vrot.slane %v770, 1
      %v772 = vadd.f32 %v770, %v771
      %v773 = vsel %vm318, %v634, 0.0
      %v774 = vrot.slane %v773, 4
      %v775 = vadd.f32 %v773, %v774
      %v776 = vrot.slane %v775, 2
      %v777 = vadd.f32 %v775, %v776
      %v778 = vrot.slane %v777, 1
      %v779 = vadd.f32 %v777, %v778
      %v780 = vsel %vm318, %v676, 0.0
      %v781 = vrot.slane %v780, 4
      %v782 = vadd.f32 %v780, %v781
      %v783 = vrot.slane %v782, 2
      %v784 = vadd.f32 %v782, %v783
      %v785 = vrot.slane %v784, 1
      %v786 = vadd.f32 %v784, %v785
      %v787 = vsel %vm318, %v636, 0.0
      %v788 = vrot.slane %v787, 4
      %v789 = vadd.f32 %v787, %v788
      %v790 = vrot.slane %v789, 2
      %v791 = vadd.f32 %v789, %v790
      %v792 = vrot.slane %v791, 1
      %v793 = vadd.f32 %v791, %v792
      %v794 = vsel %vm318, %v677, 0.0
      %v795 = vrot.slane %v794, 4
      %v796 = vadd.f32 %v794, %v795
      %v797 = vrot.slane %v796, 2
      %v798 = vadd.f32 %v796, %v797
      %v799 = vrot.slane %v798, 1
      %v800 = vadd.f32 %v798, %v799
      %v801 = vsel %vm318, %v638, 0.0
      %v802 = vrot.slane %v801, 4
      %v803 = vadd.f32 %v801, %v802
      %v804 = vrot.slane %v803, 2
      %v805 = vadd.f32 %v803, %v804
      %v806 = vrot.slane %v805, 1
      %v807 = vadd.f32 %v805, %v806
      %v808 = vsel %vm318, %v678, 0.0
      %v809 = vrot.slane %v808, 4
      %v810 = vadd.f32 %v808, %v809
      %v811 = vrot.slane %v810, 2
      %v812 = vadd.f32 %v810, %v811
      %v813 = vrot.slane %v812, 1
      %v814 = vadd.f32 %v812, %v813
      %v815 = vsel %vm318, %v640, 0.0
      %v816 = vrot.slane %v815, 4
      %v817 = vadd.f32 %v815, %v816
      %v818 = vrot.slane %v817, 2
      %v819 = vadd.f32 %v817, %v818
      %v820 = vrot.slane %v819, 1
      %v821 = vadd.f32 %v819, %v820
      %v822 = vsel %vm318, %v679, 0.0
      %v823 = vrot.slane %v822, 4
      %v824 = vadd.f32 %v822, %v823
      %v825 = vrot.slane %v824, 2
      %v826 = vadd.f32 %v824, %v825
      %v827 = vrot.slane %v826, 1
      %v828 = vadd.f32 %v826, %v827
      %v829 = vsel %vm318, %v642, 0.0
      %v830 = vrot.slane %v829, 4
      %v831 = vadd.f32 %v829, %v830
      %v832 = vrot.slane %v831, 2
      %v833 = vadd.f32 %v831, %v832
      %v834 = vrot.slane %v833, 1
      %v835 = vadd.f32 %v833, %v834
      %v836 = vsel %vm318, %v680, 0.0
      %v837 = vrot.slane %v836, 4
      %v838 = vadd.f32 %v836, %v837
      %v839 = vrot.slane %v838, 2
      %v840 = vadd.f32 %v838, %v839
      %v841 = vrot.slane %v840, 1
      %v842 = vadd.f32 %v840, %v841
      %v843 = vsel %vm318, %v644, 0.0
      %v844 = vrot.slane %v843, 4
      %v845 = vadd.f32 %v843, %v844
      %v846 = vrot.slane %v845, 2
      %v847 = vadd.f32 %v845, %v846
      %v848 = vrot.slane %v847, 1
      %v849 = vadd.f32 %v847, %v848
      %v850 = vsel %vm318, %v681, 0.0
      %v851 = vrot.slane %v850, 4
      %v852 = vadd.f32 %v850, %v851
      %v853 = vrot.slane %v852, 2
      %v854 = vadd.f32 %v852, %v853
      %v855 = vrot.slane %v854, 1
      %v856 = vadd.f32 %v854, %v855
      %v857 = vsel %vm318, %v646, 0.0
      %v858 = vrot.slane %v857, 4
      %v859 = vadd.f32 %v857, %v858
      %v860 = vrot.slane %v859, 2
      %v861 = vadd.f32 %v859, %v860
      %v862 = vrot.slane %v861, 1
      %v863 = vadd.f32 %v861, %v862
      %v864 = vsel %vm318, %v682, 0.0
      %v865 = vrot.slane %v864, 4
      %v866 = vadd.f32 %v864, %v865
      %v867 = vrot.slane %v866, 2
      %v868 = vadd.f32 %v866, %v867
      %v869 = vrot.slane %v868, 1
      %v870 = vadd.f32 %v868, %v869
      %v871 = vsel %vm318, %v648, 0.0
      %v872 = vrot.slane %v871, 4
      %v873 = vadd.f32 %v871, %v872
      %v874 = vrot.slane %v873, 2
      %v875 = vadd.f32 %v873, %v874
      %v876 = vrot.slane %v875, 1
      %v877 = vadd.f32 %v875, %v876
      %v878 = vsel %vm318, %v683, 0.0
      %v879 = vrot.slane %v878, 4
      %v880 = vadd.f32 %v878, %v879
      %v881 = vrot.slane %v880, 2
      %v882 = vadd.f32 %v880, %v881
      %v883 = vrot.slane %v882, 1
      %v884 = vadd.f32 %v882, %v883
      %v885 = vsel %vm318, %v650, 0.0
      %v886 = vrot.slane %v885, 4
      %v887 = vadd.f32 %v885, %v886
      %v888 = vrot.slane %v887, 2
      %v889 = vadd.f32 %v887, %v888
      %v890 = vrot.slane %v889, 1
      %v891 = vadd.f32 %v889, %v890
      %v892 = vsel %vm318, %v684, 0.0
      %v893 = vrot.slane %v892, 4
      %v894 = vadd.f32 %v892, %v893
      %v895 = vrot.slane %v894, 2
      %v896 = vadd.f32 %v894, %v895
      %v897 = vrot.slane %v896, 1
      %v898 = vadd.f32 %v896, %v897
      %v899 = vsel %vm318, %v652, 0.0
      %v900 = vrot.slane %v899, 4
      %v901 = vadd.f32 %v899, %v900
      %v902 = vrot.slane %v901, 2
      %v903 = vadd.f32 %v901, %v902
      %v904 = vrot.slane %v903, 1
      %v905 = vadd.f32 %v903, %v904
      %v906 = vsel %vm318, %v685, 0.0
      %v907 = vrot.slane %v906, 4
      %v908 = vadd.f32 %v906, %v907
      %v909 = vrot.slane %v908, 2
      %v910 = vadd.f32 %v908, %v909
      %v911 = vrot.slane %v910, 1
      %v912 = vadd.f32 %v910, %v911
      %v913 = vsel %vm318, %v654, 0.0
      %v914 = vrot.slane %v913, 4
      %v915 = vadd.f32 %v913, %v914
      %v916 = vrot.slane %v915, 2
      %v917 = vadd.f32 %v915, %v916
      %v918 = vrot.slane %v917, 1
      %v919 = vadd.f32 %v917, %v918
      %v920 = vsel %vm318, %v686, 0.0
      %v921 = vrot.slane %v920, 4
      %v922 = vadd.f32 %v920, %v921
      %v923 = vrot.slane %v922, 2
      %v924 = vadd.f32 %v922, %v923
      %v925 = vrot.slane %v924, 1
      %v926 = vadd.f32 %v924, %v925
      %v927 = vrcp.pop %v709
      %v928 = vrcp.pop %v716
      %v929 = vrcp.pop %v723
      %v930 = vrcp.pop %v730
      %v931 = vrcp.pop %v737
      %v932 = vrcp.pop %v744
      %v933 = vrcp.pop %v751
      %v934 = vrcp.pop %v758
      %v935 = vrcp.pop %v765
      %v936 = vrcp.pop %v772
      %v937 = vrcp.pop %v779
      %v938 = vrcp.pop %v786
      %v939 = vrcp.pop %v793
      %v940 = vrcp.pop %v800
      %v941 = vrcp.pop %v807
      %v942 = vrcp.pop %v814
      %v943 = vrcp.pop %v821
      %v944 = vrcp.pop %v828
      %v945 = vrcp.pop %v835
      %v946 = vrcp.pop %v842
      %v947 = vrcp.pop %v849
      %v948 = vrcp.pop %v856
      %v949 = vrcp.pop %v863
      %v950 = vrcp.pop %v870
      %v951 = vrcp.pop %v877
      %v952 = vrcp.pop %v884
      %v953 = vrcp.pop %v891
      %v954 = vrcp.pop %v898
      %v955 = vrcp.pop %v905
      %v956 = vrcp.pop %v912
      %v957 = vrcp.pop %v919
      %v958 = vrcp.pop %v926
      %v991 = vcombine.low %v927, %v928
      %v992 = vcombine.low %v929, %v930
      %v993 = vcombine.low %v931, %v932
      %v994 = vcombine.low %v933, %v934
      %v995 = vcombine.low %v935, %v936
      %v996 = vcombine.low %v937, %v938
      %v997 = vcombine.low %v939, %v940
      %v998 = vcombine.low %v941, %v942
      %v999 = vcombine.low %v943, %v944
      %v1000 = vcombine.low %v945, %v946
      %v1001 = vcombine.low %v947, %v948
      %v1002 = vcombine.low %v949, %v950
      %v1003 = vcombine.low %v951, %v952
      %v1004 = vcombine.low %v953, %v954
      %v1005 = vcombine.low %v955, %v956
      %v1006 = vcombine.low %v957, %v958
      %v1023 = vmul.f32 %v624, %v991
      %v1024 = vmul.f32 %v626, %v992
      %v1025 = vmul.f32 %v628, %v993
      %v1026 = vmul.f32 %v630, %v994
      %v1027 = vmul.f32 %v632, %v995
      %v1028 = vmul.f32 %v634, %v996
      %v1029 = vmul.f32 %v636, %v997
      %v1030 = vmul.f32 %v638, %v998
      %v1031 = vmul.f32 %v640, %v999
      %v1032 = vmul.f32 %v642, %v1000
      %v1033 = vmul.f32 %v644, %v1001
      %v1034 = vmul.f32 %v646, %v1002
      %v1035 = vmul.f32 %v648, %v1003
      %v1036 = vmul.f32 %v650, %v1004
      %v1037 = vmul.f32 %v652, %v1005
      %v1038 = vmul.f32 %v654, %v1006
      %v1039 = vlaneseq
      %v1040 = vshrl.u32 %v1039, 7
      %v1041 = vld [vmem:[%s238] sm:$0xff]
      %v1042 = vld [vmem:[%s238 + $0x8] sm:$0xff]
      %v1043 = vld [vmem:[%s238 + $0x10] sm:$0xff]
      %v1044 = vld [vmem:[%s238 + $0x18] sm:$0xff]
      %vm1045 = vcmp.ne.s32.totalorder %v1041, 255
      %vm1046 = vcmp.ne.s32.totalorder %v1042, 255
      %vm1047 = vcmp.ne.s32.totalorder %v1043, 255
      %vm1048 = vcmp.ne.s32.totalorder %v1044, 255
      %v1049 = vlaneseq
      %v1050 = vshrl.u32 %v1049, 7
      %v1051 = vsub.s32 0, %v1050
      %v1052 = vrot.slane %v1041, %v1051
      %v1053 = vlaneseq
      %v1054 = vshrl.u32 %v1053, 7
      %v1055 = vsub.s32 1, %v1054
      %v1056 = vrot.slane %v1041, %v1055
      %v1057 = vlaneseq
      %v1058 = vshrl.u32 %v1057, 7
      %v1059 = vsub.s32 2, %v1058
      %v1060 = vrot.slane %v1041, %v1059
      %v1061 = vlaneseq
      %v1062 = vshrl.u32 %v1061, 7
      %v1063 = vsub.s32 3, %v1062
      %v1064 = vrot.slane %v1041, %v1063
      %v1065 = vlaneseq
      %v1066 = vshrl.u32 %v1065, 7
      %v1067 = vsub.s32 4, %v1066
      %v1068 = vrot.slane %v1041, %v1067
      %v1069 = vlaneseq
      %v1070 = vshrl.u32 %v1069, 7
      %v1071 = vsub.s32 5, %v1070
      %v1072 = vrot.slane %v1041, %v1071
      %v1073 = vlaneseq
      %v1074 = vshrl.u32 %v1073, 7
      %v1075 = vsub.s32 6, %v1074
      %v1076 = vrot.slane %v1041, %v1075
      %v1077 = vlaneseq
      %v1078 = vshrl.u32 %v1077, 7
      %v1079 = vsub.s32 7, %v1078
      %v1080 = vrot.slane %v1041, %v1079
      %v1081 = vlaneseq
      %v1082 = vshrl.u32 %v1081, 7
      %v1083 = vsub.s32 0, %v1082
      %v1084 = vrot.slane %v1042, %v1083
      %v1085 = vlaneseq
      %v1086 = vshrl.u32 %v1085, 7
      %v1087 = vsub.s32 1, %v1086
      %v1088 = vrot.slane %v1042, %v1087
      %v1089 = vlaneseq
      %v1090 = vshrl.u32 %v1089, 7
      %v1091 = vsub.s32 2, %v1090
      %v1092 = vrot.slane %v1042, %v1091
      %v1093 = vlaneseq
      %v1094 = vshrl.u32 %v1093, 7
      %v1095 = vsub.s32 3, %v1094
      %v1096 = vrot.slane %v1042, %v1095
      %v1097 = vlaneseq
      %v1098 = vshrl.u32 %v1097, 7
      %v1099 = vsub.s32 4, %v1098
      %v1100 = vrot.slane %v1042, %v1099
      %v1101 = vlaneseq
      %v1102 = vshrl.u32 %v1101, 7
      %v1103 = vsub.s32 5, %v1102
      %v1104 = vrot.slane %v1042, %v1103
      %v1105 = vlaneseq
      %v1106 = vshrl.u32 %v1105, 7
      %v1107 = vsub.s32 6, %v1106
      %v1108 = vrot.slane %v1042, %v1107
      %v1109 = vlaneseq
      %v1110 = vshrl.u32 %v1109, 7
      %v1111 = vsub.s32 7, %v1110
      %v1112 = vrot.slane %v1042, %v1111
      %v1113 = vlaneseq
      %v1114 = vshrl.u32 %v1113, 7
      %v1115 = vsub.s32 0, %v1114
      %v1116 = vrot.slane %v1043, %v1115
      %v1117 = vlaneseq
      %v1118 = vshrl.u32 %v1117, 7
      %v1119 = vsub.s32 1, %v1118
      %v1120 = vrot.slane %v1043, %v1119
      %v1121 = vlaneseq
      %v1122 = vshrl.u32 %v1121, 7
      %v1123 = vsub.s32 2, %v1122
      %v1124 = vrot.slane %v1043, %v1123
      %v1125 = vlaneseq
      %v1126 = vshrl.u32 %v1125, 7
      %v1127 = vsub.s32 3, %v1126
      %v1128 = vrot.slane %v1043, %v1127
      %v1129 = vlaneseq
      %v1130 = vshrl.u32 %v1129, 7
      %v1131 = vsub.s32 4, %v1130
      %v1132 = vrot.slane %v1043, %v1131
      %v1133 = vlaneseq
      %v1134 = vshrl.u32 %v1133, 7
      %v1135 = vsub.s32 5, %v1134
      %v1136 = vrot.slane %v1043, %v1135
      %v1137 = vlaneseq
      %v1138 = vshrl.u32 %v1137, 7
      %v1139 = vsub.s32 6, %v1138
      %v1140 = vrot.slane %v1043, %v1139
      %v1141 = vlaneseq
      %v1142 = vshrl.u32 %v1141, 7
      %v1143 = vsub.s32 7, %v1142
      %v1144 = vrot.slane %v1043, %v1143
      %v1145 = vlaneseq
      %v1146 = vshrl.u32 %v1145, 7
      %v1147 = vsub.s32 0, %v1146
      %v1148 = vrot.slane %v1044, %v1147
      %v1149 = vlaneseq
      %v1150 = vshrl.u32 %v1149, 7
      %v1151 = vsub.s32 1, %v1150
      %v1152 = vrot.slane %v1044, %v1151
      %v1153 = vlaneseq
      %v1154 = vshrl.u32 %v1153, 7
      %v1155 = vsub.s32 2, %v1154
      %v1156 = vrot.slane %v1044, %v1155
      %v1157 = vlaneseq
      %v1158 = vshrl.u32 %v1157, 7
      %v1159 = vsub.s32 3, %v1158
      %v1160 = vrot.slane %v1044, %v1159
      %v1161 = vlaneseq
      %v1162 = vshrl.u32 %v1161, 7
      %v1163 = vsub.s32 4, %v1162
      %v1164 = vrot.slane %v1044, %v1163
      %v1165 = vlaneseq
      %v1166 = vshrl.u32 %v1165, 7
      %v1167 = vsub.s32 5, %v1166
      %v1168 = vrot.slane %v1044, %v1167
      %v1169 = vlaneseq
      %v1170 = vshrl.u32 %v1169, 7
      %v1171 = vsub.s32 6, %v1170
      %v1172 = vrot.slane %v1044, %v1171
      %v1173 = vlaneseq
      %v1174 = vshrl.u32 %v1173, 7
      %v1175 = vsub.s32 7, %v1174
      %v1176 = vrot.slane %v1044, %v1175
      %vm1177 = vcmp.eq.s32.totalorder %v1052, %v1040
      %vm1178 = vcmp.eq.s32.totalorder %v1056, %v1040
      %vm1179 = vcmp.eq.s32.totalorder %v1060, %v1040
      %vm1180 = vcmp.eq.s32.totalorder %v1064, %v1040
      %vm1181 = vcmp.eq.s32.totalorder %v1068, %v1040
      %vm1182 = vcmp.eq.s32.totalorder %v1072, %v1040
      %vm1183 = vcmp.eq.s32.totalorder %v1076, %v1040
      %vm1184 = vcmp.eq.s32.totalorder %v1080, %v1040
      %vm1185 = vcmp.eq.s32.totalorder %v1084, %v1040
      %vm1186 = vcmp.eq.s32.totalorder %v1088, %v1040
      %vm1187 = vcmp.eq.s32.totalorder %v1092, %v1040
      %vm1188 = vcmp.eq.s32.totalorder %v1096, %v1040
      %vm1189 = vcmp.eq.s32.totalorder %v1100, %v1040
      %vm1190 = vcmp.eq.s32.totalorder %v1104, %v1040
      %vm1191 = vcmp.eq.s32.totalorder %v1108, %v1040
      %vm1192 = vcmp.eq.s32.totalorder %v1112, %v1040
      %vm1193 = vcmp.eq.s32.totalorder %v1116, %v1040
      %vm1194 = vcmp.eq.s32.totalorder %v1120, %v1040
      %vm1195 = vcmp.eq.s32.totalorder %v1124, %v1040
      %vm1196 = vcmp.eq.s32.totalorder %v1128, %v1040
      %vm1197 = vcmp.eq.s32.totalorder %v1132, %v1040
      %vm1198 = vcmp.eq.s32.totalorder %v1136, %v1040
      %vm1199 = vcmp.eq.s32.totalorder %v1140, %v1040
      %vm1200 = vcmp.eq.s32.totalorder %v1144, %v1040
      %vm1201 = vcmp.eq.s32.totalorder %v1148, %v1040
      %vm1202 = vcmp.eq.s32.totalorder %v1152, %v1040
      %vm1203 = vcmp.eq.s32.totalorder %v1156, %v1040
      %vm1204 = vcmp.eq.s32.totalorder %v1160, %v1040
      %vm1205 = vcmp.eq.s32.totalorder %v1164, %v1040
      %vm1206 = vcmp.eq.s32.totalorder %v1168, %v1040
      %vm1207 = vcmp.eq.s32.totalorder %v1172, %v1040
      %vm1208 = vcmp.eq.s32.totalorder %v1176, %v1040
      %v1209 = vsel %vm1045, 1, 0
      %v1210 = vsel %vm1046, 1, 0
      %v1211 = vsel %vm1047, 1, 0
      %v1212 = vsel %vm1048, 1, 0
      %v1213 = vlaneseq
      %v1214 = vshrl.u32 %v1213, 7
      %v1215 = vsub.s32 0, %v1214
      %v1216 = vrot.slane %v1209, %v1215
      %v1217 = vlaneseq
      %v1218 = vshrl.u32 %v1217, 7
      %v1219 = vsub.s32 1, %v1218
      %v1220 = vrot.slane %v1209, %v1219
      %v1221 = vlaneseq
      %v1222 = vshrl.u32 %v1221, 7
      %v1223 = vsub.s32 2, %v1222
      %v1224 = vrot.slane %v1209, %v1223
      %v1225 = vlaneseq
      %v1226 = vshrl.u32 %v1225, 7
      %v1227 = vsub.s32 3, %v1226
      %v1228 = vrot.slane %v1209, %v1227
      %v1229 = vlaneseq
      %v1230 = vshrl.u32 %v1229, 7
      %v1231 = vsub.s32 4, %v1230
      %v1232 = vrot.slane %v1209, %v1231
      %v1233 = vlaneseq
      %v1234 = vshrl.u32 %v1233, 7
      %v1235 = vsub.s32 5, %v1234
      %v1236 = vrot.slane %v1209, %v1235
      %v1237 = vlaneseq
      %v1238 = vshrl.u32 %v1237, 7
      %v1239 = vsub.s32 6, %v1238
      %v1240 = vrot.slane %v1209, %v1239
      %v1241 = vlaneseq
      %v1242 = vshrl.u32 %v1241, 7
      %v1243 = vsub.s32 7, %v1242
      %v1244 = vrot.slane %v1209, %v1243
      %v1245 = vlaneseq
      %v1246 = vshrl.u32 %v1245, 7
      %v1247 = vsub.s32 0, %v1246
      %v1248 = vrot.slane %v1210, %v1247
      %v1249 = vlaneseq
      %v1250 = vshrl.u32 %v1249, 7
      %v1251 = vsub.s32 1, %v1250
      %v1252 = vrot.slane %v1210, %v1251
      %v1253 = vlaneseq
      %v1254 = vshrl.u32 %v1253, 7
      %v1255 = vsub.s32 2, %v1254
      %v1256 = vrot.slane %v1210, %v1255
      %v1257 = vlaneseq
      %v1258 = vshrl.u32 %v1257, 7
      %v1259 = vsub.s32 3, %v1258
      %v1260 = vrot.slane %v1210, %v1259
      %v1261 = vlaneseq
      %v1262 = vshrl.u32 %v1261, 7
      %v1263 = vsub.s32 4, %v1262
      %v1264 = vrot.slane %v1210, %v1263
      %v1265 = vlaneseq
      %v1266 = vshrl.u32 %v1265, 7
      %v1267 = vsub.s32 5, %v1266
      %v1268 = vrot.slane %v1210, %v1267
      %v1269 = vlaneseq
      %v1270 = vshrl.u32 %v1269, 7
      %v1271 = vsub.s32 6, %v1270
      %v1272 = vrot.slane %v1210, %v1271
      %v1273 = vlaneseq
      %v1274 = vshrl.u32 %v1273, 7
      %v1275 = vsub.s32 7, %v1274
      %v1276 = vrot.slane %v1210, %v1275
      %v1277 = vlaneseq
      %v1278 = vshrl.u32 %v1277, 7
      %v1279 = vsub.s32 0, %v1278
      %v1280 = vrot.slane %v1211, %v1279
      %v1281 = vlaneseq
      %v1282 = vshrl.u32 %v1281, 7
      %v1283 = vsub.s32 1, %v1282
      %v1284 = vrot.slane %v1211, %v1283
      %v1285 = vlaneseq
      %v1286 = vshrl.u32 %v1285, 7
      %v1287 = vsub.s32 2, %v1286
      %v1288 = vrot.slane %v1211, %v1287
      %v1289 = vlaneseq
      %v1290 = vshrl.u32 %v1289, 7
      %v1291 = vsub.s32 3, %v1290
      %v1292 = vrot.slane %v1211, %v1291
      %v1293 = vlaneseq
      %v1294 = vshrl.u32 %v1293, 7
      %v1295 = vsub.s32 4, %v1294
      %v1296 = vrot.slane %v1211, %v1295
      %v1297 = vlaneseq
      %v1298 = vshrl.u32 %v1297, 7
      %v1299 = vsub.s32 5, %v1298
      %v1300 = vrot.slane %v1211, %v1299
      %v1301 = vlaneseq
      %v1302 = vshrl.u32 %v1301, 7
      %v1303 = vsub.s32 6, %v1302
      %v1304 = vrot.slane %v1211, %v1303
      %v1305 = vlaneseq
      %v1306 = vshrl.u32 %v1305, 7
      %v1307 = vsub.s32 7, %v1306
      %v1308 = vrot.slane %v1211, %v1307
      %v1309 = vlaneseq
      %v1310 = vshrl.u32 %v1309, 7
      %v1311 = vsub.s32 0, %v1310
      %v1312 = vrot.slane %v1212, %v1311
      %v1313 = vlaneseq
      %v1314 = vshrl.u32 %v1313, 7
      %v1315 = vsub.s32 1, %v1314
      %v1316 = vrot.slane %v1212, %v1315
      %v1317 = vlaneseq
      %v1318 = vshrl.u32 %v1317, 7
      %v1319 = vsub.s32 2, %v1318
      %v1320 = vrot.slane %v1212, %v1319
      %v1321 = vlaneseq
      %v1322 = vshrl.u32 %v1321, 7
      %v1323 = vsub.s32 3, %v1322
      %v1324 = vrot.slane %v1212, %v1323
      %v1325 = vlaneseq
      %v1326 = vshrl.u32 %v1325, 7
      %v1327 = vsub.s32 4, %v1326
      %v1328 = vrot.slane %v1212, %v1327
      %v1329 = vlaneseq
      %v1330 = vshrl.u32 %v1329, 7
      %v1331 = vsub.s32 5, %v1330
      %v1332 = vrot.slane %v1212, %v1331
      %v1333 = vlaneseq
      %v1334 = vshrl.u32 %v1333, 7
      %v1335 = vsub.s32 6, %v1334
      %v1336 = vrot.slane %v1212, %v1335
      %v1337 = vlaneseq
      %v1338 = vshrl.u32 %v1337, 7
      %v1339 = vsub.s32 7, %v1338
      %v1340 = vrot.slane %v1212, %v1339
      %vm1341 = vcmp.eq.s32.totalorder %v1216, 1
      %vm1342 = vcmp.eq.s32.totalorder %v1220, 1
      %vm1343 = vcmp.eq.s32.totalorder %v1224, 1
      %vm1344 = vcmp.eq.s32.totalorder %v1228, 1
      %vm1345 = vcmp.eq.s32.totalorder %v1232, 1
      %vm1346 = vcmp.eq.s32.totalorder %v1236, 1
      %vm1347 = vcmp.eq.s32.totalorder %v1240, 1
      %vm1348 = vcmp.eq.s32.totalorder %v1244, 1
      %vm1349 = vcmp.eq.s32.totalorder %v1248, 1
      %vm1350 = vcmp.eq.s32.totalorder %v1252, 1
      %vm1351 = vcmp.eq.s32.totalorder %v1256, 1
      %vm1352 = vcmp.eq.s32.totalorder %v1260, 1
      %vm1353 = vcmp.eq.s32.totalorder %v1264, 1
      %vm1354 = vcmp.eq.s32.totalorder %v1268, 1
      %vm1355 = vcmp.eq.s32.totalorder %v1272, 1
      %vm1356 = vcmp.eq.s32.totalorder %v1276, 1
      %vm1357 = vcmp.eq.s32.totalorder %v1280, 1
      %vm1358 = vcmp.eq.s32.totalorder %v1284, 1
      %vm1359 = vcmp.eq.s32.totalorder %v1288, 1
      %vm1360 = vcmp.eq.s32.totalorder %v1292, 1
      %vm1361 = vcmp.eq.s32.totalorder %v1296, 1
      %vm1362 = vcmp.eq.s32.totalorder %v1300, 1
      %vm1363 = vcmp.eq.s32.totalorder %v1304, 1
      %vm1364 = vcmp.eq.s32.totalorder %v1308, 1
      %vm1365 = vcmp.eq.s32.totalorder %v1312, 1
      %vm1366 = vcmp.eq.s32.totalorder %v1316, 1
      %vm1367 = vcmp.eq.s32.totalorder %v1320, 1
      %vm1368 = vcmp.eq.s32.totalorder %v1324, 1
      %vm1369 = vcmp.eq.s32.totalorder %v1328, 1
      %vm1370 = vcmp.eq.s32.totalorder %v1332, 1
      %vm1371 = vcmp.eq.s32.totalorder %v1336, 1
      %vm1372 = vcmp.eq.s32.totalorder %v1340, 1
      %vm1373 = vmand %vm1177, %vm1341
      %vm1374 = vmand %vm1178, %vm1342
      %vm1375 = vmand %vm1179, %vm1343
      %vm1376 = vmand %vm1180, %vm1344
      %vm1377 = vmand %vm1181, %vm1345
      %vm1378 = vmand %vm1182, %vm1346
      %vm1379 = vmand %vm1183, %vm1347
      %vm1380 = vmand %vm1184, %vm1348
      %vm1381 = vmand %vm1185, %vm1349
      %vm1382 = vmand %vm1186, %vm1350
      %vm1383 = vmand %vm1187, %vm1351
      %vm1384 = vmand %vm1188, %vm1352
      %vm1385 = vmand %vm1189, %vm1353
      %vm1386 = vmand %vm1190, %vm1354
      %vm1387 = vmand %vm1191, %vm1355
      %vm1388 = vmand %vm1192, %vm1356
      %vm1389 = vmand %vm1193, %vm1357
      %vm1390 = vmand %vm1194, %vm1358
      %vm1391 = vmand %vm1195, %vm1359
      %vm1392 = vmand %vm1196, %vm1360
      %vm1393 = vmand %vm1197, %vm1361
      %vm1394 = vmand %vm1198, %vm1362
      %vm1395 = vmand %vm1199, %vm1363
      %vm1396 = vmand %vm1200, %vm1364
      %vm1397 = vmand %vm1201, %vm1365
      %vm1398 = vmand %vm1202, %vm1366
      %vm1399 = vmand %vm1203, %vm1367
      %vm1400 = vmand %vm1204, %vm1368
      %vm1401 = vmand %vm1205, %vm1369
      %vm1402 = vmand %vm1206, %vm1370
      %vm1403 = vmand %vm1207, %vm1371
      %vm1404 = vmand %vm1208, %vm1372
      %v1405 = vsel %vm1373, 1.0, 0.0
      %v1406 = vsel %vm1374, 1.0, 0.0
      %v1407 = vsel %vm1375, 1.0, 0.0
      %v1408 = vsel %vm1376, 1.0, 0.0
      %v1409 = vsel %vm1377, 1.0, 0.0
      %v1410 = vsel %vm1378, 1.0, 0.0
      %v1411 = vsel %vm1379, 1.0, 0.0
      %v1412 = vsel %vm1380, 1.0, 0.0
      %v1413 = vsel %vm1381, 1.0, 0.0
      %v1414 = vsel %vm1382, 1.0, 0.0
      %v1415 = vsel %vm1383, 1.0, 0.0
      %v1416 = vsel %vm1384, 1.0, 0.0
      %v1417 = vsel %vm1385, 1.0, 0.0
      %v1418 = vsel %vm1386, 1.0, 0.0
      %v1419 = vsel %vm1387, 1.0, 0.0
      %v1420 = vsel %vm1388, 1.0, 0.0
      %v1421 = vsel %vm1389, 1.0, 0.0
      %v1422 = vsel %vm1390, 1.0, 0.0
      %v1423 = vsel %vm1391, 1.0, 0.0
      %v1424 = vsel %vm1392, 1.0, 0.0
      %v1425 = vsel %vm1393, 1.0, 0.0
      %v1426 = vsel %vm1394, 1.0, 0.0
      %v1427 = vsel %vm1395, 1.0, 0.0
      %v1428 = vsel %vm1396, 1.0, 0.0
      %v1429 = vsel %vm1397, 1.0, 0.0
      %v1430 = vsel %vm1398, 1.0, 0.0
      %v1431 = vsel %vm1399, 1.0, 0.0
      %v1432 = vsel %vm1400, 1.0, 0.0
      %v1433 = vsel %vm1401, 1.0, 0.0
      %v1434 = vsel %vm1402, 1.0, 0.0
      %v1435 = vsel %vm1403, 1.0, 0.0
      %v1436 = vsel %vm1404, 1.0, 0.0
      %v1453 = vcombine.high %v1023, %v1023
      %v1454 = vcombine.high %v1024, %v1024
      %v1455 = vcombine.high %v1025, %v1025
      %v1456 = vcombine.high %v1026, %v1026
      %v1457 = vcombine.high %v1027, %v1027
      %v1458 = vcombine.high %v1028, %v1028
      %v1459 = vcombine.high %v1029, %v1029
      %v1460 = vcombine.high %v1030, %v1030
      %v1461 = vcombine.high %v1031, %v1031
      %v1462 = vcombine.high %v1032, %v1032
      %v1463 = vcombine.high %v1033, %v1033
      %v1464 = vcombine.high %v1034, %v1034
      %v1465 = vcombine.high %v1035, %v1035
      %v1466 = vcombine.high %v1036, %v1036
      %v1467 = vcombine.high %v1037, %v1037
      %v1468 = vcombine.high %v1038, %v1038
      %v1485 = vsub.f32 %v1405, %v1023
      %v1486 = vsub.f32 %v1406, %v1453
      %v1487 = vsub.f32 %v1407, %v1024
      %v1488 = vsub.f32 %v1408, %v1454
      %v1489 = vsub.f32 %v1409, %v1025
      %v1490 = vsub.f32 %v1410, %v1455
      %v1491 = vsub.f32 %v1411, %v1026
      %v1492 = vsub.f32 %v1412, %v1456
      %v1493 = vsub.f32 %v1413, %v1027
      %v1494 = vsub.f32 %v1414, %v1457
      %v1495 = vsub.f32 %v1415, %v1028
      %v1496 = vsub.f32 %v1416, %v1458
      %v1497 = vsub.f32 %v1417, %v1029
      %v1498 = vsub.f32 %v1418, %v1459
      %v1499 = vsub.f32 %v1419, %v1030
      %v1500 = vsub.f32 %v1420, %v1460
      %v1501 = vsub.f32 %v1421, %v1031
      %v1502 = vsub.f32 %v1422, %v1461
      %v1503 = vsub.f32 %v1423, %v1032
      %v1504 = vsub.f32 %v1424, %v1462
      %v1505 = vsub.f32 %v1425, %v1033
      %v1506 = vsub.f32 %v1426, %v1463
      %v1507 = vsub.f32 %v1427, %v1034
      %v1508 = vsub.f32 %v1428, %v1464
      %v1509 = vsub.f32 %v1429, %v1035
      %v1510 = vsub.f32 %v1430, %v1465
      %v1511 = vsub.f32 %v1431, %v1036
      %v1512 = vsub.f32 %v1432, %v1466
      %v1513 = vsub.f32 %v1433, %v1037
      %v1514 = vsub.f32 %v1434, %v1467
      %v1515 = vsub.f32 %v1435, %v1038
      %v1516 = vsub.f32 %v1436, %v1468
      %v1517 = vand.u32 2147483647, %v1485
      %v1518 = vand.u32 2147483647, %v1486
      %v1519 = vand.u32 2147483647, %v1487
      %v1520 = vand.u32 2147483647, %v1488
      %v1521 = vand.u32 2147483647, %v1489
      %v1522 = vand.u32 2147483647, %v1490
      %v1523 = vand.u32 2147483647, %v1491
      %v1524 = vand.u32 2147483647, %v1492
      %v1525 = vand.u32 2147483647, %v1493
      %v1526 = vand.u32 2147483647, %v1494
      %v1527 = vand.u32 2147483647, %v1495
      %v1528 = vand.u32 2147483647, %v1496
      %v1529 = vand.u32 2147483647, %v1497
      %v1530 = vand.u32 2147483647, %v1498
      %v1531 = vand.u32 2147483647, %v1499
      %v1532 = vand.u32 2147483647, %v1500
      %v1533 = vand.u32 2147483647, %v1501
      %v1534 = vand.u32 2147483647, %v1502
      %v1535 = vand.u32 2147483647, %v1503
      %v1536 = vand.u32 2147483647, %v1504
      %v1537 = vand.u32 2147483647, %v1505
      %v1538 = vand.u32 2147483647, %v1506
      %v1539 = vand.u32 2147483647, %v1507
      %v1540 = vand.u32 2147483647, %v1508
      %v1541 = vand.u32 2147483647, %v1509
      %v1542 = vand.u32 2147483647, %v1510
      %v1543 = vand.u32 2147483647, %v1511
      %v1544 = vand.u32 2147483647, %v1512
      %v1545 = vand.u32 2147483647, %v1513
      %v1546 = vand.u32 2147483647, %v1514
      %v1547 = vand.u32 2147483647, %v1515
      %v1548 = vand.u32 2147483647, %v1516
      %v1549 = vsel %vm1341, %v1517, 0.0
      %v1550 = vsel %vm1342, %v1518, 0.0
      %v1551 = vsel %vm1343, %v1519, 0.0
      %v1552 = vsel %vm1344, %v1520, 0.0
      %v1553 = vsel %vm1345, %v1521, 0.0
      %v1554 = vsel %vm1346, %v1522, 0.0
      %v1555 = vsel %vm1347, %v1523, 0.0
      %v1556 = vsel %vm1348, %v1524, 0.0
      %v1557 = vsel %vm1349, %v1525, 0.0
      %v1558 = vsel %vm1350, %v1526, 0.0
      %v1559 = vsel %vm1351, %v1527, 0.0
      %v1560 = vsel %vm1352, %v1528, 0.0
      %v1561 = vsel %vm1353, %v1529, 0.0
      %v1562 = vsel %vm1354, %v1530, 0.0
      %v1563 = vsel %vm1355, %v1531, 0.0
      %v1564 = vsel %vm1356, %v1532, 0.0
      %v1565 = vsel %vm1357, %v1533, 0.0
      %v1566 = vsel %vm1358, %v1534, 0.0
      %v1567 = vsel %vm1359, %v1535, 0.0
      %v1568 = vsel %vm1360, %v1536, 0.0
      %v1569 = vsel %vm1361, %v1537, 0.0
      %v1570 = vsel %vm1362, %v1538, 0.0
      %v1571 = vsel %vm1363, %v1539, 0.0
      %v1572 = vsel %vm1364, %v1540, 0.0
      %v1573 = vsel %vm1365, %v1541, 0.0
      %v1574 = vsel %vm1366, %v1542, 0.0
      %v1575 = vsel %vm1367, %v1543, 0.0
      %v1576 = vsel %vm1368, %v1544, 0.0
      %v1577 = vsel %vm1369, %v1545, 0.0
      %v1578 = vsel %vm1370, %v1546, 0.0
      %v1579 = vsel %vm1371, %v1547, 0.0
      %v1580 = vsel %vm1372, %v1548, 0.0
      %v1581 = vsub.f32 0.0, %v1549
      %v1582 = vsub.f32 0.0, %v1550
      %v1583 = vsub.f32 0.0, %v1551
      %v1584 = vsub.f32 0.0, %v1552
      %v1585 = vsub.f32 0.0, %v1553
      %v1586 = vsub.f32 0.0, %v1554
      %v1587 = vsub.f32 0.0, %v1555
      %v1588 = vsub.f32 0.0, %v1556
      %v1589 = vsub.f32 0.0, %v1557
      %v1590 = vsub.f32 0.0, %v1558
      %v1591 = vsub.f32 0.0, %v1559
      %v1592 = vsub.f32 0.0, %v1560
      %v1593 = vsub.f32 0.0, %v1561
      %v1594 = vsub.f32 0.0, %v1562
      %v1595 = vsub.f32 0.0, %v1563
      %v1596 = vsub.f32 0.0, %v1564
      %v1597 = vsub.f32 0.0, %v1565
      %v1598 = vsub.f32 0.0, %v1566
      %v1599 = vsub.f32 0.0, %v1567
      %v1600 = vsub.f32 0.0, %v1568
      %v1601 = vsub.f32 0.0, %v1569
      %v1602 = vsub.f32 0.0, %v1570
      %v1603 = vsub.f32 0.0, %v1571
      %v1604 = vsub.f32 0.0, %v1572
      %v1605 = vsub.f32 0.0, %v1573
      %v1606 = vsub.f32 0.0, %v1574
      %v1607 = vsub.f32 0.0, %v1575
      %v1608 = vsub.f32 0.0, %v1576
      %v1609 = vsub.f32 0.0, %v1577
      %v1610 = vsub.f32 0.0, %v1578
      %v1611 = vsub.f32 0.0, %v1579
      %v1612 = vsub.f32 0.0, %v1580
      %v1645 = vand.u32 %v1581, 4294967294
      %v1646 = vand.u32 %v1582, 4294967294
      %v1647 = vand.u32 %v1583, 4294967294
      %v1648 = vand.u32 %v1584, 4294967294
      %v1649 = vand.u32 %v1585, 4294967294
      %v1650 = vand.u32 %v1586, 4294967294
      %v1651 = vand.u32 %v1587, 4294967294
      %v1652 = vand.u32 %v1588, 4294967294
      %v1653 = vand.u32 %v1589, 4294967294
      %v1654 = vand.u32 %v1590, 4294967294
      %v1655 = vand.u32 %v1591, 4294967294
      %v1656 = vand.u32 %v1592, 4294967294
      %v1657 = vand.u32 %v1593, 4294967294
      %v1658 = vand.u32 %v1594, 4294967294
      %v1659 = vand.u32 %v1595, 4294967294
      %v1660 = vand.u32 %v1596, 4294967294
      %v1661 = vand.u32 %v1597, 4294967294
      %v1662 = vand.u32 %v1598, 4294967294
      %v1663 = vand.u32 %v1599, 4294967294
      %v1664 = vand.u32 %v1600, 4294967294
      %v1665 = vand.u32 %v1601, 4294967294
      %v1666 = vand.u32 %v1602, 4294967294
      %v1667 = vand.u32 %v1603, 4294967294
      %v1668 = vand.u32 %v1604, 4294967294
      %v1669 = vand.u32 %v1605, 4294967294
      %v1670 = vand.u32 %v1606, 4294967294
      %v1671 = vand.u32 %v1607, 4294967294
      %v1672 = vand.u32 %v1608, 4294967294
      %v1673 = vand.u32 %v1609, 4294967294
      %v1674 = vand.u32 %v1610, 4294967294
      %v1675 = vand.u32 %v1611, 4294967294
      %v1676 = vand.u32 %v1612, 4294967294
      %v1677 = vsel %vm1373, 1, 0
      %v1678 = vsel %vm1374, 1, 0
      %v1679 = vsel %vm1375, 1, 0
      %v1680 = vsel %vm1376, 1, 0
      %v1681 = vsel %vm1377, 1, 0
      %v1682 = vsel %vm1378, 1, 0
      %v1683 = vsel %vm1379, 1, 0
      %v1684 = vsel %vm1380, 1, 0
      %v1685 = vsel %vm1381, 1, 0
      %v1686 = vsel %vm1382, 1, 0
      %v1687 = vsel %vm1383, 1, 0
      %v1688 = vsel %vm1384, 1, 0
      %v1689 = vsel %vm1385, 1, 0
      %v1690 = vsel %vm1386, 1, 0
      %v1691 = vsel %vm1387, 1, 0
      %v1692 = vsel %vm1388, 1, 0
      %v1693 = vsel %vm1389, 1, 0
      %v1694 = vsel %vm1390, 1, 0
      %v1695 = vsel %vm1391, 1, 0
      %v1696 = vsel %vm1392, 1, 0
      %v1697 = vsel %vm1393, 1, 0
      %v1698 = vsel %vm1394, 1, 0
      %v1699 = vsel %vm1395, 1, 0
      %v1700 = vsel %vm1396, 1, 0
      %v1701 = vsel %vm1397, 1, 0
      %v1702 = vsel %vm1398, 1, 0
      %v1703 = vsel %vm1399, 1, 0
      %v1704 = vsel %vm1400, 1, 0
      %v1705 = vsel %vm1401, 1, 0
      %v1706 = vsel %vm1402, 1, 0
      %v1707 = vsel %vm1403, 1, 0
      %v1708 = vsel %vm1404, 1, 0
      %v1709 = vor.u32 %v1645, %v1677
      %v1710 = vor.u32 %v1646, %v1678
      %v1711 = vor.u32 %v1647, %v1679
      %v1712 = vor.u32 %v1648, %v1680
      %v1713 = vor.u32 %v1649, %v1681
      %v1714 = vor.u32 %v1650, %v1682
      %v1715 = vor.u32 %v1651, %v1683
      %v1716 = vor.u32 %v1652, %v1684
      %v1717 = vor.u32 %v1653, %v1685
      %v1718 = vor.u32 %v1654, %v1686
      %v1719 = vor.u32 %v1655, %v1687
      %v1720 = vor.u32 %v1656, %v1688
      %v1721 = vor.u32 %v1657, %v1689
      %v1722 = vor.u32 %v1658, %v1690
      %v1723 = vor.u32 %v1659, %v1691
      %v1724 = vor.u32 %v1660, %v1692
      %v1725 = vor.u32 %v1661, %v1693
      %v1726 = vor.u32 %v1662, %v1694
      %v1727 = vor.u32 %v1663, %v1695
      %v1728 = vor.u32 %v1664, %v1696
      %v1729 = vor.u32 %v1665, %v1697
      %v1730 = vor.u32 %v1666, %v1698
      %v1731 = vor.u32 %v1667, %v1699
      %v1732 = vor.u32 %v1668, %v1700
      %v1733 = vor.u32 %v1669, %v1701
      %v1734 = vor.u32 %v1670, %v1702
      %v1735 = vor.u32 %v1671, %v1703
      %v1736 = vor.u32 %v1672, %v1704
      %v1737 = vor.u32 %v1673, %v1705
      %v1738 = vor.u32 %v1674, %v1706
      %v1739 = vor.u32 %v1675, %v1707
      %v1740 = vor.u32 %v1676, %v1708
      %v1741 = vcombine.low %v1709, %v1710
      %v1742 = vcombine.low %v1711, %v1712
      %v1743 = vcombine.low %v1713, %v1714
      %v1744 = vcombine.low %v1715, %v1716
      %v1745 = vcombine.low %v1717, %v1718
      %v1746 = vcombine.low %v1719, %v1720
      %v1747 = vcombine.low %v1721, %v1722
      %v1748 = vcombine.low %v1723, %v1724
      %v1749 = vcombine.low %v1725, %v1726
      %v1750 = vcombine.low %v1727, %v1728
      %v1751 = vcombine.low %v1729, %v1730
      %v1752 = vcombine.low %v1731, %v1732
      %v1753 = vcombine.low %v1733, %v1734
      %v1754 = vcombine.low %v1735, %v1736
      %v1755 = vcombine.low %v1737, %v1738
      %v1756 = vcombine.low %v1739, %v1740
      %1773 = vst [vmem:[%s245] sm:$0xff] %v1741
      %1774 = vst [vmem:[%s245 + $0x8] sm:$0xff] %v1742
      %1775 = vst [vmem:[%s245 + $0x10] sm:$0xff] %v1743
      %1776 = vst [vmem:[%s245 + $0x18] sm:$0xff] %v1744
      %1777 = vst [vmem:[%s245 + $0x20] sm:$0xff] %v1745
      %1778 = vst [vmem:[%s245 + $0x28] sm:$0xff] %v1746
      %1779 = vst [vmem:[%s245 + $0x30] sm:$0xff] %v1747
      %1780 = vst [vmem:[%s245 + $0x38] sm:$0xff] %v1748
      %1781 = vst [vmem:[%s245 + $0x40] sm:$0xff] %v1749
      %1782 = vst [vmem:[%s245 + $0x48] sm:$0xff] %v1750
      %1783 = vst [vmem:[%s245 + $0x50] sm:$0xff] %v1751
      %1784 = vst [vmem:[%s245 + $0x58] sm:$0xff] %v1752
      %1785 = vst [vmem:[%s245 + $0x60] sm:$0xff] %v1753
      %1786 = vst [vmem:[%s245 + $0x68] sm:$0xff] %v1754
      %1787 = vst [vmem:[%s245 + $0x70] sm:$0xff] %v1755
      %1788 = vst [vmem:[%s245 + $0x78] sm:$0xff] %v1756
      %v1789 = vsel %vm318, %v1405, 0.0
      %v1790 = vsel %vm318, %v1406, 0.0
      %v1791 = vadd.f32 %v1789, %v1790
      %v1792 = vsel %vm318, %v1407, 0.0
      %v1793 = vadd.f32 %v1791, %v1792
      %v1794 = vsel %vm318, %v1408, 0.0
      %v1795 = vadd.f32 %v1793, %v1794
      %v1796 = vsel %vm318, %v1409, 0.0
      %v1797 = vadd.f32 %v1795, %v1796
      %v1798 = vsel %vm318, %v1410, 0.0
      %v1799 = vadd.f32 %v1797, %v1798
      %v1800 = vsel %vm318, %v1411, 0.0
      %v1801 = vadd.f32 %v1799, %v1800
      %v1802 = vsel %vm318, %v1412, 0.0
      %v1803 = vadd.f32 %v1801, %v1802
      %v1804 = vsel %vm318, %v1413, 0.0
      %v1805 = vadd.f32 %v1803, %v1804
      %v1806 = vsel %vm318, %v1414, 0.0
      %v1807 = vadd.f32 %v1805, %v1806
      %v1808 = vsel %vm318, %v1415, 0.0
      %v1809 = vadd.f32 %v1807, %v1808
      %v1810 = vsel %vm318, %v1416, 0.0
      %v1811 = vadd.f32 %v1809, %v1810
      %v1812 = vsel %vm318, %v1417, 0.0
      %v1813 = vadd.f32 %v1811, %v1812
      %v1814 = vsel %vm318, %v1418, 0.0
      %v1815 = vadd.f32 %v1813, %v1814
      %v1816 = vsel %vm318, %v1419, 0.0
      %v1817 = vadd.f32 %v1815, %v1816
      %v1818 = vsel %vm318, %v1420, 0.0
      %v1819 = vadd.f32 %v1817, %v1818
      %v1820 = vsel %vm318, %v1421, 0.0
      %v1821 = vadd.f32 %v1819, %v1820
      %v1822 = vsel %vm318, %v1422, 0.0
      %v1823 = vadd.f32 %v1821, %v1822
      %v1824 = vsel %vm318, %v1423, 0.0
      %v1825 = vadd.f32 %v1823, %v1824
      %v1826 = vsel %vm318, %v1424, 0.0
      %v1827 = vadd.f32 %v1825, %v1826
      %v1828 = vsel %vm318, %v1425, 0.0
      %v1829 = vadd.f32 %v1827, %v1828
      %v1830 = vsel %vm318, %v1426, 0.0
      %v1831 = vadd.f32 %v1829, %v1830
      %v1832 = vsel %vm318, %v1427, 0.0
      %v1833 = vadd.f32 %v1831, %v1832
      %v1834 = vsel %vm318, %v1428, 0.0
      %v1835 = vadd.f32 %v1833, %v1834
      %v1836 = vsel %vm318, %v1429, 0.0
      %v1837 = vadd.f32 %v1835, %v1836
      %v1838 = vsel %vm318, %v1430, 0.0
      %v1839 = vadd.f32 %v1837, %v1838
      %v1840 = vsel %vm318, %v1431, 0.0
      %v1841 = vadd.f32 %v1839, %v1840
      %v1842 = vsel %vm318, %v1432, 0.0
      %v1843 = vadd.f32 %v1841, %v1842
      %v1844 = vsel %vm318, %v1433, 0.0
      %v1845 = vadd.f32 %v1843, %v1844
      %v1846 = vsel %vm318, %v1434, 0.0
      %v1847 = vadd.f32 %v1845, %v1846
      %v1848 = vsel %vm318, %v1435, 0.0
      %v1849 = vadd.f32 %v1847, %v1848
      %v1850 = vsel %vm318, %v1436, 0.0
      %v1851 = vadd.f32 %v1849, %v1850
      %1852 = vadd.xlane.f32.xlu0 %v1851
      %v1853 = vpop.xlane.xlu0 %1852
      %vm1854 = vcmask 3072
      %1855 = vst.msk [vmem:[%s252] sm:$0xf] %vm1854, %v1853
      %s1856 = sadd.s32 %s19, %s20
      %s1857 = smul.u32 32, %s1856
      %p1858 = scmp.lt.s32.totalorder %s1857, 63
      %s1859 = scalar_select %p1858, %s1857, 63
      %s1860 = smul.addr %s1859, 4
      %s1861 = scalar_lea.vmem %s2, %s1860
      %s1862 = sadd.s32 %s19, %s20
      %p1863 = scmp.lt.s32.totalorder %s1862, 1
      %s1864 = scalar_select %p1863, %s1862, 1
      %s1865 = smul.addr %s1864, 4
      %s1866 = scalar_lea.vmem %s3, %s1865
      // Predicated region
      $region29: #{lovasz_softmax_loss.2} parent=27 // pred_check
        %p1867 = pneg %p103
      $region30: #{lovasz_softmax_loss.2} parent=27 // pred_check_branch
        %1869 = sbr.rel (%p1867) target = $region32
      $region31: #{lovasz_softmax_loss.2} parent=27 // pred_region
        %s1870 = sadd.s32 %s19, %s20
        %s1871 = smul.u32 32, %s1870
      $region32: #{lovasz_softmax_loss.2} parent=27 // pred_fallthru
        _
      // Predicated region
      $region33: #{lovasz_softmax_loss.2} parent=27 // pred_check
        %p1872 = pneg %p131
      $region34: #{lovasz_softmax_loss.2} parent=27 // pred_check_branch
        %1874 = sbr.rel (%p1872) target = $region36
      $region35: #{lovasz_softmax_loss.2} parent=27 // pred_region
        %s1875 = sadd.s32 %s19, %s20
      $region36: #{lovasz_softmax_loss.2} parent=27 // pred_fallthru
        _
    $region28: #{lovasz_softmax_loss.2} parent=5 // pred_fallthru
      _
    %p1876 = scmp.le.s32.totalorder 2, %s10
    // Predicated region
    $region37: #{lovasz_softmax_loss.2} parent=5 // pred_check
      %p1877 = pneg %p1876
    $region38: #{lovasz_softmax_loss.2} parent=5 // pred_check_branch
      %1879 = sbr.rel (%p1877) target = $region40
    $region39: #{lovasz_softmax_loss.2} parent=5 // pred_region
      %s1880 = ssub.s32 %s10, 2
      // Predicated region
      $region41: #{lovasz_softmax_loss.2} parent=39 // pred_check
        %p1881 = pneg %p109
      $region42: #{lovasz_softmax_loss.2} parent=39 // pred_check_branch
        %1883 = sbr.rel (%p1881) target = $region44
      $region43: #{lovasz_softmax_loss.2} parent=39 // pred_region
        %s1884 = sadd.s32 %s21, %s22
        %s1885 = smul.u32 32, %s1884
        %p1886 = scmp.lt.s32.totalorder %s1885, 63
        %s1887 = scalar_select %p1886, %s1885, 63
        %s1888 = smul.addr %s1887, 4
        %s1889 = scalar_lea.vmem %s2, %s1888
      $region44: #{lovasz_softmax_loss.2} parent=39 // pred_fallthru
        _
      // Predicated region
      $region45: #{lovasz_softmax_loss.2} parent=39 // pred_check
        %p1890 = pneg %p137
      $region46: #{lovasz_softmax_loss.2} parent=39 // pred_check_branch
        %1892 = sbr.rel (%p1890) target = $region48
      $region47: #{lovasz_softmax_loss.2} parent=39 // pred_region
        %s1893 = sadd.s32 %s21, %s22
        %p1894 = scmp.lt.s32.totalorder %s1893, 1
        %s1895 = scalar_select %p1894, %s1893, 1
        %s1896 = smul.addr %s1895, 4
        %s1897 = scalar_lea.vmem %s3, %s1896
      $region48: #{lovasz_softmax_loss.2} parent=39 // pred_fallthru
        _
    $region40: #{lovasz_softmax_loss.2} parent=5 // pred_fallthru
      _
  $region6: #{lovasz_softmax_loss.2} parent=0 // loop_footer
    %s14 = sadd.s32 1, %s10
  $region7: #{lovasz_softmax_loss.2} parent=0 // loop_footer_branch
    %9 = sbr.rel target = $region3
  $region8: #{lovasz_softmax_loss.2} parent=0 // loop_exit
    _

// kernel: lovasz_softmax_loss.3
$region0: #{lovasz_softmax_loss.3}
  #allocation0 [shape = 'u32[]', space=smem, size = 0x4, offset = 0x4, fixed_abs, tag = 'smem constant byte address 0x4 - core index']
  #allocation1 [shape = 'u32[144,128]{1,0:T(1,128)}', space=vmem, size = 0x12000, scoped, tag = 'internal scratch']
  %s0 = inlined_call_operand.vmem [shape: f32[1,128,1], index: 0, kind: input, shape index: {}]
  %s1 = inlined_call_operand.vmem [shape: f32[128,1], index: 1, kind: input, shape index: {}]
  %s2 = inlined_call_operand.vmem [shape: bf16[256,256], index: 2, kind: input, shape index: {}]
  %s3 = inlined_call_operand.vmem [shape: f32[4,32,256], index: 3, kind: input, shape index: {}]
  %s4 = inlined_call_operand.vmem [shape: f32[1,128,1], index: 4, kind: output, shape index: {}]
  %s5 = sld [smem:[#allocation0]]
  $region26: #{lovasz_softmax_loss.3} parent=0
    _
  %s7 = ssub.s32 1, %s5
  %s8 = scalar_select 0, %s7, %s5
  // Predicated region
  $region2: #{lovasz_softmax_loss.3} parent=0 // pred_check
    _
  $region3: #{lovasz_softmax_loss.3} parent=0 // pred_check_branch
    %10 = sbr.rel (0) target = $region5
  $region4: #{lovasz_softmax_loss.3} parent=0 // pred_region
    _
  $region5: #{lovasz_softmax_loss.3} parent=0 // pred_fallthru
    _
  // Predicated region
  $region6: #{lovasz_softmax_loss.3} parent=0 // pred_check
    _
  $region7: #{lovasz_softmax_loss.3} parent=0 // pred_check_branch
    %12 = sbr.rel (0) target = $region9
  $region8: #{lovasz_softmax_loss.3} parent=0 // pred_region
    _
  $region9: #{lovasz_softmax_loss.3} parent=0 // pred_fallthru
    _
  // Predicated region
  $region10: #{lovasz_softmax_loss.3} parent=0 // pred_check
    _
  $region11: #{lovasz_softmax_loss.3} parent=0 // pred_check_branch
    %14 = sbr.rel (0) target = $region13
  $region12: #{lovasz_softmax_loss.3} parent=0 // pred_region
    _
  $region13: #{lovasz_softmax_loss.3} parent=0 // pred_fallthru
    _
  // Predicated region
  $region14: #{lovasz_softmax_loss.3} parent=0 // pred_check
    _
  $region15: #{lovasz_softmax_loss.3} parent=0 // pred_check_branch
    %16 = sbr.rel (0) target = $region17
  $region16: #{lovasz_softmax_loss.3} parent=0 // pred_region
    _
  $region17: #{lovasz_softmax_loss.3} parent=0 // pred_fallthru
    _
  %v17 = vld [vmem:[%s3] sm:$0xff]
  %v18 = vld [vmem:[%s3 + $0x8] sm:$0xff]
  %v19 = vld [vmem:[%s3 + $0x10] sm:$0xff]
  %v20 = vld [vmem:[%s3 + $0x18] sm:$0xff]
  %v21 = vld [vmem:[%s3 + $0x20] sm:$0xff]
  %v22 = vld [vmem:[%s3 + $0x28] sm:$0xff]
  %v23 = vld [vmem:[%s3 + $0x30] sm:$0xff]
  %v24 = vld [vmem:[%s3 + $0x38] sm:$0xff]
  %v25 = vld [vmem:[%s3 + $0x40] sm:$0xff]
  %v26 = vld [vmem:[%s3 + $0x48] sm:$0xff]
  %v27 = vld [vmem:[%s3 + $0x50] sm:$0xff]
  %v28 = vld [vmem:[%s3 + $0x58] sm:$0xff]
  %v29 = vld [vmem:[%s3 + $0x60] sm:$0xff]
  %v30 = vld [vmem:[%s3 + $0x68] sm:$0xff]
  %v31 = vld [vmem:[%s3 + $0x70] sm:$0xff]
  %v32 = vld [vmem:[%s3 + $0x78] sm:$0xff]
  %v33 = vld [vmem:[%s3 + $0x80] sm:$0xff]
  %v34 = vld [vmem:[%s3 + $0x88] sm:$0xff]
  %v35 = vld [vmem:[%s3 + $0x90] sm:$0xff]
  %v36 = vld [vmem:[%s3 + $0x98] sm:$0xff]
  %v37 = vld [vmem:[%s3 + $0xa0] sm:$0xff]
  %v38 = vld [vmem:[%s3 + $0xa8] sm:$0xff]
  %v39 = vld [vmem:[%s3 + $0xb0] sm:$0xff]
  %v40 = vld [vmem:[%s3 + $0xb8] sm:$0xff]
  %v41 = vld [vmem:[%s3 + $0xc0] sm:$0xff]
  %v42 = vld [vmem:[%s3 + $0xc8] sm:$0xff]
  %v43 = vld [vmem:[%s3 + $0xd0] sm:$0xff]
  %v44 = vld [vmem:[%s3 + $0xd8] sm:$0xff]
  %v45 = vld [vmem:[%s3 + $0xe0] sm:$0xff]
  %v46 = vld [vmem:[%s3 + $0xe8] sm:$0xff]
  %v47 = vld [vmem:[%s3 + $0xf0] sm:$0xff]
  %v48 = vld [vmem:[%s3 + $0xf8] sm:$0xff]
  %v81 = vand.u32 %v17, 1
  %v82 = vand.u32 %v18, 1
  %v83 = vand.u32 %v19, 1
  %v84 = vand.u32 %v20, 1
  %v85 = vand.u32 %v21, 1
  %v86 = vand.u32 %v22, 1
  %v87 = vand.u32 %v23, 1
  %v88 = vand.u32 %v24, 1
  %v89 = vand.u32 %v25, 1
  %v90 = vand.u32 %v26, 1
  %v91 = vand.u32 %v27, 1
  %v92 = vand.u32 %v28, 1
  %v93 = vand.u32 %v29, 1
  %v94 = vand.u32 %v30, 1
  %v95 = vand.u32 %v31, 1
  %v96 = vand.u32 %v32, 1
  %v97 = vand.u32 %v33, 1
  %v98 = vand.u32 %v34, 1
  %v99 = vand.u32 %v35, 1
  %v100 = vand.u32 %v36, 1
  %v101 = vand.u32 %v37, 1
  %v102 = vand.u32 %v38, 1
  %v103 = vand.u32 %v39, 1
  %v104 = vand.u32 %v40, 1
  %v105 = vand.u32 %v41, 1
  %v106 = vand.u32 %v42, 1
  %v107 = vand.u32 %v43, 1
  %v108 = vand.u32 %v44, 1
  %v109 = vand.u32 %v45, 1
  %v110 = vand.u32 %v46, 1
  %v111 = vand.u32 %v47, 1
  %v112 = vand.u32 %v48, 1
  %vm113 = vcmp.gt.u32.totalorder %v81, 0
  %vm114 = vcmp.gt.u32.totalorder %v82, 0
  %vm115 = vcmp.gt.u32.totalorder %v83, 0
  %vm116 = vcmp.gt.u32.totalorder %v84, 0
  %vm117 = vcmp.gt.u32.totalorder %v85, 0
  %vm118 = vcmp.gt.u32.totalorder %v86, 0
  %vm119 = vcmp.gt.u32.totalorder %v87, 0
  %vm120 = vcmp.gt.u32.totalorder %v88, 0
  %vm121 = vcmp.gt.u32.totalorder %v89, 0
  %vm122 = vcmp.gt.u32.totalorder %v90, 0
  %vm123 = vcmp.gt.u32.totalorder %v91, 0
  %vm124 = vcmp.gt.u32.totalorder %v92, 0
  %vm125 = vcmp.gt.u32.totalorder %v93, 0
  %vm126 = vcmp.gt.u32.totalorder %v94, 0
  %vm127 = vcmp.gt.u32.totalorder %v95, 0
  %vm128 = vcmp.gt.u32.totalorder %v96, 0
  %vm129 = vcmp.gt.u32.totalorder %v97, 0
  %vm130 = vcmp.gt.u32.totalorder %v98, 0
  %vm131 = vcmp.gt.u32.totalorder %v99, 0
  %vm132 = vcmp.gt.u32.totalorder %v100, 0
  %vm133 = vcmp.gt.u32.totalorder %v101, 0
  %vm134 = vcmp.gt.u32.totalorder %v102, 0
  %vm135 = vcmp.gt.u32.totalorder %v103, 0
  %vm136 = vcmp.gt.u32.totalorder %v104, 0
  %vm137 = vcmp.gt.u32.totalorder %v105, 0
  %vm138 = vcmp.gt.u32.totalorder %v106, 0
  %vm139 = vcmp.gt.u32.totalorder %v107, 0
  %vm140 = vcmp.gt.u32.totalorder %v108, 0
  %vm141 = vcmp.gt.u32.totalorder %v109, 0
  %vm142 = vcmp.gt.u32.totalorder %v110, 0
  %vm143 = vcmp.gt.u32.totalorder %v111, 0
  %vm144 = vcmp.gt.u32.totalorder %v112, 0
  %v145 = vsel %vm113, 1.0, 0.0
  %v146 = vsel %vm114, 1.0, 0.0
  %v147 = vsel %vm115, 1.0, 0.0
  %v148 = vsel %vm116, 1.0, 0.0
  %v149 = vsel %vm117, 1.0, 0.0
  %v150 = vsel %vm118, 1.0, 0.0
  %v151 = vsel %vm119, 1.0, 0.0
  %v152 = vsel %vm120, 1.0, 0.0
  %v153 = vsel %vm121, 1.0, 0.0
  %v154 = vsel %vm122, 1.0, 0.0
  %v155 = vsel %vm123, 1.0, 0.0
  %v156 = vsel %vm124, 1.0, 0.0
  %v157 = vsel %vm125, 1.0, 0.0
  %v158 = vsel %vm126, 1.0, 0.0
  %v159 = vsel %vm127, 1.0, 0.0
  %v160 = vsel %vm128, 1.0, 0.0
  %v161 = vsel %vm129, 1.0, 0.0
  %v162 = vsel %vm130, 1.0, 0.0
  %v163 = vsel %vm131, 1.0, 0.0
  %v164 = vsel %vm132, 1.0, 0.0
  %v165 = vsel %vm133, 1.0, 0.0
  %v166 = vsel %vm134, 1.0, 0.0
  %v167 = vsel %vm135, 1.0, 0.0
  %v168 = vsel %vm136, 1.0, 0.0
  %v169 = vsel %vm137, 1.0, 0.0
  %v170 = vsel %vm138, 1.0, 0.0
  %v171 = vsel %vm139, 1.0, 0.0
  %v172 = vsel %vm140, 1.0, 0.0
  %v173 = vsel %vm141, 1.0, 0.0
  %v174 = vsel %vm142, 1.0, 0.0
  %v175 = vsel %vm143, 1.0, 0.0
  %v176 = vsel %vm144, 1.0, 0.0
  %v177 = vand.u32 %v17, 4294967294
  %v178 = vand.u32 %v18, 4294967294
  %v179 = vand.u32 %v19, 4294967294
  %v180 = vand.u32 %v20, 4294967294
  %v181 = vand.u32 %v21, 4294967294
  %v182 = vand.u32 %v22, 4294967294
  %v183 = vand.u32 %v23, 4294967294
  %v184 = vand.u32 %v24, 4294967294
  %v185 = vand.u32 %v25, 4294967294
  %v186 = vand.u32 %v26, 4294967294
  %v187 = vand.u32 %v27, 4294967294
  %v188 = vand.u32 %v28, 4294967294
  %v189 = vand.u32 %v29, 4294967294
  %v190 = vand.u32 %v30, 4294967294
  %v191 = vand.u32 %v31, 4294967294
  %v192 = vand.u32 %v32, 4294967294
  %v193 = vand.u32 %v33, 4294967294
  %v194 = vand.u32 %v34, 4294967294
  %v195 = vand.u32 %v35, 4294967294
  %v196 = vand.u32 %v36, 4294967294
  %v197 = vand.u32 %v37, 4294967294
  %v198 = vand.u32 %v38, 4294967294
  %v199 = vand.u32 %v39, 4294967294
  %v200 = vand.u32 %v40, 4294967294
  %v201 = vand.u32 %v41, 4294967294
  %v202 = vand.u32 %v42, 4294967294
  %v203 = vand.u32 %v43, 4294967294
  %v204 = vand.u32 %v44, 4294967294
  %v205 = vand.u32 %v45, 4294967294
  %v206 = vand.u32 %v46, 4294967294
  %v207 = vand.u32 %v47, 4294967294
  %v208 = vand.u32 %v48, 4294967294
  %v241 = vpack.c.bf16 %v147, %v145
  %v242 = vpack.c.bf16 %v148, %v146
  %v243 = vpack.c.bf16 %v151, %v149
  %v244 = vpack.c.bf16 %v152, %v150
  %v245 = vpack.c.bf16 %v155, %v153
  %v246 = vpack.c.bf16 %v156, %v154
  %v247 = vpack.c.bf16 %v159, %v157
  %v248 = vpack.c.bf16 %v160, %v158
  %v249 = vpack.c.bf16 %v163, %v161
  %v250 = vpack.c.bf16 %v164, %v162
  %v251 = vpack.c.bf16 %v167, %v165
  %v252 = vpack.c.bf16 %v168, %v166
  %v253 = vpack.c.bf16 %v171, %v169
  %v254 = vpack.c.bf16 %v172, %v170
  %v255 = vpack.c.bf16 %v175, %v173
  %v256 = vpack.c.bf16 %v176, %v174
  %v257 = vld [vmem:[%s2] sm:$0xff]
  %v258 = vld [vmem:[%s2 + $0x8] sm:$0xff]
  %v259 = vld [vmem:[%s2 + $0x10] sm:$0xff]
  %v260 = vld [vmem:[%s2 + $0x18] sm:$0xff]
  %v261 = vld [vmem:[%s2 + $0x20] sm:$0xff]
  %v262 = vld [vmem:[%s2 + $0x28] sm:$0xff]
  %v263 = vld [vmem:[%s2 + $0x30] sm:$0xff]
  %v264 = vld [vmem:[%s2 + $0x38] sm:$0xff]
  %v265 = vld [vmem:[%s2 + $0x40] sm:$0xff]
  %v266 = vld [vmem:[%s2 + $0x48] sm:$0xff]
  %v267 = vld [vmem:[%s2 + $0x50] sm:$0xff]
  %v268 = vld [vmem:[%s2 + $0x58] sm:$0xff]
  %v269 = vld [vmem:[%s2 + $0x60] sm:$0xff]
  %v270 = vld [vmem:[%s2 + $0x68] sm:$0xff]
  %v271 = vld [vmem:[%s2 + $0x70] sm:$0xff]
  %v272 = vld [vmem:[%s2 + $0x78] sm:$0xff]
  %v273 = vld [vmem:[%s2 + $0x80] sm:$0xff]
  %v274 = vld [vmem:[%s2 + $0x88] sm:$0xff]
  %v275 = vld [vmem:[%s2 + $0x90] sm:$0xff]
  %v276 = vld [vmem:[%s2 + $0x98] sm:$0xff]
  %v277 = vld [vmem:[%s2 + $0xa0] sm:$0xff]
  %v278 = vld [vmem:[%s2 + $0xa8] sm:$0xff]
  %v279 = vld [vmem:[%s2 + $0xb0] sm:$0xff]
  %v280 = vld [vmem:[%s2 + $0xb8] sm:$0xff]
  %v281 = vld [vmem:[%s2 + $0xc0] sm:$0xff]
  %v282 = vld [vmem:[%s2 + $0xc8] sm:$0xff]
  %v283 = vld [vmem:[%s2 + $0xd0] sm:$0xff]
  %v284 = vld [vmem:[%s2 + $0xd8] sm:$0xff]
  %v285 = vld [vmem:[%s2 + $0xe0] sm:$0xff]
  %v286 = vld [vmem:[%s2 + $0xe8] sm:$0xff]
  %v287 = vld [vmem:[%s2 + $0xf0] sm:$0xff]
  %v288 = vld [vmem:[%s2 + $0xf8] sm:$0xff]
  %v321 = vunpack.c.l.b16 %v257
  %v322 = vunpack.c.h.b16 %v257
  %v323 = vunpack.c.l.b16 %v258
  %v324 = vunpack.c.h.b16 %v258
  %v325 = vunpack.c.l.b16 %v259
  %v326 = vunpack.c.h.b16 %v259
  %v327 = vunpack.c.l.b16 %v260
  %v328 = vunpack.c.h.b16 %v260
  %v329 = vunpack.c.l.b16 %v261
  %v330 = vunpack.c.h.b16 %v261
  %v331 = vunpack.c.l.b16 %v262
  %v332 = vunpack.c.h.b16 %v262
  %v333 = vunpack.c.l.b16 %v263
  %v334 = vunpack.c.h.b16 %v263
  %v335 = vunpack.c.l.b16 %v264
  %v336 = vunpack.c.h.b16 %v264
  %v337 = vunpack.c.l.b16 %v265
  %v338 = vunpack.c.h.b16 %v265
  %v339 = vunpack.c.l.b16 %v266
  %v340 = vunpack.c.h.b16 %v266
  %v341 = vunpack.c.l.b16 %v267
  %v342 = vunpack.c.h.b16 %v267
  %v343 = vunpack.c.l.b16 %v268
  %v344 = vunpack.c.h.b16 %v268
  %v345 = vunpack.c.l.b16 %v269
  %v346 = vunpack.c.h.b16 %v269
  %v347 = vunpack.c.l.b16 %v270
  %v348 = vunpack.c.h.b16 %v270
  %v349 = vunpack.c.l.b16 %v271
  %v350 = vunpack.c.h.b16 %v271
  %v351 = vunpack.c.l.b16 %v272
  %v352 = vunpack.c.h.b16 %v272
  %v353 = vunpack.c.l.b16 %v273
  %v354 = vunpack.c.h.b16 %v273
  %v355 = vunpack.c.l.b16 %v274
  %v356 = vunpack.c.h.b16 %v274
  %v357 = vunpack.c.l.b16 %v275
  %v358 = vunpack.c.h.b16 %v275
  %v359 = vunpack.c.l.b16 %v276
  %v360 = vunpack.c.h.b16 %v276
  %v361 = vunpack.c.l.b16 %v277
  %v362 = vunpack.c.h.b16 %v277
  %v363 = vunpack.c.l.b16 %v278
  %v364 = vunpack.c.h.b16 %v278
  %v365 = vunpack.c.l.b16 %v279
  %v366 = vunpack.c.h.b16 %v279
  %v367 = vunpack.c.l.b16 %v280
  %v368 = vunpack.c.h.b16 %v280
  %v369 = vunpack.c.l.b16 %v281
  %v370 = vunpack.c.h.b16 %v281
  %v371 = vunpack.c.l.b16 %v282
  %v372 = vunpack.c.h.b16 %v282
  %v373 = vunpack.c.l.b16 %v283
  %v374 = vunpack.c.h.b16 %v283
  %v375 = vunpack.c.l.b16 %v284
  %v376 = vunpack.c.h.b16 %v284
  %v377 = vunpack.c.l.b16 %v285
  %v378 = vunpack.c.h.b16 %v285
  %v379 = vunpack.c.l.b16 %v286
  %v380 = vunpack.c.h.b16 %v286
  %v381 = vunpack.c.l.b16 %v287
  %v382 = vunpack.c.h.b16 %v287
  %v383 = vunpack.c.l.b16 %v288
  %v384 = vunpack.c.h.b16 %v288
  %v385 = vpack.c.b16 %v323, %v321
  %v386 = vpack.c.b16 %v324, %v322
  %v387 = vpack.c.b16 %v327, %v325
  %v388 = vpack.c.b16 %v328, %v326
  %v389 = vpack.c.b16 %v331, %v329
  %v390 = vpack.c.b16 %v332, %v330
  %v391 = vpack.c.b16 %v335, %v333
  %v392 = vpack.c.b16 %v336, %v334
  %v393 = vpack.c.b16 %v339, %v337
  %v394 = vpack.c.b16 %v340, %v338
  %v395 = vpack.c.b16 %v343, %v341
  %v396 = vpack.c.b16 %v344, %v342
  %v397 = vpack.c.b16 %v347, %v345
  %v398 = vpack.c.b16 %v348, %v346
  %v399 = vpack.c.b16 %v351, %v349
  %v400 = vpack.c.b16 %v352, %v350
  %v401 = vpack.c.b16 %v355, %v353
  %v402 = vpack.c.b16 %v356, %v354
  %v403 = vpack.c.b16 %v359, %v357
  %v404 = vpack.c.b16 %v360, %v358
  %v405 = vpack.c.b16 %v363, %v361
  %v406 = vpack.c.b16 %v364, %v362
  %v407 = vpack.c.b16 %v367, %v365
  %v408 = vpack.c.b16 %v368, %v366
  %v409 = vpack.c.b16 %v371, %v369
  %v410 = vpack.c.b16 %v372, %v370
  %v411 = vpack.c.b16 %v375, %v373
  %v412 = vpack.c.b16 %v376, %v374
  %v413 = vpack.c.b16 %v379, %v377
  %v414 = vpack.c.b16 %v380, %v378
  %v415 = vpack.c.b16 %v383, %v381
  %v416 = vpack.c.b16 %v384, %v382
  %449 = vmatprep.subr.bf16.mxu0 %v386
  %450 = vmatpush1.bf16.msra.mxu0 %v385
  %451 = vmatprep.subr.bf16.mxu0 %v388
  %452 = vmatpush1.bf16.msra.mxu0 %v387
  %453 = vmatprep.subr.bf16.mxu0 %v390
  %454 = vmatpush1.bf16.msra.mxu0 %v389
  %455 = vmatprep.subr.bf16.mxu0 %v392
  %456 = vmatpush1.bf16.msra.mxu0 %v391
  %457 = vmatprep.subr.bf16.mxu0 %v394
  %458 = vmatpush1.bf16.msra.mxu0 %v393
  %459 = vmatprep.subr.bf16.mxu0 %v396
  %460 = vmatpush1.bf16.msra.mxu0 %v395
  %461 = vmatprep.subr.bf16.mxu0 %v398
  %462 = vmatpush1.bf16.msra.mxu0 %v397
  %463 = vmatprep.subr.bf16.mxu0 %v400
  %464 = vmatpush1.bf16.msra.mxu0 %v399
  %465 = vmatprep.subr.bf16.mxu0 %v402
  %466 = vmatpush1.bf16.msra.mxu0 %v401
  %467 = vmatprep.subr.bf16.mxu0 %v404
  %468 = vmatpush1.bf16.msra.mxu0 %v403
  %469 = vmatprep.subr.bf16.mxu0 %v406
  %470 = vmatpush1.bf16.msra.mxu0 %v405
  %471 = vmatprep.subr.bf16.mxu0 %v408
  %472 = vmatpush1.bf16.msra.mxu0 %v407
  %473 = vmatprep.subr.bf16.mxu0 %v410
  %474 = vmatpush1.bf16.msra.mxu0 %v409
  %475 = vmatprep.subr.bf16.mxu0 %v412
  %476 = vmatpush1.bf16.msra.mxu0 %v411
  %477 = vmatprep.subr.bf16.mxu0 %v414
  %478 = vmatpush1.bf16.msra.mxu0 %v413
  %479 = vmatprep.subr.bf16.mxu0 %v416
  %480 = vmatpush1.bf16.msra.mxu0 %v415
  %481 = vmatprep.mubr.bf16.mxu0 %v242
  %482 = vmatmul.mubr.bf16.gmra.mrb[0].mxu0 %v241
  %v483 = vpop.f32.mrb[0].mxu0
  %v484 = vadd.f32 0.0, %v483
  %v485 = vpop.f32.mrb[0].mxu0
  %v486 = vadd.f32 0.0, %v485
  %v487 = vpop.f32.mrb[0].mxu0
  %v488 = vadd.f32 0.0, %v487
  %v489 = vpop.f32.mrb[0].mxu0
  %v490 = vadd.f32 0.0, %v489
  %491 = vmatprep.mubr.bf16.mxu0 %v244
  %492 = vmatmul.mubr.bf16.gmra.mrb[0].mxu0 %v243
  %v493 = vpop.f32.mrb[0].mxu0
  %v494 = vadd.f32 0.0, %v493
  %v495 = vpop.f32.mrb[0].mxu0
  %v496 = vadd.f32 0.0, %v495
  %v497 = vpop.f32.mrb[0].mxu0
  %v498 = vadd.f32 0.0, %v497
  %v499 = vpop.f32.mrb[0].mxu0
  %v500 = vadd.f32 0.0, %v499
  %501 = vmatprep.mubr.bf16.mxu0 %v246
  %502 = vmatmul.mubr.bf16.gmra.mrb[0].mxu0 %v245
  %v503 = vpop.f32.mrb[0].mxu0
  %v504 = vadd.f32 0.0, %v503
  %v505 = vpop.f32.mrb[0].mxu0
  %v506 = vadd.f32 0.0, %v505
  %v507 = vpop.f32.mrb[0].mxu0
  %v508 = vadd.f32 0.0, %v507
  %v509 = vpop.f32.mrb[0].mxu0
  %v510 = vadd.f32 0.0, %v509
  %511 = vmatprep.mubr.bf16.mxu0 %v248
  %512 = vmatmul.mubr.bf16.gmra.mrb[0].mxu0 %v247
  %v513 = vpop.f32.mrb[0].mxu0
  %v514 = vadd.f32 0.0, %v513
  %v515 = vpop.f32.mrb[0].mxu0
  %v516 = vadd.f32 0.0, %v515
  %v517 = vpop.f32.mrb[0].mxu0
  %v518 = vadd.f32 0.0, %v517
  %v519 = vpop.f32.mrb[0].mxu0
  %v520 = vadd.f32 0.0, %v519
  %521 = vmatprep.mubr.bf16.mxu0 %v250
  %522 = vmatmul.mubr.bf16.gmra.mrb[0].mxu0 %v249
  %v523 = vpop.f32.mrb[0].mxu0
  %v524 = vadd.f32 0.0, %v523
  %v525 = vpop.f32.mrb[0].mxu0
  %v526 = vadd.f32 0.0, %v525
  %v527 = vpop.f32.mrb[0].mxu0
  %v528 = vadd.f32 0.0, %v527
  %v529 = vpop.f32.mrb[0].mxu0
  %v530 = vadd.f32 0.0, %v529
  %531 = vmatprep.mubr.bf16.mxu0 %v252
  %532 = vmatmul.mubr.bf16.gmra.mrb[0].mxu0 %v251
  %v533 = vpop.f32.mrb[0].mxu0
  %v534 = vadd.f32 0.0, %v533
  %v535 = vpop.f32.mrb[0].mxu0
  %v536 = vadd.f32 0.0, %v535
  %v537 = vpop.f32.mrb[0].mxu0
  %v538 = vadd.f32 0.0, %v537
  %v539 = vpop.f32.mrb[0].mxu0
  %v540 = vadd.f32 0.0, %v539
  %541 = vmatprep.mubr.bf16.mxu0 %v254
  %542 = vmatmul.mubr.bf16.gmra.mrb[0].mxu0 %v253
  %v543 = vpop.f32.mrb[0].mxu0
  %v544 = vadd.f32 0.0, %v543
  %v545 = vpop.f32.mrb[0].mxu0
  %v546 = vadd.f32 0.0, %v545
  %v547 = vpop.f32.mrb[0].mxu0
  %v548 = vadd.f32 0.0, %v547
  %v549 = vpop.f32.mrb[0].mxu0
  %v550 = vadd.f32 0.0, %v549
  %551 = vmatprep.mubr.bf16.mxu0 %v256
  %552 = vmatmul.mubr.bf16.gmra.mrb[0].mxu0 %v255
  %v553 = vpop.f32.mrb[0].mxu0
  %v554 = vadd.f32 0.0, %v553
  %v555 = vpop.f32.mrb[0].mxu0
  %v556 = vadd.f32 0.0, %v555
  %v557 = vpop.f32.mrb[0].mxu0
  %v558 = vadd.f32 0.0, %v557
  %v559 = vpop.f32.mrb[0].mxu0
  %v560 = vadd.f32 0.0, %v559
  %561 = vdwg.mxu0
  %v562 = vld [vmem:[%s0] sm:$0xff]
  %v563 = vld [vmem:[%s0 + $0x8] sm:$0xff]
  %v564 = vld [vmem:[%s0 + $0x10] sm:$0xff]
  %v565 = vld [vmem:[%s0 + $0x18] sm:$0xff]
  %v566 = vld [vmem:[%s0 + $0x20] sm:$0xff]
  %v567 = vld [vmem:[%s0 + $0x28] sm:$0xff]
  %v568 = vld [vmem:[%s0 + $0x30] sm:$0xff]
  %v569 = vld [vmem:[%s0 + $0x38] sm:$0xff]
  %v570 = vld [vmem:[%s0 + $0x40] sm:$0xff]
  %v571 = vld [vmem:[%s0 + $0x48] sm:$0xff]
  %v572 = vld [vmem:[%s0 + $0x50] sm:$0xff]
  %v573 = vld [vmem:[%s0 + $0x58] sm:$0xff]
  %v574 = vld [vmem:[%s0 + $0x60] sm:$0xff]
  %v575 = vld [vmem:[%s0 + $0x68] sm:$0xff]
  %v576 = vld [vmem:[%s0 + $0x70] sm:$0xff]
  %v577 = vld [vmem:[%s0 + $0x78] sm:$0xff]
  %579 = vset.pattern.permute.xlu0 0
  %580 = vperm.xlu0 %579, %v562
  %v581 = vpop.permute.xlu0 %580
  %584 = vset.pattern.permute.xlu0 0
  %585 = vperm.xlu0 %584, %v563
  %v586 = vpop.permute.xlu0 %585
  %589 = vset.pattern.permute.xlu0 0
  %590 = vperm.xlu0 %589, %v564
  %v591 = vpop.permute.xlu0 %590
  %594 = vset.pattern.permute.xlu0 0
  %595 = vperm.xlu0 %594, %v565
  %v596 = vpop.permute.xlu0 %595
  %599 = vset.pattern.permute.xlu0 0
  %600 = vperm.xlu0 %599, %v566
  %v601 = vpop.permute.xlu0 %600
  %604 = vset.pattern.permute.xlu0 0
  %605 = vperm.xlu0 %604, %v567
  %v606 = vpop.permute.xlu0 %605
  %609 = vset.pattern.permute.xlu0 0
  %610 = vperm.xlu0 %609, %v568
  %v611 = vpop.permute.xlu0 %610
  %614 = vset.pattern.permute.xlu0 0
  %615 = vperm.xlu0 %614, %v569
  %v616 = vpop.permute.xlu0 %615
  %619 = vset.pattern.permute.xlu0 0
  %620 = vperm.xlu0 %619, %v570
  %v621 = vpop.permute.xlu0 %620
  %624 = vset.pattern.permute.xlu0 0
  %625 = vperm.xlu0 %624, %v571
  %v626 = vpop.permute.xlu0 %625
  %629 = vset.pattern.permute.xlu0 0
  %630 = vperm.xlu0 %629, %v572
  %v631 = vpop.permute.xlu0 %630
  %634 = vset.pattern.permute.xlu0 0
  %635 = vperm.xlu0 %634, %v573
  %v636 = vpop.permute.xlu0 %635
  %639 = vset.pattern.permute.xlu0 0
  %640 = vperm.xlu0 %639, %v574
  %v641 = vpop.permute.xlu0 %640
  %644 = vset.pattern.permute.xlu0 0
  %645 = vperm.xlu0 %644, %v575
  %v646 = vpop.permute.xlu0 %645
  %649 = vset.pattern.permute.xlu0 0
  %650 = vperm.xlu0 %649, %v576
  %v651 = vpop.permute.xlu0 %650
  %654 = vset.pattern.permute.xlu0 0
  %655 = vperm.xlu0 %654, %v577
  %v656 = vpop.permute.xlu0 %655
  %v658 = vadd.f32 %v581, %v484
  %v659 = vadd.f32 %v581, %v486
  %v660 = vadd.f32 %v586, %v488
  %v661 = vadd.f32 %v586, %v490
  %v662 = vadd.f32 %v591, %v494
  %v663 = vadd.f32 %v591, %v496
  %v664 = vadd.f32 %v596, %v498
  %v665 = vadd.f32 %v596, %v500
  %v666 = vadd.f32 %v601, %v504
  %v667 = vadd.f32 %v601, %v506
  %v668 = vadd.f32 %v606, %v508
  %v669 = vadd.f32 %v606, %v510
  %v670 = vadd.f32 %v611, %v514
  %v671 = vadd.f32 %v611, %v516
  %v672 = vadd.f32 %v616, %v518
  %v673 = vadd.f32 %v616, %v520
  %v674 = vadd.f32 %v621, %v524
  %v675 = vadd.f32 %v621, %v526
  %v676 = vadd.f32 %v626, %v528
  %v677 = vadd.f32 %v626, %v530
  %v678 = vadd.f32 %v631, %v534
  %v679 = vadd.f32 %v631, %v536
  %v680 = vadd.f32 %v636, %v538
  %v681 = vadd.f32 %v636, %v540
  %v682 = vadd.f32 %v641, %v544
  %v683 = vadd.f32 %v641, %v546
  %v684 = vadd.f32 %v646, %v548
  %v685 = vadd.f32 %v646, %v550
  %v686 = vadd.f32 %v651, %v554
  %v687 = vadd.f32 %v651, %v556
  %v688 = vadd.f32 %v656, %v558
  %v689 = vadd.f32 %v656, %v560
  %v690 = vld [vmem:[%s1] sm:$0xff]
  %v691 = vld [vmem:[%s1 + $0x8] sm:$0xff]
  %v692 = vld [vmem:[%s1 + $0x10] sm:$0xff]
  %v693 = vld [vmem:[%s1 + $0x18] sm:$0xff]
  %v694 = vld [vmem:[%s1 + $0x20] sm:$0xff]
  %v695 = vld [vmem:[%s1 + $0x28] sm:$0xff]
  %v696 = vld [vmem:[%s1 + $0x30] sm:$0xff]
  %v697 = vld [vmem:[%s1 + $0x38] sm:$0xff]
  %v698 = vld [vmem:[%s1 + $0x40] sm:$0xff]
  %v699 = vld [vmem:[%s1 + $0x48] sm:$0xff]
  %v700 = vld [vmem:[%s1 + $0x50] sm:$0xff]
  %v701 = vld [vmem:[%s1 + $0x58] sm:$0xff]
  %v702 = vld [vmem:[%s1 + $0x60] sm:$0xff]
  %v703 = vld [vmem:[%s1 + $0x68] sm:$0xff]
  %v704 = vld [vmem:[%s1 + $0x70] sm:$0xff]
  %v705 = vld [vmem:[%s1 + $0x78] sm:$0xff]
  %v706 = vlaneseq
  %v707 = vshrl.u32 %v706, 7
  %v708 = vadd.s32 %v707, 8
  %v709 = vadd.s32 %v707, 16
  %v710 = vadd.s32 %v707, 24
  %v711 = vadd.s32 %v707, 32
  %v712 = vadd.s32 %v707, 40
  %v713 = vadd.s32 %v707, 48
  %v714 = vadd.s32 %v707, 56
  %v715 = vadd.s32 %v707, 64
  %v716 = vadd.s32 %v707, 72
  %v717 = vadd.s32 %v707, 80
  %v718 = vadd.s32 %v707, 88
  %v719 = vadd.s32 %v707, 96
  %v720 = vadd.s32 %v707, 104
  %v721 = vadd.s32 %v707, 112
  %v722 = vadd.s32 %v707, 120
  %v723 = vlaneseq
  %v724 = vand.u32 %v723, 127
  %v725 = vadd.s32 %v724, 128
  %v726 = vand.u32 %v707, 31
  %v727 = vand.u32 %v708, 31
  %v728 = vand.u32 %v709, 31
  %v729 = vand.u32 %v710, 31
  %v730 = vand.u32 %v711, 31
  %v731 = vand.u32 %v712, 31
  %v732 = vand.u32 %v713, 31
  %v733 = vand.u32 %v714, 31
  %v734 = vand.u32 %v715, 31
  %v735 = vand.u32 %v716, 31
  %v736 = vand.u32 %v717, 31
  %v737 = vand.u32 %v718, 31
  %v738 = vand.u32 %v719, 31
  %v739 = vand.u32 %v720, 31
  %v740 = vand.u32 %v721, 31
  %v741 = vand.u32 %v722, 31
  %v742 = vmul.u32 %v726, 256
  %v743 = vmul.u32 %v727, 256
  %v744 = vmul.u32 %v728, 256
  %v745 = vmul.u32 %v729, 256
  %v746 = vmul.u32 %v730, 256
  %v747 = vmul.u32 %v731, 256
  %v748 = vmul.u32 %v732, 256
  %v749 = vmul.u32 %v733, 256
  %v750 = vmul.u32 %v734, 256
  %v751 = vmul.u32 %v735, 256
  %v752 = vmul.u32 %v736, 256
  %v753 = vmul.u32 %v737, 256
  %v754 = vmul.u32 %v738, 256
  %v755 = vmul.u32 %v739, 256
  %v756 = vmul.u32 %v740, 256
  %v757 = vmul.u32 %v741, 256
  %v758 = vadd.s32 %v742, %v724
  %v759 = vadd.s32 %v742, %v725
  %v760 = vadd.s32 %v743, %v724
  %v761 = vadd.s32 %v743, %v725
  %v762 = vadd.s32 %v744, %v724
  %v763 = vadd.s32 %v744, %v725
  %v764 = vadd.s32 %v745, %v724
  %v765 = vadd.s32 %v745, %v725
  %v766 = vadd.s32 %v746, %v724
  %v767 = vadd.s32 %v746, %v725
  %v768 = vadd.s32 %v747, %v724
  %v769 = vadd.s32 %v747, %v725
  %v770 = vadd.s32 %v748, %v724
  %v771 = vadd.s32 %v748, %v725
  %v772 = vadd.s32 %v749, %v724
  %v773 = vadd.s32 %v749, %v725
  %v774 = vadd.s32 %v750, %v724
  %v775 = vadd.s32 %v750, %v725
  %v776 = vadd.s32 %v751, %v724
  %v777 = vadd.s32 %v751, %v725
  %v778 = vadd.s32 %v752, %v724
  %v779 = vadd.s32 %v752, %v725
  %v780 = vadd.s32 %v753, %v724
  %v781 = vadd.s32 %v753, %v725
  %v782 = vadd.s32 %v754, %v724
  %v783 = vadd.s32 %v754, %v725
  %v784 = vadd.s32 %v755, %v724
  %v785 = vadd.s32 %v755, %v725
  %v786 = vadd.s32 %v756, %v724
  %v787 = vadd.s32 %v756, %v725
  %v788 = vadd.s32 %v757, %v724
  %v789 = vadd.s32 %v757, %v725
  %v790 = vadd.s32 %v758, 1
  %v791 = vadd.s32 %v759, 1
  %v792 = vadd.s32 %v760, 1
  %v793 = vadd.s32 %v761, 1
  %v794 = vadd.s32 %v762, 1
  %v795 = vadd.s32 %v763, 1
  %v796 = vadd.s32 %v764, 1
  %v797 = vadd.s32 %v765, 1
  %v798 = vadd.s32 %v766, 1
  %v799 = vadd.s32 %v767, 1
  %v800 = vadd.s32 %v768, 1
  %v801 = vadd.s32 %v769, 1
  %v802 = vadd.s32 %v770, 1
  %v803 = vadd.s32 %v771, 1
  %v804 = vadd.s32 %v772, 1
  %v805 = vadd.s32 %v773, 1
  %v806 = vadd.s32 %v774, 1
  %v807 = vadd.s32 %v775, 1
  %v808 = vadd.s32 %v776, 1
  %v809 = vadd.s32 %v777, 1
  %v810 = vadd.s32 %v778, 1
  %v811 = vadd.s32 %v779, 1
  %v812 = vadd.s32 %v780, 1
  %v813 = vadd.s32 %v781, 1
  %v814 = vadd.s32 %v782, 1
  %v815 = vadd.s32 %v783, 1
  %v816 = vadd.s32 %v784, 1
  %v817 = vadd.s32 %v785, 1
  %v818 = vadd.s32 %v786, 1
  %v819 = vadd.s32 %v787, 1
  %v820 = vadd.s32 %v788, 1
  %v821 = vadd.s32 %v789, 1
  %s822 = smul.u32 0, 8192
  %v823 = vstv %s822
  %v824 = vadd.s32 %v790, %v823
  %v825 = vadd.s32 %v791, %v823
  %v826 = vadd.s32 %v792, %v823
  %v827 = vadd.s32 %v793, %v823
  %v828 = vadd.s32 %v794, %v823
  %v829 = vadd.s32 %v795, %v823
  %v830 = vadd.s32 %v796, %v823
  %v831 = vadd.s32 %v797, %v823
  %v832 = vadd.s32 %v798, %v823
  %v833 = vadd.s32 %v799, %v823
  %v834 = vadd.s32 %v800, %v823
  %v835 = vadd.s32 %v801, %v823
  %v836 = vadd.s32 %v802, %v823
  %v837 = vadd.s32 %v803, %v823
  %v838 = vadd.s32 %v804, %v823
  %v839 = vadd.s32 %v805, %v823
  %v840 = vadd.s32 %v806, %v823
  %v841 = vadd.s32 %v807, %v823
  %v842 = vadd.s32 %v808, %v823
  %v843 = vadd.s32 %v809, %v823
  %v844 = vadd.s32 %v810, %v823
  %v845 = vadd.s32 %v811, %v823
  %v846 = vadd.s32 %v812, %v823
  %v847 = vadd.s32 %v813, %v823
  %v848 = vadd.s32 %v814, %v823
  %v849 = vadd.s32 %v815, %v823
  %v850 = vadd.s32 %v816, %v823
  %v851 = vadd.s32 %v817, %v823
  %v852 = vadd.s32 %v818, %v823
  %v853 = vadd.s32 %v819, %v823
  %v854 = vadd.s32 %v820, %v823
  %v855 = vadd.s32 %v821, %v823
  %v856 = vcvt.s32.f32 %v824
  %v857 = vcvt.s32.f32 %v825
  %v858 = vcvt.s32.f32 %v826
  %v859 = vcvt.s32.f32 %v827
  %v860 = vcvt.s32.f32 %v828
  %v861 = vcvt.s32.f32 %v829
  %v862 = vcvt.s32.f32 %v830
  %v863 = vcvt.s32.f32 %v831
  %v864 = vcvt.s32.f32 %v832
  %v865 = vcvt.s32.f32 %v833
  %v866 = vcvt.s32.f32 %v834
  %v867 = vcvt.s32.f32 %v835
  %v868 = vcvt.s32.f32 %v836
  %v869 = vcvt.s32.f32 %v837
  %v870 = vcvt.s32.f32 %v838
  %v871 = vcvt.s32.f32 %v839
  %v872 = vcvt.s32.f32 %v840
  %v873 = vcvt.s32.f32 %v841
  %v874 = vcvt.s32.f32 %v842
  %v875 = vcvt.s32.f32 %v843
  %v876 = vcvt.s32.f32 %v844
  %v877 = vcvt.s32.f32 %v845
  %v878 = vcvt.s32.f32 %v846
  %v879 = vcvt.s32.f32 %v847
  %v880 = vcvt.s32.f32 %v848
  %v881 = vcvt.s32.f32 %v849
  %v882 = vcvt.s32.f32 %v850
  %v883 = vcvt.s32.f32 %v851
  %v884 = vcvt.s32.f32 %v852
  %v885 = vcvt.s32.f32 %v853
  %v886 = vcvt.s32.f32 %v854
  %v887 = vcvt.s32.f32 %v855
  %v888 = vsub.f32 %v856, %v658
  %v889 = vsub.f32 %v857, %v659
  %v890 = vsub.f32 %v858, %v660
  %v891 = vsub.f32 %v859, %v661
  %v892 = vsub.f32 %v860, %v662
  %v893 = vsub.f32 %v861, %v663
  %v894 = vsub.f32 %v862, %v664
  %v895 = vsub.f32 %v863, %v665
  %v896 = vsub.f32 %v864, %v666
  %v897 = vsub.f32 %v865, %v667
  %v898 = vsub.f32 %v866, %v668
  %v899 = vsub.f32 %v867, %v669
  %v900 = vsub.f32 %v868, %v670
  %v901 = vsub.f32 %v869, %v671
  %v902 = vsub.f32 %v870, %v672
  %v903 = vsub.f32 %v871, %v673
  %v904 = vsub.f32 %v872, %v674
  %v905 = vsub.f32 %v873, %v675
  %v906 = vsub.f32 %v874, %v676
  %v907 = vsub.f32 %v875, %v677
  %v908 = vsub.f32 %v876, %v678
  %v909 = vsub.f32 %v877, %v679
  %v910 = vsub.f32 %v878, %v680
  %v911 = vsub.f32 %v879, %v681
  %v912 = vsub.f32 %v880, %v682
  %v913 = vsub.f32 %v881, %v683
  %v914 = vsub.f32 %v882, %v684
  %v915 = vsub.f32 %v883, %v685
  %v916 = vsub.f32 %v884, %v686
  %v917 = vsub.f32 %v885, %v687
  %v918 = vsub.f32 %v886, %v688
  %v919 = vsub.f32 %v887, %v689
  %921 = vset.pattern.permute.xlu0 0
  %922 = vperm.xlu0 %921, %v690
  %v923 = vpop.permute.xlu0 %922
  %926 = vset.pattern.permute.xlu0 0
  %927 = vperm.xlu0 %926, %v691
  %v928 = vpop.permute.xlu0 %927
  %931 = vset.pattern.permute.xlu0 0
  %932 = vperm.xlu0 %931, %v692
  %v933 = vpop.permute.xlu0 %932
  %936 = vset.pattern.permute.xlu0 0
  %937 = vperm.xlu0 %936, %v693
  %v938 = vpop.permute.xlu0 %937
  %941 = vset.pattern.permute.xlu0 0
  %942 = vperm.xlu0 %941, %v694
  %v943 = vpop.permute.xlu0 %942
  %946 = vset.pattern.permute.xlu0 0
  %947 = vperm.xlu0 %946, %v695
  %v948 = vpop.permute.xlu0 %947
  %951 = vset.pattern.permute.xlu0 0
  %952 = vperm.xlu0 %951, %v696
  %v953 = vpop.permute.xlu0 %952
  %956 = vset.pattern.permute.xlu0 0
  %957 = vperm.xlu0 %956, %v697
  %v958 = vpop.permute.xlu0 %957
  %961 = vset.pattern.permute.xlu0 0
  %962 = vperm.xlu0 %961, %v698
  %v963 = vpop.permute.xlu0 %962
  %966 = vset.pattern.permute.xlu0 0
  %967 = vperm.xlu0 %966, %v699
  %v968 = vpop.permute.xlu0 %967
  %971 = vset.pattern.permute.xlu0 0
  %972 = vperm.xlu0 %971, %v700
  %v973 = vpop.permute.xlu0 %972
  %976 = vset.pattern.permute.xlu0 0
  %977 = vperm.xlu0 %976, %v701
  %v978 = vpop.permute.xlu0 %977
  %981 = vset.pattern.permute.xlu0 0
  %982 = vperm.xlu0 %981, %v702
  %v983 = vpop.permute.xlu0 %982
  %986 = vset.pattern.permute.xlu0 0
  %987 = vperm.xlu0 %986, %v703
  %v988 = vpop.permute.xlu0 %987
  %991 = vset.pattern.permute.xlu0 0
  %992 = vperm.xlu0 %991, %v704
  %v993 = vpop.permute.xlu0 %992
  %996 = vset.pattern.permute.xlu0 0
  %997 = vperm.xlu0 %996, %v705
  %v998 = vpop.permute.xlu0 %997
  %v1000 = vadd.f32 %v923, %v888
  %v1001 = vadd.f32 %v923, %v889
  %v1002 = vadd.f32 %v928, %v890
  %v1003 = vadd.f32 %v928, %v891
  %v1004 = vadd.f32 %v933, %v892
  %v1005 = vadd.f32 %v933, %v893
  %v1006 = vadd.f32 %v938, %v894
  %v1007 = vadd.f32 %v938, %v895
  %v1008 = vadd.f32 %v943, %v896
  %v1009 = vadd.f32 %v943, %v897
  %v1010 = vadd.f32 %v948, %v898
  %v1011 = vadd.f32 %v948, %v899
  %v1012 = vadd.f32 %v953, %v900
  %v1013 = vadd.f32 %v953, %v901
  %v1014 = vadd.f32 %v958, %v902
  %v1015 = vadd.f32 %v958, %v903
  %v1016 = vadd.f32 %v963, %v904
  %v1017 = vadd.f32 %v963, %v905
  %v1018 = vadd.f32 %v968, %v906
  %v1019 = vadd.f32 %v968, %v907
  %v1020 = vadd.f32 %v973, %v908
  %v1021 = vadd.f32 %v973, %v909
  %v1022 = vadd.f32 %v978, %v910
  %v1023 = vadd.f32 %v978, %v911
  %v1024 = vadd.f32 %v983, %v912
  %v1025 = vadd.f32 %v983, %v913
  %v1026 = vadd.f32 %v988, %v914
  %v1027 = vadd.f32 %v988, %v915
  %v1028 = vadd.f32 %v993, %v916
  %v1029 = vadd.f32 %v993, %v917
  %v1030 = vadd.f32 %v998, %v918
  %v1031 = vadd.f32 %v998, %v919
  %v1032 = vsub.f32 %v923, %v658
  %v1033 = vsub.f32 %v923, %v659
  %v1034 = vsub.f32 %v928, %v660
  %v1035 = vsub.f32 %v928, %v661
  %v1036 = vsub.f32 %v933, %v662
  %v1037 = vsub.f32 %v933, %v663
  %v1038 = vsub.f32 %v938, %v664
  %v1039 = vsub.f32 %v938, %v665
  %v1040 = vsub.f32 %v943, %v666
  %v1041 = vsub.f32 %v943, %v667
  %v1042 = vsub.f32 %v948, %v668
  %v1043 = vsub.f32 %v948, %v669
  %v1044 = vsub.f32 %v953, %v670
  %v1045 = vsub.f32 %v953, %v671
  %v1046 = vsub.f32 %v958, %v672
  %v1047 = vsub.f32 %v958, %v673
  %v1048 = vsub.f32 %v963, %v674
  %v1049 = vsub.f32 %v963, %v675
  %v1050 = vsub.f32 %v968, %v676
  %v1051 = vsub.f32 %v968, %v677
  %v1052 = vsub.f32 %v973, %v678
  %v1053 = vsub.f32 %v973, %v679
  %v1054 = vsub.f32 %v978, %v680
  %v1055 = vsub.f32 %v978, %v681
  %v1056 = vsub.f32 %v983, %v682
  %v1057 = vsub.f32 %v983, %v683
  %v1058 = vsub.f32 %v988, %v684
  %v1059 = vsub.f32 %v988, %v685
  %v1060 = vsub.f32 %v993, %v686
  %v1061 = vsub.f32 %v993, %v687
  %v1062 = vsub.f32 %v998, %v688
  %v1063 = vsub.f32 %v998, %v689
  %v1064 = vrcp.pop %v1000
  %v1065 = vrcp.pop %v1001
  %v1066 = vrcp.pop %v1002
  %v1067 = vrcp.pop %v1003
  %v1068 = vrcp.pop %v1004
  %v1069 = vrcp.pop %v1005
  %v1070 = vrcp.pop %v1006
  %v1071 = vrcp.pop %v1007
  %v1072 = vrcp.pop %v1008
  %v1073 = vrcp.pop %v1009
  %v1074 = vrcp.pop %v1010
  %v1075 = vrcp.pop %v1011
  %v1076 = vrcp.pop %v1012
  %v1077 = vrcp.pop %v1013
  %v1078 = vrcp.pop %v1014
  %v1079 = vrcp.pop %v1015
  %v1080 = vrcp.pop %v1016
  %v1081 = vrcp.pop %v1017
  %v1082 = vrcp.pop %v1018
  %v1083 = vrcp.pop %v1019
  %v1084 = vrcp.pop %v1020
  %v1085 = vrcp.pop %v1021
  %v1086 = vrcp.pop %v1022
  %v1087 = vrcp.pop %v1023
  %v1088 = vrcp.pop %v1024
  %v1089 = vrcp.pop %v1025
  %v1090 = vrcp.pop %v1026
  %v1091 = vrcp.pop %v1027
  %v1092 = vrcp.pop %v1028
  %v1093 = vrcp.pop %v1029
  %v1094 = vrcp.pop %v1030
  %v1095 = vrcp.pop %v1031
  %v1096 = vmul.f32 %v1032, %v1064
  %v1097 = vmul.f32 %v1033, %v1065
  %v1098 = vmul.f32 %v1034, %v1066
  %v1099 = vmul.f32 %v1035, %v1067
  %v1100 = vmul.f32 %v1036, %v1068
  %v1101 = vmul.f32 %v1037, %v1069
  %v1102 = vmul.f32 %v1038, %v1070
  %v1103 = vmul.f32 %v1039, %v1071
  %v1104 = vmul.f32 %v1040, %v1072
  %v1105 = vmul.f32 %v1041, %v1073
  %v1106 = vmul.f32 %v1042, %v1074
  %v1107 = vmul.f32 %v1043, %v1075
  %v1108 = vmul.f32 %v1044, %v1076
  %v1109 = vmul.f32 %v1045, %v1077
  %v1110 = vmul.f32 %v1046, %v1078
  %v1111 = vmul.f32 %v1047, %v1079
  %v1112 = vmul.f32 %v1048, %v1080
  %v1113 = vmul.f32 %v1049, %v1081
  %v1114 = vmul.f32 %v1050, %v1082
  %v1115 = vmul.f32 %v1051, %v1083
  %v1116 = vmul.f32 %v1052, %v1084
  %v1117 = vmul.f32 %v1053, %v1085
  %v1118 = vmul.f32 %v1054, %v1086
  %v1119 = vmul.f32 %v1055, %v1087
  %v1120 = vmul.f32 %v1056, %v1088
  %v1121 = vmul.f32 %v1057, %v1089
  %v1122 = vmul.f32 %v1058, %v1090
  %v1123 = vmul.f32 %v1059, %v1091
  %v1124 = vmul.f32 %v1060, %v1092
  %v1125 = vmul.f32 %v1061, %v1093
  %v1126 = vmul.f32 %v1062, %v1094
  %v1127 = vmul.f32 %v1063, %v1095
  %v1128 = vsub.f32 1.0, %v1096
  %v1129 = vsub.f32 1.0, %v1097
  %v1130 = vsub.f32 1.0, %v1098
  %v1131 = vsub.f32 1.0, %v1099
  %v1132 = vsub.f32 1.0, %v1100
  %v1133 = vsub.f32 1.0, %v1101
  %v1134 = vsub.f32 1.0, %v1102
  %v1135 = vsub.f32 1.0, %v1103
  %v1136 = vsub.f32 1.0, %v1104
  %v1137 = vsub.f32 1.0, %v1105
  %v1138 = vsub.f32 1.0, %v1106
  %v1139 = vsub.f32 1.0, %v1107
  %v1140 = vsub.f32 1.0, %v1108
  %v1141 = vsub.f32 1.0, %v1109
  %v1142 = vsub.f32 1.0, %v1110
  %v1143 = vsub.f32 1.0, %v1111
  %v1144 = vsub.f32 1.0, %v1112
  %v1145 = vsub.f32 1.0, %v1113
  %v1146 = vsub.f32 1.0, %v1114
  %v1147 = vsub.f32 1.0, %v1115
  %v1148 = vsub.f32 1.0, %v1116
  %v1149 = vsub.f32 1.0, %v1117
  %v1150 = vsub.f32 1.0, %v1118
  %v1151 = vsub.f32 1.0, %v1119
  %v1152 = vsub.f32 1.0, %v1120
  %v1153 = vsub.f32 1.0, %v1121
  %v1154 = vsub.f32 1.0, %v1122
  %v1155 = vsub.f32 1.0, %v1123
  %v1156 = vsub.f32 1.0, %v1124
  %v1157 = vsub.f32 1.0, %v1125
  %v1158 = vsub.f32 1.0, %v1126
  %v1159 = vsub.f32 1.0, %v1127
  %v1160 = vsub.f32 %v658, %v145
  %v1161 = vsub.f32 %v659, %v146
  %v1162 = vsub.f32 %v660, %v147
  %v1163 = vsub.f32 %v661, %v148
  %v1164 = vsub.f32 %v662, %v149
  %v1165 = vsub.f32 %v663, %v150
  %v1166 = vsub.f32 %v664, %v151
  %v1167 = vsub.f32 %v665, %v152
  %v1168 = vsub.f32 %v666, %v153
  %v1169 = vsub.f32 %v667, %v154
  %v1170 = vsub.f32 %v668, %v155
  %v1171 = vsub.f32 %v669, %v156
  %v1172 = vsub.f32 %v670, %v157
  %v1173 = vsub.f32 %v671, %v158
  %v1174 = vsub.f32 %v672, %v159
  %v1175 = vsub.f32 %v673, %v160
  %v1176 = vsub.f32 %v674, %v161
  %v1177 = vsub.f32 %v675, %v162
  %v1178 = vsub.f32 %v676, %v163
  %v1179 = vsub.f32 %v677, %v164
  %v1180 = vsub.f32 %v678, %v165
  %v1181 = vsub.f32 %v679, %v166
  %v1182 = vsub.f32 %v680, %v167
  %v1183 = vsub.f32 %v681, %v168
  %v1184 = vsub.f32 %v682, %v169
  %v1185 = vsub.f32 %v683, %v170
  %v1186 = vsub.f32 %v684, %v171
  %v1187 = vsub.f32 %v685, %v172
  %v1188 = vsub.f32 %v686, %v173
  %v1189 = vsub.f32 %v687, %v174
  %v1190 = vsub.f32 %v688, %v175
  %v1191 = vsub.f32 %v689, %v176
  %v1192 = vsub.f32 %v888, 1.0
  %v1193 = vsub.f32 %v889, 1.0
  %v1194 = vsub.f32 %v890, 1.0
  %v1195 = vsub.f32 %v891, 1.0
  %v1196 = vsub.f32 %v892, 1.0
  %v1197 = vsub.f32 %v893, 1.0
  %v1198 = vsub.f32 %v894, 1.0
  %v1199 = vsub.f32 %v895, 1.0
  %v1200 = vsub.f32 %v896, 1.0
  %v1201 = vsub.f32 %v897, 1.0
  %v1202 = vsub.f32 %v898, 1.0
  %v1203 = vsub.f32 %v899, 1.0
  %v1204 = vsub.f32 %v900, 1.0
  %v1205 = vsub.f32 %v901, 1.0
  %v1206 = vsub.f32 %v902, 1.0
  %v1207 = vsub.f32 %v903, 1.0
  %v1208 = vsub.f32 %v904, 1.0
  %v1209 = vsub.f32 %v905, 1.0
  %v1210 = vsub.f32 %v906, 1.0
  %v1211 = vsub.f32 %v907, 1.0
  %v1212 = vsub.f32 %v908, 1.0
  %v1213 = vsub.f32 %v909, 1.0
  %v1214 = vsub.f32 %v910, 1.0
  %v1215 = vsub.f32 %v911, 1.0
  %v1216 = vsub.f32 %v912, 1.0
  %v1217 = vsub.f32 %v913, 1.0
  %v1218 = vsub.f32 %v914, 1.0
  %v1219 = vsub.f32 %v915, 1.0
  %v1220 = vsub.f32 %v916, 1.0
  %v1221 = vsub.f32 %v917, 1.0
  %v1222 = vsub.f32 %v918, 1.0
  %v1223 = vsub.f32 %v919, 1.0
  %v1224 = vadd.f32 %v1192, %v145
  %v1225 = vadd.f32 %v1193, %v146
  %v1226 = vadd.f32 %v1194, %v147
  %v1227 = vadd.f32 %v1195, %v148
  %v1228 = vadd.f32 %v1196, %v149
  %v1229 = vadd.f32 %v1197, %v150
  %v1230 = vadd.f32 %v1198, %v151
  %v1231 = vadd.f32 %v1199, %v152
  %v1232 = vadd.f32 %v1200, %v153
  %v1233 = vadd.f32 %v1201, %v154
  %v1234 = vadd.f32 %v1202, %v155
  %v1235 = vadd.f32 %v1203, %v156
  %v1236 = vadd.f32 %v1204, %v157
  %v1237 = vadd.f32 %v1205, %v158
  %v1238 = vadd.f32 %v1206, %v159
  %v1239 = vadd.f32 %v1207, %v160
  %v1240 = vadd.f32 %v1208, %v161
  %v1241 = vadd.f32 %v1209, %v162
  %v1242 = vadd.f32 %v1210, %v163
  %v1243 = vadd.f32 %v1211, %v164
  %v1244 = vadd.f32 %v1212, %v165
  %v1245 = vadd.f32 %v1213, %v166
  %v1246 = vadd.f32 %v1214, %v167
  %v1247 = vadd.f32 %v1215, %v168
  %v1248 = vadd.f32 %v1216, %v169
  %v1249 = vadd.f32 %v1217, %v170
  %v1250 = vadd.f32 %v1218, %v171
  %v1251 = vadd.f32 %v1219, %v172
  %v1252 = vadd.f32 %v1220, %v173
  %v1253 = vadd.f32 %v1221, %v174
  %v1254 = vadd.f32 %v1222, %v175
  %v1255 = vadd.f32 %v1223, %v176
  %v1256 = vadd.f32 %v923, %v1224
  %v1257 = vadd.f32 %v923, %v1225
  %v1258 = vadd.f32 %v928, %v1226
  %v1259 = vadd.f32 %v928, %v1227
  %v1260 = vadd.f32 %v933, %v1228
  %v1261 = vadd.f32 %v933, %v1229
  %v1262 = vadd.f32 %v938, %v1230
  %v1263 = vadd.f32 %v938, %v1231
  %v1264 = vadd.f32 %v943, %v1232
  %v1265 = vadd.f32 %v943, %v1233
  %v1266 = vadd.f32 %v948, %v1234
  %v1267 = vadd.f32 %v948, %v1235
  %v1268 = vadd.f32 %v953, %v1236
  %v1269 = vadd.f32 %v953, %v1237
  %v1270 = vadd.f32 %v958, %v1238
  %v1271 = vadd.f32 %v958, %v1239
  %v1272 = vadd.f32 %v963, %v1240
  %v1273 = vadd.f32 %v963, %v1241
  %v1274 = vadd.f32 %v968, %v1242
  %v1275 = vadd.f32 %v968, %v1243
  %v1276 = vadd.f32 %v973, %v1244
  %v1277 = vadd.f32 %v973, %v1245
  %v1278 = vadd.f32 %v978, %v1246
  %v1279 = vadd.f32 %v978, %v1247
  %v1280 = vadd.f32 %v983, %v1248
  %v1281 = vadd.f32 %v983, %v1249
  %v1282 = vadd.f32 %v988, %v1250
  %v1283 = vadd.f32 %v988, %v1251
  %v1284 = vadd.f32 %v993, %v1252
  %v1285 = vadd.f32 %v993, %v1253
  %v1286 = vadd.f32 %v998, %v1254
  %v1287 = vadd.f32 %v998, %v1255
  %vm1288 = vcmp.le.f32.partialorder %v1256, 0.0
  %vm1289 = vcmp.le.f32.partialorder %v1257, 0.0
  %vm1290 = vcmp.le.f32.partialorder %v1258, 0.0
  %vm1291 = vcmp.le.f32.partialorder %v1259, 0.0
  %vm1292 = vcmp.le.f32.partialorder %v1260, 0.0
  %vm1293 = vcmp.le.f32.partialorder %v1261, 0.0
  %vm1294 = vcmp.le.f32.partialorder %v1262, 0.0
  %vm1295 = vcmp.le.f32.partialorder %v1263, 0.0
  %vm1296 = vcmp.le.f32.partialorder %v1264, 0.0
  %vm1297 = vcmp.le.f32.partialorder %v1265, 0.0
  %vm1298 = vcmp.le.f32.partialorder %v1266, 0.0
  %vm1299 = vcmp.le.f32.partialorder %v1267, 0.0
  %vm1300 = vcmp.le.f32.partialorder %v1268, 0.0
  %vm1301 = vcmp.le.f32.partialorder %v1269, 0.0
  %vm1302 = vcmp.le.f32.partialorder %v1270, 0.0
  %vm1303 = vcmp.le.f32.partialorder %v1271, 0.0
  %vm1304 = vcmp.le.f32.partialorder %v1272, 0.0
  %vm1305 = vcmp.le.f32.partialorder %v1273, 0.0
  %vm1306 = vcmp.le.f32.partialorder %v1274, 0.0
  %vm1307 = vcmp.le.f32.partialorder %v1275, 0.0
  %vm1308 = vcmp.le.f32.partialorder %v1276, 0.0
  %vm1309 = vcmp.le.f32.partialorder %v1277, 0.0
  %vm1310 = vcmp.le.f32.partialorder %v1278, 0.0
  %vm1311 = vcmp.le.f32.partialorder %v1279, 0.0
  %vm1312 = vcmp.le.f32.partialorder %v1280, 0.0
  %vm1313 = vcmp.le.f32.partialorder %v1281, 0.0
  %vm1314 = vcmp.le.f32.partialorder %v1282, 0.0
  %vm1315 = vcmp.le.f32.partialorder %v1283, 0.0
  %vm1316 = vcmp.le.f32.partialorder %v1284, 0.0
  %vm1317 = vcmp.le.f32.partialorder %v1285, 0.0
  %vm1318 = vcmp.le.f32.partialorder %v1286, 0.0
  %vm1319 = vcmp.le.f32.partialorder %v1287, 0.0
  %v1320 = vsel %vm1288, 1.0, %v1256
  %v1321 = vsel %vm1289, 1.0, %v1257
  %v1322 = vsel %vm1290, 1.0, %v1258
  %v1323 = vsel %vm1291, 1.0, %v1259
  %v1324 = vsel %vm1292, 1.0, %v1260
  %v1325 = vsel %vm1293, 1.0, %v1261
  %v1326 = vsel %vm1294, 1.0, %v1262
  %v1327 = vsel %vm1295, 1.0, %v1263
  %v1328 = vsel %vm1296, 1.0, %v1264
  %v1329 = vsel %vm1297, 1.0, %v1265
  %v1330 = vsel %vm1298, 1.0, %v1266
  %v1331 = vsel %vm1299, 1.0, %v1267
  %v1332 = vsel %vm1300, 1.0, %v1268
  %v1333 = vsel %vm1301, 1.0, %v1269
  %v1334 = vsel %vm1302, 1.0, %v1270
  %v1335 = vsel %vm1303, 1.0, %v1271
  %v1336 = vsel %vm1304, 1.0, %v1272
  %v1337 = vsel %vm1305, 1.0, %v1273
  %v1338 = vsel %vm1306, 1.0, %v1274
  %v1339 = vsel %vm1307, 1.0, %v1275
  %v1340 = vsel %vm1308, 1.0, %v1276
  %v1341 = vsel %vm1309, 1.0, %v1277
  %v1342 = vsel %vm1310, 1.0, %v1278
  %v1343 = vsel %vm1311, 1.0, %v1279
  %v1344 = vsel %vm1312, 1.0, %v1280
  %v1345 = vsel %vm1313, 1.0, %v1281
  %v1346 = vsel %vm1314, 1.0, %v1282
  %v1347 = vsel %vm1315, 1.0, %v1283
  %v1348 = vsel %vm1316, 1.0, %v1284
  %v1349 = vsel %vm1317, 1.0, %v1285
  %v1350 = vsel %vm1318, 1.0, %v1286
  %v1351 = vsel %vm1319, 1.0, %v1287
  %v1352 = vsub.f32 %v923, %v1160
  %v1353 = vsub.f32 %v923, %v1161
  %v1354 = vsub.f32 %v928, %v1162
  %v1355 = vsub.f32 %v928, %v1163
  %v1356 = vsub.f32 %v933, %v1164
  %v1357 = vsub.f32 %v933, %v1165
  %v1358 = vsub.f32 %v938, %v1166
  %v1359 = vsub.f32 %v938, %v1167
  %v1360 = vsub.f32 %v943, %v1168
  %v1361 = vsub.f32 %v943, %v1169
  %v1362 = vsub.f32 %v948, %v1170
  %v1363 = vsub.f32 %v948, %v1171
  %v1364 = vsub.f32 %v953, %v1172
  %v1365 = vsub.f32 %v953, %v1173
  %v1366 = vsub.f32 %v958, %v1174
  %v1367 = vsub.f32 %v958, %v1175
  %v1368 = vsub.f32 %v963, %v1176
  %v1369 = vsub.f32 %v963, %v1177
  %v1370 = vsub.f32 %v968, %v1178
  %v1371 = vsub.f32 %v968, %v1179
  %v1372 = vsub.f32 %v973, %v1180
  %v1373 = vsub.f32 %v973, %v1181
  %v1374 = vsub.f32 %v978, %v1182
  %v1375 = vsub.f32 %v978, %v1183
  %v1376 = vsub.f32 %v983, %v1184
  %v1377 = vsub.f32 %v983, %v1185
  %v1378 = vsub.f32 %v988, %v1186
  %v1379 = vsub.f32 %v988, %v1187
  %v1380 = vsub.f32 %v993, %v1188
  %v1381 = vsub.f32 %v993, %v1189
  %v1382 = vsub.f32 %v998, %v1190
  %v1383 = vsub.f32 %v998, %v1191
  %v1384 = vrcp.pop %v1320
  %v1385 = vrcp.pop %v1321
  %v1386 = vrcp.pop %v1322
  %v1387 = vrcp.pop %v1323
  %v1388 = vrcp.pop %v1324
  %v1389 = vrcp.pop %v1325
  %v1390 = vrcp.pop %v1326
  %v1391 = vrcp.pop %v1327
  %v1392 = vrcp.pop %v1328
  %v1393 = vrcp.pop %v1329
  %v1394 = vrcp.pop %v1330
  %v1395 = vrcp.pop %v1331
  %v1396 = vrcp.pop %v1332
  %v1397 = vrcp.pop %v1333
  %v1398 = vrcp.pop %v1334
  %v1399 = vrcp.pop %v1335
  %v1400 = vrcp.pop %v1336
  %v1401 = vrcp.pop %v1337
  %v1402 = vrcp.pop %v1338
  %v1403 = vrcp.pop %v1339
  %v1404 = vrcp.pop %v1340
  %v1405 = vrcp.pop %v1341
  %v1406 = vrcp.pop %v1342
  %v1407 = vrcp.pop %v1343
  %v1408 = vrcp.pop %v1344
  %v1409 = vrcp.pop %v1345
  %v1410 = vrcp.pop %v1346
  %v1411 = vrcp.pop %v1347
  %v1412 = vrcp.pop %v1348
  %v1413 = vrcp.pop %v1349
  %v1414 = vrcp.pop %v1350
  %v1415 = vrcp.pop %v1351
  %v1416 = vmul.f32 %v1352, %v1384
  %v1417 = vmul.f32 %v1353, %v1385
  %v1418 = vmul.f32 %v1354, %v1386
  %v1419 = vmul.f32 %v1355, %v1387
  %v1420 = vmul.f32 %v1356, %v1388
  %v1421 = vmul.f32 %v1357, %v1389
  %v1422 = vmul.f32 %v1358, %v1390
  %v1423 = vmul.f32 %v1359, %v1391
  %v1424 = vmul.f32 %v1360, %v1392
  %v1425 = vmul.f32 %v1361, %v1393
  %v1426 = vmul.f32 %v1362, %v1394
  %v1427 = vmul.f32 %v1363, %v1395
  %v1428 = vmul.f32 %v1364, %v1396
  %v1429 = vmul.f32 %v1365, %v1397
  %v1430 = vmul.f32 %v1366, %v1398
  %v1431 = vmul.f32 %v1367, %v1399
  %v1432 = vmul.f32 %v1368, %v1400
  %v1433 = vmul.f32 %v1369, %v1401
  %v1434 = vmul.f32 %v1370, %v1402
  %v1435 = vmul.f32 %v1371, %v1403
  %v1436 = vmul.f32 %v1372, %v1404
  %v1437 = vmul.f32 %v1373, %v1405
  %v1438 = vmul.f32 %v1374, %v1406
  %v1439 = vmul.f32 %v1375, %v1407
  %v1440 = vmul.f32 %v1376, %v1408
  %v1441 = vmul.f32 %v1377, %v1409
  %v1442 = vmul.f32 %v1378, %v1410
  %v1443 = vmul.f32 %v1379, %v1411
  %v1444 = vmul.f32 %v1380, %v1412
  %v1445 = vmul.f32 %v1381, %v1413
  %v1446 = vmul.f32 %v1382, %v1414
  %v1447 = vmul.f32 %v1383, %v1415
  %v1448 = vsub.f32 1.0, %v1416
  %v1449 = vsub.f32 1.0, %v1417
  %v1450 = vsub.f32 1.0, %v1418
  %v1451 = vsub.f32 1.0, %v1419
  %v1452 = vsub.f32 1.0, %v1420
  %v1453 = vsub.f32 1.0, %v1421
  %v1454 = vsub.f32 1.0, %v1422
  %v1455 = vsub.f32 1.0, %v1423
  %v1456 = vsub.f32 1.0, %v1424
  %v1457 = vsub.f32 1.0, %v1425
  %v1458 = vsub.f32 1.0, %v1426
  %v1459 = vsub.f32 1.0, %v1427
  %v1460 = vsub.f32 1.0, %v1428
  %v1461 = vsub.f32 1.0, %v1429
  %v1462 = vsub.f32 1.0, %v1430
  %v1463 = vsub.f32 1.0, %v1431
  %v1464 = vsub.f32 1.0, %v1432
  %v1465 = vsub.f32 1.0, %v1433
  %v1466 = vsub.f32 1.0, %v1434
  %v1467 = vsub.f32 1.0, %v1435
  %v1468 = vsub.f32 1.0, %v1436
  %v1469 = vsub.f32 1.0, %v1437
  %v1470 = vsub.f32 1.0, %v1438
  %v1471 = vsub.f32 1.0, %v1439
  %v1472 = vsub.f32 1.0, %v1440
  %v1473 = vsub.f32 1.0, %v1441
  %v1474 = vsub.f32 1.0, %v1442
  %v1475 = vsub.f32 1.0, %v1443
  %v1476 = vsub.f32 1.0, %v1444
  %v1477 = vsub.f32 1.0, %v1445
  %v1478 = vsub.f32 1.0, %v1446
  %v1479 = vsub.f32 1.0, %v1447
  %v1480 = vsub.f32 %v1128, %v1448
  %v1481 = vsub.f32 %v1129, %v1449
  %v1482 = vsub.f32 %v1130, %v1450
  %v1483 = vsub.f32 %v1131, %v1451
  %v1484 = vsub.f32 %v1132, %v1452
  %v1485 = vsub.f32 %v1133, %v1453
  %v1486 = vsub.f32 %v1134, %v1454
  %v1487 = vsub.f32 %v1135, %v1455
  %v1488 = vsub.f32 %v1136, %v1456
  %v1489 = vsub.f32 %v1137, %v1457
  %v1490 = vsub.f32 %v1138, %v1458
  %v1491 = vsub.f32 %v1139, %v1459
  %v1492 = vsub.f32 %v1140, %v1460
  %v1493 = vsub.f32 %v1141, %v1461
  %v1494 = vsub.f32 %v1142, %v1462
  %v1495 = vsub.f32 %v1143, %v1463
  %v1496 = vsub.f32 %v1144, %v1464
  %v1497 = vsub.f32 %v1145, %v1465
  %v1498 = vsub.f32 %v1146, %v1466
  %v1499 = vsub.f32 %v1147, %v1467
  %v1500 = vsub.f32 %v1148, %v1468
  %v1501 = vsub.f32 %v1149, %v1469
  %v1502 = vsub.f32 %v1150, %v1470
  %v1503 = vsub.f32 %v1151, %v1471
  %v1504 = vsub.f32 %v1152, %v1472
  %v1505 = vsub.f32 %v1153, %v1473
  %v1506 = vsub.f32 %v1154, %v1474
  %v1507 = vsub.f32 %v1155, %v1475
  %v1508 = vsub.f32 %v1156, %v1476
  %v1509 = vsub.f32 %v1157, %v1477
  %v1510 = vsub.f32 %v1158, %v1478
  %v1511 = vsub.f32 %v1159, %v1479
  %v1512 = vmul.f32 %v177, %v1480
  %v1513 = vmul.f32 %v178, %v1481
  %v1514 = vmul.f32 %v179, %v1482
  %v1515 = vmul.f32 %v180, %v1483
  %v1516 = vmul.f32 %v181, %v1484
  %v1517 = vmul.f32 %v182, %v1485
  %v1518 = vmul.f32 %v183, %v1486
  %v1519 = vmul.f32 %v184, %v1487
  %v1520 = vmul.f32 %v185, %v1488
  %v1521 = vmul.f32 %v186, %v1489
  %v1522 = vmul.f32 %v187, %v1490
  %v1523 = vmul.f32 %v188, %v1491
  %v1524 = vmul.f32 %v189, %v1492
  %v1525 = vmul.f32 %v190, %v1493
  %v1526 = vmul.f32 %v191, %v1494
  %v1527 = vmul.f32 %v192, %v1495
  %v1528 = vmul.f32 %v193, %v1496
  %v1529 = vmul.f32 %v194, %v1497
  %v1530 = vmul.f32 %v195, %v1498
  %v1531 = vmul.f32 %v196, %v1499
  %v1532 = vmul.f32 %v197, %v1500
  %v1533 = vmul.f32 %v198, %v1501
  %v1534 = vmul.f32 %v199, %v1502
  %v1535 = vmul.f32 %v200, %v1503
  %v1536 = vmul.f32 %v201, %v1504
  %v1537 = vmul.f32 %v202, %v1505
  %v1538 = vmul.f32 %v203, %v1506
  %v1539 = vmul.f32 %v204, %v1507
  %v1540 = vmul.f32 %v205, %v1508
  %v1541 = vmul.f32 %v206, %v1509
  %v1542 = vmul.f32 %v207, %v1510
  %v1543 = vmul.f32 %v208, %v1511
  %v1544 = vadd.f32 %v1512, %v1513
  %1545 = vadd.xlane.f32.xlu0 %v1544
  %v1546 = vpop.xlane.xlu0 %1545
  %v1547 = vadd.f32 %v1514, %v1515
  %1548 = vadd.xlane.f32.xlu0 %v1547
  %v1549 = vpop.xlane.xlu0 %1548
  %v1550 = vadd.f32 %v1516, %v1517
  %1551 = vadd.xlane.f32.xlu0 %v1550
  %v1552 = vpop.xlane.xlu0 %1551
  %v1553 = vadd.f32 %v1518, %v1519
  %1554 = vadd.xlane.f32.xlu0 %v1553
  %v1555 = vpop.xlane.xlu0 %1554
  %v1556 = vadd.f32 %v1520, %v1521
  %1557 = vadd.xlane.f32.xlu0 %v1556
  %v1558 = vpop.xlane.xlu0 %1557
  %v1559 = vadd.f32 %v1522, %v1523
  %1560 = vadd.xlane.f32.xlu0 %v1559
  %v1561 = vpop.xlane.xlu0 %1560
  %v1562 = vadd.f32 %v1524, %v1525
  %1563 = vadd.xlane.f32.xlu0 %v1562
  %v1564 = vpop.xlane.xlu0 %1563
  %v1565 = vadd.f32 %v1526, %v1527
  %1566 = vadd.xlane.f32.xlu0 %v1565
  %v1567 = vpop.xlane.xlu0 %1566
  %v1568 = vadd.f32 %v1528, %v1529
  %1569 = vadd.xlane.f32.xlu0 %v1568
  %v1570 = vpop.xlane.xlu0 %1569
  %v1571 = vadd.f32 %v1530, %v1531
  %1572 = vadd.xlane.f32.xlu0 %v1571
  %v1573 = vpop.xlane.xlu0 %1572
  %v1574 = vadd.f32 %v1532, %v1533
  %1575 = vadd.xlane.f32.xlu0 %v1574
  %v1576 = vpop.xlane.xlu0 %1575
  %v1577 = vadd.f32 %v1534, %v1535
  %1578 = vadd.xlane.f32.xlu0 %v1577
  %v1579 = vpop.xlane.xlu0 %1578
  %v1580 = vadd.f32 %v1536, %v1537
  %1581 = vadd.xlane.f32.xlu0 %v1580
  %v1582 = vpop.xlane.xlu0 %1581
  %v1583 = vadd.f32 %v1538, %v1539
  %1584 = vadd.xlane.f32.xlu0 %v1583
  %v1585 = vpop.xlane.xlu0 %1584
  %v1586 = vadd.f32 %v1540, %v1541
  %1587 = vadd.xlane.f32.xlu0 %v1586
  %v1588 = vpop.xlane.xlu0 %1587
  %v1589 = vadd.f32 %v1542, %v1543
  %1590 = vadd.xlane.f32.xlu0 %v1589
  %v1591 = vpop.xlane.xlu0 %1590
  %v1592 = vsub.f32 0.0, %v1546
  %v1593 = vsub.f32 0.0, %v1549
  %v1594 = vsub.f32 0.0, %v1552
  %v1595 = vsub.f32 0.0, %v1555
  %v1596 = vsub.f32 0.0, %v1558
  %v1597 = vsub.f32 0.0, %v1561
  %v1598 = vsub.f32 0.0, %v1564
  %v1599 = vsub.f32 0.0, %v1567
  %v1600 = vsub.f32 0.0, %v1570
  %v1601 = vsub.f32 0.0, %v1573
  %v1602 = vsub.f32 0.0, %v1576
  %v1603 = vsub.f32 0.0, %v1579
  %v1604 = vsub.f32 0.0, %v1582
  %v1605 = vsub.f32 0.0, %v1585
  %v1606 = vsub.f32 0.0, %v1588
  %v1607 = vsub.f32 0.0, %v1591
  %vm1608 = vcmask 7168
  %1609 = vst.msk [vmem:[%s4] sm:$0xff] %vm1608, %v1592
  %1610 = vst.msk [vmem:[%s4 + $0x8] sm:$0xff] %vm1608, %v1593
  %1611 = vst.msk [vmem:[%s4 + $0x10] sm:$0xff] %vm1608, %v1594
  %1612 = vst.msk [vmem:[%s4 + $0x18] sm:$0xff] %vm1608, %v1595
  %1613 = vst.msk [vmem:[%s4 + $0x20] sm:$0xff] %vm1608, %v1596
  %1614 = vst.msk [vmem:[%s4 + $0x28] sm:$0xff] %vm1608, %v1597
  %1615 = vst.msk [vmem:[%s4 + $0x30] sm:$0xff] %vm1608, %v1598
  %1616 = vst.msk [vmem:[%s4 + $0x38] sm:$0xff] %vm1608, %v1599
  %1617 = vst.msk [vmem:[%s4 + $0x40] sm:$0xff] %vm1608, %v1600
  %1618 = vst.msk [vmem:[%s4 + $0x48] sm:$0xff] %vm1608, %v1601
  %1619 = vst.msk [vmem:[%s4 + $0x50] sm:$0xff] %vm1608, %v1602
  %1620 = vst.msk [vmem:[%s4 + $0x58] sm:$0xff] %vm1608, %v1603
  %1621 = vst.msk [vmem:[%s4 + $0x60] sm:$0xff] %vm1608, %v1604
  %1622 = vst.msk [vmem:[%s4 + $0x68] sm:$0xff] %vm1608, %v1605
  %1623 = vst.msk [vmem:[%s4 + $0x70] sm:$0xff] %vm1608, %v1606
  %1624 = vst.msk [vmem:[%s4 + $0x78] sm:$0xff] %vm1608, %v1607
  // Predicated region
  $region18: #{lovasz_softmax_loss.3} parent=0 // pred_check
    _
  $region19: #{lovasz_softmax_loss.3} parent=0 // pred_check_branch
    %1626 = sbr.rel (0) target = $region21
  $region20: #{lovasz_softmax_loss.3} parent=0 // pred_region
    _
  $region21: #{lovasz_softmax_loss.3} parent=0 // pred_fallthru
    _
  // Predicated region
  $region22: #{lovasz_softmax_loss.3} parent=0 // pred_check
    _
  $region23: #{lovasz_softmax_loss.3} parent=0 // pred_check_branch
    %1628 = sbr.rel (0) target = $region25
  $region24: #{lovasz_softmax_loss.3} parent=0 // pred_region
    _
  $region25: #{lovasz_softmax_loss.3} parent=0 // pred_fallthru
    _

</llo_original>
